<compile_context>
chip_gen: v7x
topology: tpu7x:2x2x1
jax: 0.10.0
libtpu: 0.0.40
codegen_flags: <defaults>
</compile_context>

<pallas_src>
import functools

import jax
import jax.numpy as jnp
from jax import lax
from jax.experimental import pallas as pl
from jax.experimental.pallas import tpu as pltpu


# ----------------------------------------------------------------------------
# Fused Pallas kernel: 4 LSTM layers x T timesteps, everything in VMEM.
# ----------------------------------------------------------------------------
def _tts_fused_kernel(x_ref, *refs, T, B, H, num_layers):
    out_ref = refs[-1]
    weight_refs = refs[:-1]          # 3 refs per layer: (w_ih, w_hh, bias)

    # Input arrives batch-major (row b*T + t) straight from the (B, T, Din)
    # tensor (free reshape in the wrapper).  Regroup rows to time-major
    # (row t*B + b) once, with static single-row sublane slices.
    x = x_ref[...]                   # (B*T, Din0)
    cur = jnp.concatenate(
        [x[bb * T + t: bb * T + t + 1, :] for t in range(T) for bb in range(B)],
        axis=0)                      # (T*B, Din0), time-major

    for layer in range(num_layers):
        w_ih = weight_refs[3 * layer + 0][...]   # (Din, 4H), gate cols (i,f,o,g)
        w_hh = weight_refs[3 * layer + 1][...]   # (H,   4H)
        bias = weight_refs[3 * layer + 2][...]   # (1,   4H)

        # Input projection for every timestep at once (one big MXU pass),
        # bias folded in here so it is off the serial recurrence path.
        xproj = jnp.dot(cur, w_ih, preferred_element_type=jnp.float32) + bias

        h = jnp.zeros((B, H), jnp.float32)
        c = jnp.zeros((B, H), jnp.float32)
        hs = []
        for t in range(T):           # recurrence: inherently serial, unrolled
            gates = xproj[t * B:(t + 1) * B, :] + jnp.dot(
                h, w_hh, preferred_element_type=jnp.float32)
            sig = jax.nn.sigmoid(gates[:, :3 * H])   # i, f, o in one sigmoid
            i_g = sig[:, 0 * H:1 * H]
            f_g = sig[:, 1 * H:2 * H]
            o_g = sig[:, 2 * H:3 * H]
            g_g = jnp.tanh(gates[:, 3 * H:4 * H])
            c = f_g * c + i_g * g_g
            h = o_g * jnp.tanh(c)
            hs.append(h)

        if layer + 1 < num_layers:
            cur = jnp.concatenate(hs, axis=0)         # (T*B, H) -> next layer
        else:
            # Final layer: lane-concat per-step hiddens -> (B, T*H); a single
            # lane-dense store.  Wrapper reshape to (B, T, H) is free.
            out_ref[...] = jnp.concatenate(hs, axis=1)


# ----------------------------------------------------------------------------
# Public wrapper: batch-first (B, T, Din) in, (B, T, H) out — one pallas_call,
# jitted so the whole forward is a single XLA executable.
# ----------------------------------------------------------------------------
@jax.jit
def text_to_speech_forward(kernel_layers, text_btd):
    """kernel_layers: flat list [w_ih_0, w_hh_0, b_0, w_ih_1, ...] (4 layers)."""
    B, T, Din = text_btd.shape
    H = kernel_layers[1].shape[0]                    # w_hh of layer 0 is (H, 4H)
    num_layers = len(kernel_layers) // 3

    # Batch-major flat rows: pure (free) reshape, no transpose op emitted.
    x_flat = text_btd.reshape(B * T, Din).astype(jnp.float32)

    n_in = 1 + len(kernel_layers)
    out = pl.pallas_call(
        functools.partial(_tts_fused_kernel, T=T, B=B, H=H, num_layers=num_layers),
        out_shape=jax.ShapeDtypeStruct((B, T * H), jnp.float32),
        in_specs=[pl.BlockSpec(memory_space=pltpu.MemorySpace.VMEM)] * n_in,
        out_specs=pl.BlockSpec(memory_space=pltpu.MemorySpace.VMEM),
    )(x_flat, *kernel_layers)

    return out.reshape(B, T, H)                      # free reshape, (B, T, H)


# ----------------------------------------------------------------------------
# Parameter construction (PyTorch layout: uniform(-1/sqrt(H), 1/sqrt(H)),
# gate order (i, f, g, o)), plus conversion to the kernel layout.
# ----------------------------------------------------------------------------
def make_lstm_params(key, input_dim, hidden_dim, num_layers):
    params = []
    k = 1.0 / jnp.sqrt(jnp.float32(hidden_dim))
    for layer in range(num_layers):
        d_in = input_dim if layer == 0 else hidden_dim
        key, k1, k2, k3, k4 = jax.random.split(key, 5)
        params.append(dict(
            w_ih=jax.random.uniform(k1, (4 * hidden_dim, d_in), jnp.float32, -k, k),
            w_hh=jax.random.uniform(k2, (4 * hidden_dim, hidden_dim), jnp.float32, -k, k),
            b_ih=jax.random.uniform(k3, (4 * hidden_dim,), jnp.float32, -k, k),
            b_hh=jax.random.uniform(k4, (4 * hidden_dim,), jnp.float32, -k, k),
        ))
    return params, key


def to_kernel_layers(layers, hidden_dim):
    """Pre-transpose, fold biases, permute gate cols (i,f,g,o) -> (i,f,o,g)."""
    H = hidden_dim
    perm = jnp.concatenate([
        jnp.arange(0, 2 * H),        # i, f
        jnp.arange(3 * H, 4 * H),    # o
        jnp.arange(2 * H, 3 * H),    # g
    ])
    flat = []
    for p in layers:
        flat.append(p["w_ih"].T[:, perm])                       # (Din, 4H)
        flat.append(p["w_hh"].T[:, perm])                       # (H,   4H)
        flat.append((p["b_ih"] + p["b_hh"])[perm][None, :])     # (1,   4H)
    return flat


# ----------------------------------------------------------------------------
# Pure-JAX reference (lax.scan, original PyTorch gate layout) for correctness.
# ----------------------------------------------------------------------------
def _lstm_layer_ref(x_tbd, p):
    H = p["w_hh"].shape[1]
    w_ih = p["w_ih"].T
    w_hh = p["w_hh"].T
    b = p["b_ih"] + p["b_hh"]
    _, B, _ = x_tbd.shape

    def step(carry, x_t):
        h, c = carry
        gates = x_t @ w_ih + h @ w_hh + b
        i_g = jax.nn.sigmoid(gates[:, 0 * H:1 * H])
        f_g = jax.nn.sigmoid(gates[:, 1 * H:2 * H])
        g_g = jnp.tanh(gates[:, 2 * H:3 * H])
        o_g = jax.nn.sigmoid(gates[:, 3 * H:4 * H])
        c_new = f_g * c + i_g * g_g
        h_new = o_g * jnp.tanh(c_new)
        return (h_new, c_new), h_new

    init = (jnp.zeros((B, H), jnp.float32), jnp.zeros((B, H), jnp.float32))
    _, ys = lax.scan(step, init, x_tbd)
    return ys


def text_to_speech_forward_ref(layers, text_btd):
    x = jnp.transpose(text_btd, (1, 0, 2)).astype(jnp.float32)
    for p in layers:
        x = _lstm_layer_ref(x, p)
    return jnp.transpose(x, (1, 0, 2))


# ----------------------------------------------------------------------------
if __name__ == "__main__":
    # Small shapes consistent with the module's forward: batch=2, seq=8,
    # input_dim=16, hidden_dim=32, output_dim=32 (== hidden_dim; see note).
    B, T = 2, 8
    INPUT_DIM, HIDDEN_DIM, OUTPUT_DIM = 16, 32, 32

    key = jax.random.PRNGKey(0)
    enc_params, key = make_lstm_params(key, INPUT_DIM, HIDDEN_DIM, num_layers=2)
    dec_params, key = make_lstm_params(key, HIDDEN_DIM, OUTPUT_DIM, num_layers=2)
    all_layers = enc_params + dec_params                       # 4 LSTM layers
    kernel_layers = to_kernel_layers(all_layers, HIDDEN_DIM)   # 12 arrays

    key, xkey = jax.random.split(key)
    text = jax.random.normal(xkey, (B, T, INPUT_DIM), dtype=jnp.float32)

    out = jax.block_until_ready(text_to_speech_forward(kernel_layers, text))
    assert out.shape == (B, T, OUTPUT_DIM), out.shape

    ref = jax.block_until_ready(text_to_speech_forward_ref(all_layers, text))
    max_err = float(jnp.max(jnp.abs(out - ref)))
    assert jnp.allclose(out, ref, atol=2e-5, rtol=2e-5), max_err

    print("KERNEL_OK")
</pallas_src>

<mosaic_0001>
module attributes {stable_mosaic.version = 11 : i64} {
  func.func @_tts_fused_kernel(%arg0: memref<16x16xf32, #tpu.memory_space<vmem>>, %arg1: memref<16x128xf32, #tpu.memory_space<vmem>>, %arg2: memref<32x128xf32, #tpu.memory_space<vmem>>, %arg3: memref<1x128xf32, #tpu.memory_space<vmem>>, %arg4: memref<32x128xf32, #tpu.memory_space<vmem>>, %arg5: memref<32x128xf32, #tpu.memory_space<vmem>>, %arg6: memref<1x128xf32, #tpu.memory_space<vmem>>, %arg7: memref<32x128xf32, #tpu.memory_space<vmem>>, %arg8: memref<32x128xf32, #tpu.memory_space<vmem>>, %arg9: memref<1x128xf32, #tpu.memory_space<vmem>>, %arg10: memref<32x128xf32, #tpu.memory_space<vmem>>, %arg11: memref<32x128xf32, #tpu.memory_space<vmem>>, %arg12: memref<1x128xf32, #tpu.memory_space<vmem>>, %arg13: memref<2x256xf32, #tpu.memory_space<vmem>>) attributes {dimension_semantics = [], scalar_prefetch = 0 : i64, scratch_operands = 0 : i64, tpu.core_type = #tpu.core_type<tc>} {
    %c0 = arith.constant 0 : index
    %c0_0 = arith.constant 0 : index
    %0 = vector.load %arg0[%c0, %c0_0] : memref<16x16xf32, #tpu.memory_space<vmem>>, vector<16x16xf32>
    %1 = vector.extract_strided_slice %0 {offsets = [0, 0], sizes = [1, 16], strides = [1, 1]} : vector<16x16xf32> to vector<1x16xf32>
    %2 = vector.extract_strided_slice %0 {offsets = [8, 0], sizes = [1, 16], strides = [1, 1]} : vector<16x16xf32> to vector<1x16xf32>
    %3 = vector.extract_strided_slice %0 {offsets = [1, 0], sizes = [1, 16], strides = [1, 1]} : vector<16x16xf32> to vector<1x16xf32>
    %4 = vector.extract_strided_slice %0 {offsets = [9, 0], sizes = [1, 16], strides = [1, 1]} : vector<16x16xf32> to vector<1x16xf32>
    %5 = vector.extract_strided_slice %0 {offsets = [2, 0], sizes = [1, 16], strides = [1, 1]} : vector<16x16xf32> to vector<1x16xf32>
    %6 = vector.extract_strided_slice %0 {offsets = [10, 0], sizes = [1, 16], strides = [1, 1]} : vector<16x16xf32> to vector<1x16xf32>
    %7 = vector.extract_strided_slice %0 {offsets = [3, 0], sizes = [1, 16], strides = [1, 1]} : vector<16x16xf32> to vector<1x16xf32>
    %8 = vector.extract_strided_slice %0 {offsets = [11, 0], sizes = [1, 16], strides = [1, 1]} : vector<16x16xf32> to vector<1x16xf32>
    %9 = vector.extract_strided_slice %0 {offsets = [4, 0], sizes = [1, 16], strides = [1, 1]} : vector<16x16xf32> to vector<1x16xf32>
    %10 = vector.extract_strided_slice %0 {offsets = [12, 0], sizes = [1, 16], strides = [1, 1]} : vector<16x16xf32> to vector<1x16xf32>
    %11 = vector.extract_strided_slice %0 {offsets = [5, 0], sizes = [1, 16], strides = [1, 1]} : vector<16x16xf32> to vector<1x16xf32>
    %12 = vector.extract_strided_slice %0 {offsets = [13, 0], sizes = [1, 16], strides = [1, 1]} : vector<16x16xf32> to vector<1x16xf32>
    %13 = vector.extract_strided_slice %0 {offsets = [6, 0], sizes = [1, 16], strides = [1, 1]} : vector<16x16xf32> to vector<1x16xf32>
    %14 = vector.extract_strided_slice %0 {offsets = [14, 0], sizes = [1, 16], strides = [1, 1]} : vector<16x16xf32> to vector<1x16xf32>
    %15 = vector.extract_strided_slice %0 {offsets = [7, 0], sizes = [1, 16], strides = [1, 1]} : vector<16x16xf32> to vector<1x16xf32>
    %16 = vector.extract_strided_slice %0 {offsets = [15, 0], sizes = [1, 16], strides = [1, 1]} : vector<16x16xf32> to vector<1x16xf32>
    %17 = tpu.concatenate %1, %2, %3, %4, %5, %6, %7, %8, %9, %10, %11, %12, %13, %14, %15, %16 in 0 : vector<1x16xf32>, vector<1x16xf32>, vector<1x16xf32>, vector<1x16xf32>, vector<1x16xf32>, vector<1x16xf32>, vector<1x16xf32>, vector<1x16xf32>, vector<1x16xf32>, vector<1x16xf32>, vector<1x16xf32>, vector<1x16xf32>, vector<1x16xf32>, vector<1x16xf32>, vector<1x16xf32>, vector<1x16xf32> -> vector<16x16xf32>
    %c0_1 = arith.constant 0 : index
    %c0_2 = arith.constant 0 : index
    %18 = vector.load %arg1[%c0_1, %c0_2] : memref<16x128xf32, #tpu.memory_space<vmem>>, vector<16x128xf32>
    %c0_3 = arith.constant 0 : index
    %c0_4 = arith.constant 0 : index
    %19 = vector.load %arg2[%c0_3, %c0_4] : memref<32x128xf32, #tpu.memory_space<vmem>>, vector<32x128xf32>
    %c0_5 = arith.constant 0 : index
    %c0_6 = arith.constant 0 : index
    %20 = vector.load %arg3[%c0_5, %c0_6] : memref<1x128xf32, #tpu.memory_space<vmem>>, vector<1x128xf32>
    %cst = arith.constant dense<0.000000e+00> : vector<16x128xf32>
    %21 = tpu.matmul %17, %18, %cst {dimension_numbers = #tpu.dot_dimension_numbers<[1], [0], [0], [1], [0, 0, 1, 1], [], []>} : vector<16x16xf32>, vector<16x128xf32>, vector<16x128xf32> -> vector<16x128xf32>
    %22 = vector.broadcast %20 : vector<1x128xf32> to vector<16x128xf32>
    %23 = arith.addf %21, %22 : vector<16x128xf32>
    %cst_7 = arith.constant 0.000000e+00 : f32
    %24 = vector.broadcast %cst_7 : f32 to vector<2x32xf32>
    %cst_8 = arith.constant 0.000000e+00 : f32
    %25 = vector.broadcast %cst_8 : f32 to vector<2x32xf32>
    %26 = vector.extract_strided_slice %23 {offsets = [0, 0], sizes = [2, 128], strides = [1, 1]} : vector<16x128xf32> to vector<2x128xf32>
    %cst_9 = arith.constant dense<0.000000e+00> : vector<2x128xf32>
    %27 = tpu.matmul %24, %19, %cst_9 {dimension_numbers = #tpu.dot_dimension_numbers<[1], [0], [0], [1], [0, 0, 1, 1], [], []>} : vector<2x32xf32>, vector<32x128xf32>, vector<2x128xf32> -> vector<2x128xf32>
    %28 = arith.addf %26, %27 : vector<2x128xf32>
    %29 = vector.extract_strided_slice %28 {offsets = [0, 0], sizes = [2, 96], strides = [1, 1]} : vector<2x128xf32> to vector<2x96xf32>
    %30 = arith.negf %29 : vector<2x96xf32>
    %31 = math.exp %30 : vector<2x96xf32>
    %cst_10 = arith.constant 1.000000e+00 : f32
    %32 = vector.broadcast %cst_10 : f32 to vector<2x96xf32>
    %33 = arith.addf %32, %31 : vector<2x96xf32>
    %34 = arith.divf %32, %33 : vector<2x96xf32>
    %35 = vector.extract_strided_slice %34 {offsets = [0, 0], sizes = [2, 32], strides = [1, 1]} : vector<2x96xf32> to vector<2x32xf32>
    %36 = vector.extract_strided_slice %34 {offsets = [0, 32], sizes = [2, 32], strides = [1, 1]} : vector<2x96xf32> to vector<2x32xf32>
    %37 = vector.extract_strided_slice %34 {offsets = [0, 64], sizes = [2, 32], strides = [1, 1]} : vector<2x96xf32> to vector<2x32xf32>
    %38 = vector.extract_strided_slice %28 {offsets = [0, 96], sizes = [2, 32], strides = [1, 1]} : vector<2x128xf32> to vector<2x32xf32>
    %39 = math.tanh %38 : vector<2x32xf32>
    %40 = arith.mulf %36, %25 : vector<2x32xf32>
    %41 = arith.mulf %35, %39 : vector<2x32xf32>
    %42 = arith.addf %40, %41 : vector<2x32xf32>
    %43 = math.tanh %42 : vector<2x32xf32>
    %44 = arith.mulf %37, %43 : vector<2x32xf32>
    %45 = vector.extract_strided_slice %23 {offsets = [2, 0], sizes = [2, 128], strides = [1, 1]} : vector<16x128xf32> to vector<2x128xf32>
    %cst_11 = arith.constant dense<0.000000e+00> : vector<2x128xf32>
    %46 = tpu.matmul %44, %19, %cst_11 {dimension_numbers = #tpu.dot_dimension_numbers<[1], [0], [0], [1], [0, 0, 1, 1], [], []>} : vector<2x32xf32>, vector<32x128xf32>, vector<2x128xf32> -> vector<2x128xf32>
    %47 = arith.addf %45, %46 : vector<2x128xf32>
    %48 = vector.extract_strided_slice %47 {offsets = [0, 0], sizes = [2, 96], strides = [1, 1]} : vector<2x128xf32> to vector<2x96xf32>
    %49 = arith.negf %48 : vector<2x96xf32>
    %50 = math.exp %49 : vector<2x96xf32>
    %cst_12 = arith.constant 1.000000e+00 : f32
    %51 = vector.broadcast %cst_12 : f32 to vector<2x96xf32>
    %52 = arith.addf %51, %50 : vector<2x96xf32>
    %53 = arith.divf %51, %52 : vector<2x96xf32>
    %54 = vector.extract_strided_slice %53 {offsets = [0, 0], sizes = [2, 32], strides = [1, 1]} : vector<2x96xf32> to vector<2x32xf32>
    %55 = vector.extract_strided_slice %53 {offsets = [0, 32], sizes = [2, 32], strides = [1, 1]} : vector<2x96xf32> to vector<2x32xf32>
    %56 = vector.extract_strided_slice %53 {offsets = [0, 64], sizes = [2, 32], strides = [1, 1]} : vector<2x96xf32> to vector<2x32xf32>
    %57 = vector.extract_strided_slice %47 {offsets = [0, 96], sizes = [2, 32], strides = [1, 1]} : vector<2x128xf32> to vector<2x32xf32>
    %58 = math.tanh %57 : vector<2x32xf32>
    %59 = arith.mulf %55, %42 : vector<2x32xf32>
    %60 = arith.mulf %54, %58 : vector<2x32xf32>
    %61 = arith.addf %59, %60 : vector<2x32xf32>
    %62 = math.tanh %61 : vector<2x32xf32>
    %63 = arith.mulf %56, %62 : vector<2x32xf32>
    %64 = vector.extract_strided_slice %23 {offsets = [4, 0], sizes = [2, 128], strides = [1, 1]} : vector<16x128xf32> to vector<2x128xf32>
    %cst_13 = arith.constant dense<0.000000e+00> : vector<2x128xf32>
    %65 = tpu.matmul %63, %19, %cst_13 {dimension_numbers = #tpu.dot_dimension_numbers<[1], [0], [0], [1], [0, 0, 1, 1], [], []>} : vector<2x32xf32>, vector<32x128xf32>, vector<2x128xf32> -> vector<2x128xf32>
    %66 = arith.addf %64, %65 : vector<2x128xf32>
    %67 = vector.extract_strided_slice %66 {offsets = [0, 0], sizes = [2, 96], strides = [1, 1]} : vector<2x128xf32> to vector<2x96xf32>
    %68 = arith.negf %67 : vector<2x96xf32>
    %69 = math.exp %68 : vector<2x96xf32>
    %cst_14 = arith.constant 1.000000e+00 : f32
    %70 = vector.broadcast %cst_14 : f32 to vector<2x96xf32>
    %71 = arith.addf %70, %69 : vector<2x96xf32>
    %72 = arith.divf %70, %71 : vector<2x96xf32>
    %73 = vector.extract_strided_slice %72 {offsets = [0, 0], sizes = [2, 32], strides = [1, 1]} : vector<2x96xf32> to vector<2x32xf32>
    %74 = vector.extract_strided_slice %72 {offsets = [0, 32], sizes = [2, 32], strides = [1, 1]} : vector<2x96xf32> to vector<2x32xf32>
    %75 = vector.extract_strided_slice %72 {offsets = [0, 64], sizes = [2, 32], strides = [1, 1]} : vector<2x96xf32> to vector<2x32xf32>
    %76 = vector.extract_strided_slice %66 {offsets = [0, 96], sizes = [2, 32], strides = [1, 1]} : vector<2x128xf32> to vector<2x32xf32>
    %77 = math.tanh %76 : vector<2x32xf32>
    %78 = arith.mulf %74, %61 : vector<2x32xf32>
    %79 = arith.mulf %73, %77 : vector<2x32xf32>
    %80 = arith.addf %78, %79 : vector<2x32xf32>
    %81 = math.tanh %80 : vector<2x32xf32>
    %82 = arith.mulf %75, %81 : vector<2x32xf32>
    %83 = vector.extract_strided_slice %23 {offsets = [6, 0], sizes = [2, 128], strides = [1, 1]} : vector<16x128xf32> to vector<2x128xf32>
    %cst_15 = arith.constant dense<0.000000e+00> : vector<2x128xf32>
    %84 = tpu.matmul %82, %19, %cst_15 {dimension_numbers = #tpu.dot_dimension_numbers<[1], [0], [0], [1], [0, 0, 1, 1], [], []>} : vector<2x32xf32>, vector<32x128xf32>, vector<2x128xf32> -> vector<2x128xf32>
    %85 = arith.addf %83, %84 : vector<2x128xf32>
    %86 = vector.extract_strided_slice %85 {offsets = [0, 0], sizes = [2, 96], strides = [1, 1]} : vector<2x128xf32> to vector<2x96xf32>
    %87 = arith.negf %86 : vector<2x96xf32>
    %88 = math.exp %87 : vector<2x96xf32>
    %cst_16 = arith.constant 1.000000e+00 : f32
    %89 = vector.broadcast %cst_16 : f32 to vector<2x96xf32>
    %90 = arith.addf %89, %88 : vector<2x96xf32>
    %91 = arith.divf %89, %90 : vector<2x96xf32>
    %92 = vector.extract_strided_slice %91 {offsets = [0, 0], sizes = [2, 32], strides = [1, 1]} : vector<2x96xf32> to vector<2x32xf32>
    %93 = vector.extract_strided_slice %91 {offsets = [0, 32], sizes = [2, 32], strides = [1, 1]} : vector<2x96xf32> to vector<2x32xf32>
    %94 = vector.extract_strided_slice %91 {offsets = [0, 64], sizes = [2, 32], strides = [1, 1]} : vector<2x96xf32> to vector<2x32xf32>
    %95 = vector.extract_strided_slice %85 {offsets = [0, 96], sizes = [2, 32], strides = [1, 1]} : vector<2x128xf32> to vector<2x32xf32>
    %96 = math.tanh %95 : vector<2x32xf32>
    %97 = arith.mulf %93, %80 : vector<2x32xf32>
    %98 = arith.mulf %92, %96 : vector<2x32xf32>
    %99 = arith.addf %97, %98 : vector<2x32xf32>
    %100 = math.tanh %99 : vector<2x32xf32>
    %101 = arith.mulf %94, %100 : vector<2x32xf32>
    %102 = vector.extract_strided_slice %23 {offsets = [8, 0], sizes = [2, 128], strides = [1, 1]} : vector<16x128xf32> to vector<2x128xf32>
    %cst_17 = arith.constant dense<0.000000e+00> : vector<2x128xf32>
    %103 = tpu.matmul %101, %19, %cst_17 {dimension_numbers = #tpu.dot_dimension_numbers<[1], [0], [0], [1], [0, 0, 1, 1], [], []>} : vector<2x32xf32>, vector<32x128xf32>, vector<2x128xf32> -> vector<2x128xf32>
    %104 = arith.addf %102, %103 : vector<2x128xf32>
    %105 = vector.extract_strided_slice %104 {offsets = [0, 0], sizes = [2, 96], strides = [1, 1]} : vector<2x128xf32> to vector<2x96xf32>
    %106 = arith.negf %105 : vector<2x96xf32>
    %107 = math.exp %106 : vector<2x96xf32>
    %cst_18 = arith.constant 1.000000e+00 : f32
    %108 = vector.broadcast %cst_18 : f32 to vector<2x96xf32>
    %109 = arith.addf %108, %107 : vector<2x96xf32>
    %110 = arith.divf %108, %109 : vector<2x96xf32>
    %111 = vector.extract_strided_slice %110 {offsets = [0, 0], sizes = [2, 32], strides = [1, 1]} : vector<2x96xf32> to vector<2x32xf32>
    %112 = vector.extract_strided_slice %110 {offsets = [0, 32], sizes = [2, 32], strides = [1, 1]} : vector<2x96xf32> to vector<2x32xf32>
    %113 = vector.extract_strided_slice %110 {offsets = [0, 64], sizes = [2, 32], strides = [1, 1]} : vector<2x96xf32> to vector<2x32xf32>
    %114 = vector.extract_strided_slice %104 {offsets = [0, 96], sizes = [2, 32], strides = [1, 1]} : vector<2x128xf32> to vector<2x32xf32>
    %115 = math.tanh %114 : vector<2x32xf32>
    %116 = arith.mulf %112, %99 : vector<2x32xf32>
    %117 = arith.mulf %111, %115 : vector<2x32xf32>
    %118 = arith.addf %116, %117 : vector<2x32xf32>
    %119 = math.tanh %118 : vector<2x32xf32>
    %120 = arith.mulf %113, %119 : vector<2x32xf32>
    %121 = vector.extract_strided_slice %23 {offsets = [10, 0], sizes = [2, 128], strides = [1, 1]} : vector<16x128xf32> to vector<2x128xf32>
    %cst_19 = arith.constant dense<0.000000e+00> : vector<2x128xf32>
    %122 = tpu.matmul %120, %19, %cst_19 {dimension_numbers = #tpu.dot_dimension_numbers<[1], [0], [0], [1], [0, 0, 1, 1], [], []>} : vector<2x32xf32>, vector<32x128xf32>, vector<2x128xf32> -> vector<2x128xf32>
    %123 = arith.addf %121, %122 : vector<2x128xf32>
    %124 = vector.extract_strided_slice %123 {offsets = [0, 0], sizes = [2, 96], strides = [1, 1]} : vector<2x128xf32> to vector<2x96xf32>
    %125 = arith.negf %124 : vector<2x96xf32>
    %126 = math.exp %125 : vector<2x96xf32>
    %cst_20 = arith.constant 1.000000e+00 : f32
    %127 = vector.broadcast %cst_20 : f32 to vector<2x96xf32>
    %128 = arith.addf %127, %126 : vector<2x96xf32>
    %129 = arith.divf %127, %128 : vector<2x96xf32>
    %130 = vector.extract_strided_slice %129 {offsets = [0, 0], sizes = [2, 32], strides = [1, 1]} : vector<2x96xf32> to vector<2x32xf32>
    %131 = vector.extract_strided_slice %129 {offsets = [0, 32], sizes = [2, 32], strides = [1, 1]} : vector<2x96xf32> to vector<2x32xf32>
    %132 = vector.extract_strided_slice %129 {offsets = [0, 64], sizes = [2, 32], strides = [1, 1]} : vector<2x96xf32> to vector<2x32xf32>
    %133 = vector.extract_strided_slice %123 {offsets = [0, 96], sizes = [2, 32], strides = [1, 1]} : vector<2x128xf32> to vector<2x32xf32>
    %134 = math.tanh %133 : vector<2x32xf32>
    %135 = arith.mulf %131, %118 : vector<2x32xf32>
    %136 = arith.mulf %130, %134 : vector<2x32xf32>
    %137 = arith.addf %135, %136 : vector<2x32xf32>
    %138 = math.tanh %137 : vector<2x32xf32>
    %139 = arith.mulf %132, %138 : vector<2x32xf32>
    %140 = vector.extract_strided_slice %23 {offsets = [12, 0], sizes = [2, 128], strides = [1, 1]} : vector<16x128xf32> to vector<2x128xf32>
    %cst_21 = arith.constant dense<0.000000e+00> : vector<2x128xf32>
    %141 = tpu.matmul %139, %19, %cst_21 {dimension_numbers = #tpu.dot_dimension_numbers<[1], [0], [0], [1], [0, 0, 1, 1], [], []>} : vector<2x32xf32>, vector<32x128xf32>, vector<2x128xf32> -> vector<2x128xf32>
    %142 = arith.addf %140, %141 : vector<2x128xf32>
    %143 = vector.extract_strided_slice %142 {offsets = [0, 0], sizes = [2, 96], strides = [1, 1]} : vector<2x128xf32> to vector<2x96xf32>
    %144 = arith.negf %143 : vector<2x96xf32>
    %145 = math.exp %144 : vector<2x96xf32>
    %cst_22 = arith.constant 1.000000e+00 : f32
    %146 = vector.broadcast %cst_22 : f32 to vector<2x96xf32>
    %147 = arith.addf %146, %145 : vector<2x96xf32>
    %148 = arith.divf %146, %147 : vector<2x96xf32>
    %149 = vector.extract_strided_slice %148 {offsets = [0, 0], sizes = [2, 32], strides = [1, 1]} : vector<2x96xf32> to vector<2x32xf32>
    %150 = vector.extract_strided_slice %148 {offsets = [0, 32], sizes = [2, 32], strides = [1, 1]} : vector<2x96xf32> to vector<2x32xf32>
    %151 = vector.extract_strided_slice %148 {offsets = [0, 64], sizes = [2, 32], strides = [1, 1]} : vector<2x96xf32> to vector<2x32xf32>
    %152 = vector.extract_strided_slice %142 {offsets = [0, 96], sizes = [2, 32], strides = [1, 1]} : vector<2x128xf32> to vector<2x32xf32>
    %153 = math.tanh %152 : vector<2x32xf32>
    %154 = arith.mulf %150, %137 : vector<2x32xf32>
    %155 = arith.mulf %149, %153 : vector<2x32xf32>
    %156 = arith.addf %154, %155 : vector<2x32xf32>
    %157 = math.tanh %156 : vector<2x32xf32>
    %158 = arith.mulf %151, %157 : vector<2x32xf32>
    %159 = vector.extract_strided_slice %23 {offsets = [14, 0], sizes = [2, 128], strides = [1, 1]} : vector<16x128xf32> to vector<2x128xf32>
    %cst_23 = arith.constant dense<0.000000e+00> : vector<2x128xf32>
    %160 = tpu.matmul %158, %19, %cst_23 {dimension_numbers = #tpu.dot_dimension_numbers<[1], [0], [0], [1], [0, 0, 1, 1], [], []>} : vector<2x32xf32>, vector<32x128xf32>, vector<2x128xf32> -> vector<2x128xf32>
    %161 = arith.addf %159, %160 : vector<2x128xf32>
    %162 = vector.extract_strided_slice %161 {offsets = [0, 0], sizes = [2, 96], strides = [1, 1]} : vector<2x128xf32> to vector<2x96xf32>
    %163 = arith.negf %162 : vector<2x96xf32>
    %164 = math.exp %163 : vector<2x96xf32>
    %cst_24 = arith.constant 1.000000e+00 : f32
    %165 = vector.broadcast %cst_24 : f32 to vector<2x96xf32>
    %166 = arith.addf %165, %164 : vector<2x96xf32>
    %167 = arith.divf %165, %166 : vector<2x96xf32>
    %168 = vector.extract_strided_slice %167 {offsets = [0, 0], sizes = [2, 32], strides = [1, 1]} : vector<2x96xf32> to vector<2x32xf32>
    %169 = vector.extract_strided_slice %167 {offsets = [0, 32], sizes = [2, 32], strides = [1, 1]} : vector<2x96xf32> to vector<2x32xf32>
    %170 = vector.extract_strided_slice %167 {offsets = [0, 64], sizes = [2, 32], strides = [1, 1]} : vector<2x96xf32> to vector<2x32xf32>
    %171 = vector.extract_strided_slice %161 {offsets = [0, 96], sizes = [2, 32], strides = [1, 1]} : vector<2x128xf32> to vector<2x32xf32>
    %172 = math.tanh %171 : vector<2x32xf32>
    %173 = arith.mulf %169, %156 : vector<2x32xf32>
    %174 = arith.mulf %168, %172 : vector<2x32xf32>
    %175 = arith.addf %173, %174 : vector<2x32xf32>
    %176 = math.tanh %175 : vector<2x32xf32>
    %177 = arith.mulf %170, %176 : vector<2x32xf32>
    %178 = tpu.concatenate %44, %63, %82, %101, %120, %139, %158, %177 in 0 : vector<2x32xf32>, vector<2x32xf32>, vector<2x32xf32>, vector<2x32xf32>, vector<2x32xf32>, vector<2x32xf32>, vector<2x32xf32>, vector<2x32xf32> -> vector<16x32xf32>
    %c0_25 = arith.constant 0 : index
    %c0_26 = arith.constant 0 : index
    %179 = vector.load %arg4[%c0_25, %c0_26] : memref<32x128xf32, #tpu.memory_space<vmem>>, vector<32x128xf32>
    %c0_27 = arith.constant 0 : index
    %c0_28 = arith.constant 0 : index
    %180 = vector.load %arg5[%c0_27, %c0_28] : memref<32x128xf32, #tpu.memory_space<vmem>>, vector<32x128xf32>
    %c0_29 = arith.constant 0 : index
    %c0_30 = arith.constant 0 : index
    %181 = vector.load %arg6[%c0_29, %c0_30] : memref<1x128xf32, #tpu.memory_space<vmem>>, vector<1x128xf32>
    %cst_31 = arith.constant dense<0.000000e+00> : vector<16x128xf32>
    %182 = tpu.matmul %178, %179, %cst_31 {dimension_numbers = #tpu.dot_dimension_numbers<[1], [0], [0], [1], [0, 0, 1, 1], [], []>} : vector<16x32xf32>, vector<32x128xf32>, vector<16x128xf32> -> vector<16x128xf32>
    %183 = vector.broadcast %181 : vector<1x128xf32> to vector<16x128xf32>
    %184 = arith.addf %182, %183 : vector<16x128xf32>
    %cst_32 = arith.constant 0.000000e+00 : f32
    %185 = vector.broadcast %cst_32 : f32 to vector<2x32xf32>
    %cst_33 = arith.constant 0.000000e+00 : f32
    %186 = vector.broadcast %cst_33 : f32 to vector<2x32xf32>
    %187 = vector.extract_strided_slice %184 {offsets = [0, 0], sizes = [2, 128], strides = [1, 1]} : vector<16x128xf32> to vector<2x128xf32>
    %cst_34 = arith.constant dense<0.000000e+00> : vector<2x128xf32>
    %188 = tpu.matmul %185, %180, %cst_34 {dimension_numbers = #tpu.dot_dimension_numbers<[1], [0], [0], [1], [0, 0, 1, 1], [], []>} : vector<2x32xf32>, vector<32x128xf32>, vector<2x128xf32> -> vector<2x128xf32>
    %189 = arith.addf %187, %188 : vector<2x128xf32>
    %190 = vector.extract_strided_slice %189 {offsets = [0, 0], sizes = [2, 96], strides = [1, 1]} : vector<2x128xf32> to vector<2x96xf32>
    %191 = arith.negf %190 : vector<2x96xf32>
    %192 = math.exp %191 : vector<2x96xf32>
    %cst_35 = arith.constant 1.000000e+00 : f32
    %193 = vector.broadcast %cst_35 : f32 to vector<2x96xf32>
    %194 = arith.addf %193, %192 : vector<2x96xf32>
    %195 = arith.divf %193, %194 : vector<2x96xf32>
    %196 = vector.extract_strided_slice %195 {offsets = [0, 0], sizes = [2, 32], strides = [1, 1]} : vector<2x96xf32> to vector<2x32xf32>
    %197 = vector.extract_strided_slice %195 {offsets = [0, 32], sizes = [2, 32], strides = [1, 1]} : vector<2x96xf32> to vector<2x32xf32>
    %198 = vector.extract_strided_slice %195 {offsets = [0, 64], sizes = [2, 32], strides = [1, 1]} : vector<2x96xf32> to vector<2x32xf32>
    %199 = vector.extract_strided_slice %189 {offsets = [0, 96], sizes = [2, 32], strides = [1, 1]} : vector<2x128xf32> to vector<2x32xf32>
    %200 = math.tanh %199 : vector<2x32xf32>
    %201 = arith.mulf %197, %186 : vector<2x32xf32>
    %202 = arith.mulf %196, %200 : vector<2x32xf32>
    %203 = arith.addf %201, %202 : vector<2x32xf32>
    %204 = math.tanh %203 : vector<2x32xf32>
    %205 = arith.mulf %198, %204 : vector<2x32xf32>
    %206 = vector.extract_strided_slice %184 {offsets = [2, 0], sizes = [2, 128], strides = [1, 1]} : vector<16x128xf32> to vector<2x128xf32>
    %cst_36 = arith.constant dense<0.000000e+00> : vector<2x128xf32>
    %207 = tpu.matmul %205, %180, %cst_36 {dimension_numbers = #tpu.dot_dimension_numbers<[1], [0], [0], [1], [0, 0, 1, 1], [], []>} : vector<2x32xf32>, vector<32x128xf32>, vector<2x128xf32> -> vector<2x128xf32>
    %208 = arith.addf %206, %207 : vector<2x128xf32>
    %209 = vector.extract_strided_slice %208 {offsets = [0, 0], sizes = [2, 96], strides = [1, 1]} : vector<2x128xf32> to vector<2x96xf32>
    %210 = arith.negf %209 : vector<2x96xf32>
    %211 = math.exp %210 : vector<2x96xf32>
    %cst_37 = arith.constant 1.000000e+00 : f32
    %212 = vector.broadcast %cst_37 : f32 to vector<2x96xf32>
    %213 = arith.addf %212, %211 : vector<2x96xf32>
    %214 = arith.divf %212, %213 : vector<2x96xf32>
    %215 = vector.extract_strided_slice %214 {offsets = [0, 0], sizes = [2, 32], strides = [1, 1]} : vector<2x96xf32> to vector<2x32xf32>
    %216 = vector.extract_strided_slice %214 {offsets = [0, 32], sizes = [2, 32], strides = [1, 1]} : vector<2x96xf32> to vector<2x32xf32>
    %217 = vector.extract_strided_slice %214 {offsets = [0, 64], sizes = [2, 32], strides = [1, 1]} : vector<2x96xf32> to vector<2x32xf32>
    %218 = vector.extract_strided_slice %208 {offsets = [0, 96], sizes = [2, 32], strides = [1, 1]} : vector<2x128xf32> to vector<2x32xf32>
    %219 = math.tanh %218 : vector<2x32xf32>
    %220 = arith.mulf %216, %203 : vector<2x32xf32>
    %221 = arith.mulf %215, %219 : vector<2x32xf32>
    %222 = arith.addf %220, %221 : vector<2x32xf32>
    %223 = math.tanh %222 : vector<2x32xf32>
    %224 = arith.mulf %217, %223 : vector<2x32xf32>
    %225 = vector.extract_strided_slice %184 {offsets = [4, 0], sizes = [2, 128], strides = [1, 1]} : vector<16x128xf32> to vector<2x128xf32>
    %cst_38 = arith.constant dense<0.000000e+00> : vector<2x128xf32>
    %226 = tpu.matmul %224, %180, %cst_38 {dimension_numbers = #tpu.dot_dimension_numbers<[1], [0], [0], [1], [0, 0, 1, 1], [], []>} : vector<2x32xf32>, vector<32x128xf32>, vector<2x128xf32> -> vector<2x128xf32>
    %227 = arith.addf %225, %226 : vector<2x128xf32>
    %228 = vector.extract_strided_slice %227 {offsets = [0, 0], sizes = [2, 96], strides = [1, 1]} : vector<2x128xf32> to vector<2x96xf32>
    %229 = arith.negf %228 : vector<2x96xf32>
    %230 = math.exp %229 : vector<2x96xf32>
    %cst_39 = arith.constant 1.000000e+00 : f32
    %231 = vector.broadcast %cst_39 : f32 to vector<2x96xf32>
    %232 = arith.addf %231, %230 : vector<2x96xf32>
    %233 = arith.divf %231, %232 : vector<2x96xf32>
    %234 = vector.extract_strided_slice %233 {offsets = [0, 0], sizes = [2, 32], strides = [1, 1]} : vector<2x96xf32> to vector<2x32xf32>
    %235 = vector.extract_strided_slice %233 {offsets = [0, 32], sizes = [2, 32], strides = [1, 1]} : vector<2x96xf32> to vector<2x32xf32>
    %236 = vector.extract_strided_slice %233 {offsets = [0, 64], sizes = [2, 32], strides = [1, 1]} : vector<2x96xf32> to vector<2x32xf32>
    %237 = vector.extract_strided_slice %227 {offsets = [0, 96], sizes = [2, 32], strides = [1, 1]} : vector<2x128xf32> to vector<2x32xf32>
    %238 = math.tanh %237 : vector<2x32xf32>
    %239 = arith.mulf %235, %222 : vector<2x32xf32>
    %240 = arith.mulf %234, %238 : vector<2x32xf32>
    %241 = arith.addf %239, %240 : vector<2x32xf32>
    %242 = math.tanh %241 : vector<2x32xf32>
    %243 = arith.mulf %236, %242 : vector<2x32xf32>
    %244 = vector.extract_strided_slice %184 {offsets = [6, 0], sizes = [2, 128], strides = [1, 1]} : vector<16x128xf32> to vector<2x128xf32>
    %cst_40 = arith.constant dense<0.000000e+00> : vector<2x128xf32>
    %245 = tpu.matmul %243, %180, %cst_40 {dimension_numbers = #tpu.dot_dimension_numbers<[1], [0], [0], [1], [0, 0, 1, 1], [], []>} : vector<2x32xf32>, vector<32x128xf32>, vector<2x128xf32> -> vector<2x128xf32>
    %246 = arith.addf %244, %245 : vector<2x128xf32>
    %247 = vector.extract_strided_slice %246 {offsets = [0, 0], sizes = [2, 96], strides = [1, 1]} : vector<2x128xf32> to vector<2x96xf32>
    %248 = arith.negf %247 : vector<2x96xf32>
    %249 = math.exp %248 : vector<2x96xf32>
    %cst_41 = arith.constant 1.000000e+00 : f32
    %250 = vector.broadcast %cst_41 : f32 to vector<2x96xf32>
    %251 = arith.addf %250, %249 : vector<2x96xf32>
    %252 = arith.divf %250, %251 : vector<2x96xf32>
    %253 = vector.extract_strided_slice %252 {offsets = [0, 0], sizes = [2, 32], strides = [1, 1]} : vector<2x96xf32> to vector<2x32xf32>
    %254 = vector.extract_strided_slice %252 {offsets = [0, 32], sizes = [2, 32], strides = [1, 1]} : vector<2x96xf32> to vector<2x32xf32>
    %255 = vector.extract_strided_slice %252 {offsets = [0, 64], sizes = [2, 32], strides = [1, 1]} : vector<2x96xf32> to vector<2x32xf32>
    %256 = vector.extract_strided_slice %246 {offsets = [0, 96], sizes = [2, 32], strides = [1, 1]} : vector<2x128xf32> to vector<2x32xf32>
    %257 = math.tanh %256 : vector<2x32xf32>
    %258 = arith.mulf %254, %241 : vector<2x32xf32>
    %259 = arith.mulf %253, %257 : vector<2x32xf32>
    %260 = arith.addf %258, %259 : vector<2x32xf32>
    %261 = math.tanh %260 : vector<2x32xf32>
    %262 = arith.mulf %255, %261 : vector<2x32xf32>
    %263 = vector.extract_strided_slice %184 {offsets = [8, 0], sizes = [2, 128], strides = [1, 1]} : vector<16x128xf32> to vector<2x128xf32>
    %cst_42 = arith.constant dense<0.000000e+00> : vector<2x128xf32>
    %264 = tpu.matmul %262, %180, %cst_42 {dimension_numbers = #tpu.dot_dimension_numbers<[1], [0], [0], [1], [0, 0, 1, 1], [], []>} : vector<2x32xf32>, vector<32x128xf32>, vector<2x128xf32> -> vector<2x128xf32>
    %265 = arith.addf %263, %264 : vector<2x128xf32>
    %266 = vector.extract_strided_slice %265 {offsets = [0, 0], sizes = [2, 96], strides = [1, 1]} : vector<2x128xf32> to vector<2x96xf32>
    %267 = arith.negf %266 : vector<2x96xf32>
    %268 = math.exp %267 : vector<2x96xf32>
    %cst_43 = arith.constant 1.000000e+00 : f32
    %269 = vector.broadcast %cst_43 : f32 to vector<2x96xf32>
    %270 = arith.addf %269, %268 : vector<2x96xf32>
    %271 = arith.divf %269, %270 : vector<2x96xf32>
    %272 = vector.extract_strided_slice %271 {offsets = [0, 0], sizes = [2, 32], strides = [1, 1]} : vector<2x96xf32> to vector<2x32xf32>
    %273 = vector.extract_strided_slice %271 {offsets = [0, 32], sizes = [2, 32], strides = [1, 1]} : vector<2x96xf32> to vector<2x32xf32>
    %274 = vector.extract_strided_slice %271 {offsets = [0, 64], sizes = [2, 32], strides = [1, 1]} : vector<2x96xf32> to vector<2x32xf32>
    %275 = vector.extract_strided_slice %265 {offsets = [0, 96], sizes = [2, 32], strides = [1, 1]} : vector<2x128xf32> to vector<2x32xf32>
    %276 = math.tanh %275 : vector<2x32xf32>
    %277 = arith.mulf %273, %260 : vector<2x32xf32>
    %278 = arith.mulf %272, %276 : vector<2x32xf32>
    %279 = arith.addf %277, %278 : vector<2x32xf32>
    %280 = math.tanh %279 : vector<2x32xf32>
    %281 = arith.mulf %274, %280 : vector<2x32xf32>
    %282 = vector.extract_strided_slice %184 {offsets = [10, 0], sizes = [2, 128], strides = [1, 1]} : vector<16x128xf32> to vector<2x128xf32>
    %cst_44 = arith.constant dense<0.000000e+00> : vector<2x128xf32>
    %283 = tpu.matmul %281, %180, %cst_44 {dimension_numbers = #tpu.dot_dimension_numbers<[1], [0], [0], [1], [0, 0, 1, 1], [], []>} : vector<2x32xf32>, vector<32x128xf32>, vector<2x128xf32> -> vector<2x128xf32>
    %284 = arith.addf %282, %283 : vector<2x128xf32>
    %285 = vector.extract_strided_slice %284 {offsets = [0, 0], sizes = [2, 96], strides = [1, 1]} : vector<2x128xf32> to vector<2x96xf32>
    %286 = arith.negf %285 : vector<2x96xf32>
    %287 = math.exp %286 : vector<2x96xf32>
    %cst_45 = arith.constant 1.000000e+00 : f32
    %288 = vector.broadcast %cst_45 : f32 to vector<2x96xf32>
    %289 = arith.addf %288, %287 : vector<2x96xf32>
    %290 = arith.divf %288, %289 : vector<2x96xf32>
    %291 = vector.extract_strided_slice %290 {offsets = [0, 0], sizes = [2, 32], strides = [1, 1]} : vector<2x96xf32> to vector<2x32xf32>
    %292 = vector.extract_strided_slice %290 {offsets = [0, 32], sizes = [2, 32], strides = [1, 1]} : vector<2x96xf32> to vector<2x32xf32>
    %293 = vector.extract_strided_slice %290 {offsets = [0, 64], sizes = [2, 32], strides = [1, 1]} : vector<2x96xf32> to vector<2x32xf32>
    %294 = vector.extract_strided_slice %284 {offsets = [0, 96], sizes = [2, 32], strides = [1, 1]} : vector<2x128xf32> to vector<2x32xf32>
    %295 = math.tanh %294 : vector<2x32xf32>
    %296 = arith.mulf %292, %279 : vector<2x32xf32>
    %297 = arith.mulf %291, %295 : vector<2x32xf32>
    %298 = arith.addf %296, %297 : vector<2x32xf32>
    %299 = math.tanh %298 : vector<2x32xf32>
    %300 = arith.mulf %293, %299 : vector<2x32xf32>
    %301 = vector.extract_strided_slice %184 {offsets = [12, 0], sizes = [2, 128], strides = [1, 1]} : vector<16x128xf32> to vector<2x128xf32>
    %cst_46 = arith.constant dense<0.000000e+00> : vector<2x128xf32>
    %302 = tpu.matmul %300, %180, %cst_46 {dimension_numbers = #tpu.dot_dimension_numbers<[1], [0], [0], [1], [0, 0, 1, 1], [], []>} : vector<2x32xf32>, vector<32x128xf32>, vector<2x128xf32> -> vector<2x128xf32>
    %303 = arith.addf %301, %302 : vector<2x128xf32>
    %304 = vector.extract_strided_slice %303 {offsets = [0, 0], sizes = [2, 96], strides = [1, 1]} : vector<2x128xf32> to vector<2x96xf32>
    %305 = arith.negf %304 : vector<2x96xf32>
    %306 = math.exp %305 : vector<2x96xf32>
    %cst_47 = arith.constant 1.000000e+00 : f32
    %307 = vector.broadcast %cst_47 : f32 to vector<2x96xf32>
    %308 = arith.addf %307, %306 : vector<2x96xf32>
    %309 = arith.divf %307, %308 : vector<2x96xf32>
    %310 = vector.extract_strided_slice %309 {offsets = [0, 0], sizes = [2, 32], strides = [1, 1]} : vector<2x96xf32> to vector<2x32xf32>
    %311 = vector.extract_strided_slice %309 {offsets = [0, 32], sizes = [2, 32], strides = [1, 1]} : vector<2x96xf32> to vector<2x32xf32>
    %312 = vector.extract_strided_slice %309 {offsets = [0, 64], sizes = [2, 32], strides = [1, 1]} : vector<2x96xf32> to vector<2x32xf32>
    %313 = vector.extract_strided_slice %303 {offsets = [0, 96], sizes = [2, 32], strides = [1, 1]} : vector<2x128xf32> to vector<2x32xf32>
    %314 = math.tanh %313 : vector<2x32xf32>
    %315 = arith.mulf %311, %298 : vector<2x32xf32>
    %316 = arith.mulf %310, %314 : vector<2x32xf32>
    %317 = arith.addf %315, %316 : vector<2x32xf32>
    %318 = math.tanh %317 : vector<2x32xf32>
    %319 = arith.mulf %312, %318 : vector<2x32xf32>
    %320 = vector.extract_strided_slice %184 {offsets = [14, 0], sizes = [2, 128], strides = [1, 1]} : vector<16x128xf32> to vector<2x128xf32>
    %cst_48 = arith.constant dense<0.000000e+00> : vector<2x128xf32>
    %321 = tpu.matmul %319, %180, %cst_48 {dimension_numbers = #tpu.dot_dimension_numbers<[1], [0], [0], [1], [0, 0, 1, 1], [], []>} : vector<2x32xf32>, vector<32x128xf32>, vector<2x128xf32> -> vector<2x128xf32>
    %322 = arith.addf %320, %321 : vector<2x128xf32>
    %323 = vector.extract_strided_slice %322 {offsets = [0, 0], sizes = [2, 96], strides = [1, 1]} : vector<2x128xf32> to vector<2x96xf32>
    %324 = arith.negf %323 : vector<2x96xf32>
    %325 = math.exp %324 : vector<2x96xf32>
    %cst_49 = arith.constant 1.000000e+00 : f32
    %326 = vector.broadcast %cst_49 : f32 to vector<2x96xf32>
    %327 = arith.addf %326, %325 : vector<2x96xf32>
    %328 = arith.divf %326, %327 : vector<2x96xf32>
    %329 = vector.extract_strided_slice %328 {offsets = [0, 0], sizes = [2, 32], strides = [1, 1]} : vector<2x96xf32> to vector<2x32xf32>
    %330 = vector.extract_strided_slice %328 {offsets = [0, 32], sizes = [2, 32], strides = [1, 1]} : vector<2x96xf32> to vector<2x32xf32>
    %331 = vector.extract_strided_slice %328 {offsets = [0, 64], sizes = [2, 32], strides = [1, 1]} : vector<2x96xf32> to vector<2x32xf32>
    %332 = vector.extract_strided_slice %322 {offsets = [0, 96], sizes = [2, 32], strides = [1, 1]} : vector<2x128xf32> to vector<2x32xf32>
    %333 = math.tanh %332 : vector<2x32xf32>
    %334 = arith.mulf %330, %317 : vector<2x32xf32>
    %335 = arith.mulf %329, %333 : vector<2x32xf32>
    %336 = arith.addf %334, %335 : vector<2x32xf32>
    %337 = math.tanh %336 : vector<2x32xf32>
    %338 = arith.mulf %331, %337 : vector<2x32xf32>
    %339 = tpu.concatenate %205, %224, %243, %262, %281, %300, %319, %338 in 0 : vector<2x32xf32>, vector<2x32xf32>, vector<2x32xf32>, vector<2x32xf32>, vector<2x32xf32>, vector<2x32xf32>, vector<2x32xf32>, vector<2x32xf32> -> vector<16x32xf32>
    %c0_50 = arith.constant 0 : index
    %c0_51 = arith.constant 0 : index
    %340 = vector.load %arg7[%c0_50, %c0_51] : memref<32x128xf32, #tpu.memory_space<vmem>>, vector<32x128xf32>
    %c0_52 = arith.constant 0 : index
    %c0_53 = arith.constant 0 : index
    %341 = vector.load %arg8[%c0_52, %c0_53] : memref<32x128xf32, #tpu.memory_space<vmem>>, vector<32x128xf32>
    %c0_54 = arith.constant 0 : index
    %c0_55 = arith.constant 0 : index
    %342 = vector.load %arg9[%c0_54, %c0_55] : memref<1x128xf32, #tpu.memory_space<vmem>>, vector<1x128xf32>
    %cst_56 = arith.constant dense<0.000000e+00> : vector<16x128xf32>
    %343 = tpu.matmul %339, %340, %cst_56 {dimension_numbers = #tpu.dot_dimension_numbers<[1], [0], [0], [1], [0, 0, 1, 1], [], []>} : vector<16x32xf32>, vector<32x128xf32>, vector<16x128xf32> -> vector<16x128xf32>
    %344 = vector.broadcast %342 : vector<1x128xf32> to vector<16x128xf32>
    %345 = arith.addf %343, %344 : vector<16x128xf32>
    %cst_57 = arith.constant 0.000000e+00 : f32
    %346 = vector.broadcast %cst_57 : f32 to vector<2x32xf32>
    %cst_58 = arith.constant 0.000000e+00 : f32
    %347 = vector.broadcast %cst_58 : f32 to vector<2x32xf32>
    %348 = vector.extract_strided_slice %345 {offsets = [0, 0], sizes = [2, 128], strides = [1, 1]} : vector<16x128xf32> to vector<2x128xf32>
    %cst_59 = arith.constant dense<0.000000e+00> : vector<2x128xf32>
    %349 = tpu.matmul %346, %341, %cst_59 {dimension_numbers = #tpu.dot_dimension_numbers<[1], [0], [0], [1], [0, 0, 1, 1], [], []>} : vector<2x32xf32>, vector<32x128xf32>, vector<2x128xf32> -> vector<2x128xf32>
    %350 = arith.addf %348, %349 : vector<2x128xf32>
    %351 = vector.extract_strided_slice %350 {offsets = [0, 0], sizes = [2, 96], strides = [1, 1]} : vector<2x128xf32> to vector<2x96xf32>
    %352 = arith.negf %351 : vector<2x96xf32>
    %353 = math.exp %352 : vector<2x96xf32>
    %cst_60 = arith.constant 1.000000e+00 : f32
    %354 = vector.broadcast %cst_60 : f32 to vector<2x96xf32>
    %355 = arith.addf %354, %353 : vector<2x96xf32>
    %356 = arith.divf %354, %355 : vector<2x96xf32>
    %357 = vector.extract_strided_slice %356 {offsets = [0, 0], sizes = [2, 32], strides = [1, 1]} : vector<2x96xf32> to vector<2x32xf32>
    %358 = vector.extract_strided_slice %356 {offsets = [0, 32], sizes = [2, 32], strides = [1, 1]} : vector<2x96xf32> to vector<2x32xf32>
    %359 = vector.extract_strided_slice %356 {offsets = [0, 64], sizes = [2, 32], strides = [1, 1]} : vector<2x96xf32> to vector<2x32xf32>
    %360 = vector.extract_strided_slice %350 {offsets = [0, 96], sizes = [2, 32], strides = [1, 1]} : vector<2x128xf32> to vector<2x32xf32>
    %361 = math.tanh %360 : vector<2x32xf32>
    %362 = arith.mulf %358, %347 : vector<2x32xf32>
    %363 = arith.mulf %357, %361 : vector<2x32xf32>
    %364 = arith.addf %362, %363 : vector<2x32xf32>
    %365 = math.tanh %364 : vector<2x32xf32>
    %366 = arith.mulf %359, %365 : vector<2x32xf32>
    %367 = vector.extract_strided_slice %345 {offsets = [2, 0], sizes = [2, 128], strides = [1, 1]} : vector<16x128xf32> to vector<2x128xf32>
    %cst_61 = arith.constant dense<0.000000e+00> : vector<2x128xf32>
    %368 = tpu.matmul %366, %341, %cst_61 {dimension_numbers = #tpu.dot_dimension_numbers<[1], [0], [0], [1], [0, 0, 1, 1], [], []>} : vector<2x32xf32>, vector<32x128xf32>, vector<2x128xf32> -> vector<2x128xf32>
    %369 = arith.addf %367, %368 : vector<2x128xf32>
    %370 = vector.extract_strided_slice %369 {offsets = [0, 0], sizes = [2, 96], strides = [1, 1]} : vector<2x128xf32> to vector<2x96xf32>
    %371 = arith.negf %370 : vector<2x96xf32>
    %372 = math.exp %371 : vector<2x96xf32>
    %cst_62 = arith.constant 1.000000e+00 : f32
    %373 = vector.broadcast %cst_62 : f32 to vector<2x96xf32>
    %374 = arith.addf %373, %372 : vector<2x96xf32>
    %375 = arith.divf %373, %374 : vector<2x96xf32>
    %376 = vector.extract_strided_slice %375 {offsets = [0, 0], sizes = [2, 32], strides = [1, 1]} : vector<2x96xf32> to vector<2x32xf32>
    %377 = vector.extract_strided_slice %375 {offsets = [0, 32], sizes = [2, 32], strides = [1, 1]} : vector<2x96xf32> to vector<2x32xf32>
    %378 = vector.extract_strided_slice %375 {offsets = [0, 64], sizes = [2, 32], strides = [1, 1]} : vector<2x96xf32> to vector<2x32xf32>
    %379 = vector.extract_strided_slice %369 {offsets = [0, 96], sizes = [2, 32], strides = [1, 1]} : vector<2x128xf32> to vector<2x32xf32>
    %380 = math.tanh %379 : vector<2x32xf32>
    %381 = arith.mulf %377, %364 : vector<2x32xf32>
    %382 = arith.mulf %376, %380 : vector<2x32xf32>
    %383 = arith.addf %381, %382 : vector<2x32xf32>
    %384 = math.tanh %383 : vector<2x32xf32>
    %385 = arith.mulf %378, %384 : vector<2x32xf32>
    %386 = vector.extract_strided_slice %345 {offsets = [4, 0], sizes = [2, 128], strides = [1, 1]} : vector<16x128xf32> to vector<2x128xf32>
    %cst_63 = arith.constant dense<0.000000e+00> : vector<2x128xf32>
    %387 = tpu.matmul %385, %341, %cst_63 {dimension_numbers = #tpu.dot_dimension_numbers<[1], [0], [0], [1], [0, 0, 1, 1], [], []>} : vector<2x32xf32>, vector<32x128xf32>, vector<2x128xf32> -> vector<2x128xf32>
    %388 = arith.addf %386, %387 : vector<2x128xf32>
    %389 = vector.extract_strided_slice %388 {offsets = [0, 0], sizes = [2, 96], strides = [1, 1]} : vector<2x128xf32> to vector<2x96xf32>
    %390 = arith.negf %389 : vector<2x96xf32>
    %391 = math.exp %390 : vector<2x96xf32>
    %cst_64 = arith.constant 1.000000e+00 : f32
    %392 = vector.broadcast %cst_64 : f32 to vector<2x96xf32>
    %393 = arith.addf %392, %391 : vector<2x96xf32>
    %394 = arith.divf %392, %393 : vector<2x96xf32>
    %395 = vector.extract_strided_slice %394 {offsets = [0, 0], sizes = [2, 32], strides = [1, 1]} : vector<2x96xf32> to vector<2x32xf32>
    %396 = vector.extract_strided_slice %394 {offsets = [0, 32], sizes = [2, 32], strides = [1, 1]} : vector<2x96xf32> to vector<2x32xf32>
    %397 = vector.extract_strided_slice %394 {offsets = [0, 64], sizes = [2, 32], strides = [1, 1]} : vector<2x96xf32> to vector<2x32xf32>
    %398 = vector.extract_strided_slice %388 {offsets = [0, 96], sizes = [2, 32], strides = [1, 1]} : vector<2x128xf32> to vector<2x32xf32>
    %399 = math.tanh %398 : vector<2x32xf32>
    %400 = arith.mulf %396, %383 : vector<2x32xf32>
    %401 = arith.mulf %395, %399 : vector<2x32xf32>
    %402 = arith.addf %400, %401 : vector<2x32xf32>
    %403 = math.tanh %402 : vector<2x32xf32>
    %404 = arith.mulf %397, %403 : vector<2x32xf32>
    %405 = vector.extract_strided_slice %345 {offsets = [6, 0], sizes = [2, 128], strides = [1, 1]} : vector<16x128xf32> to vector<2x128xf32>
    %cst_65 = arith.constant dense<0.000000e+00> : vector<2x128xf32>
    %406 = tpu.matmul %404, %341, %cst_65 {dimension_numbers = #tpu.dot_dimension_numbers<[1], [0], [0], [1], [0, 0, 1, 1], [], []>} : vector<2x32xf32>, vector<32x128xf32>, vector<2x128xf32> -> vector<2x128xf32>
    %407 = arith.addf %405, %406 : vector<2x128xf32>
    %408 = vector.extract_strided_slice %407 {offsets = [0, 0], sizes = [2, 96], strides = [1, 1]} : vector<2x128xf32> to vector<2x96xf32>
    %409 = arith.negf %408 : vector<2x96xf32>
    %410 = math.exp %409 : vector<2x96xf32>
    %cst_66 = arith.constant 1.000000e+00 : f32
    %411 = vector.broadcast %cst_66 : f32 to vector<2x96xf32>
    %412 = arith.addf %411, %410 : vector<2x96xf32>
    %413 = arith.divf %411, %412 : vector<2x96xf32>
    %414 = vector.extract_strided_slice %413 {offsets = [0, 0], sizes = [2, 32], strides = [1, 1]} : vector<2x96xf32> to vector<2x32xf32>
    %415 = vector.extract_strided_slice %413 {offsets = [0, 32], sizes = [2, 32], strides = [1, 1]} : vector<2x96xf32> to vector<2x32xf32>
    %416 = vector.extract_strided_slice %413 {offsets = [0, 64], sizes = [2, 32], strides = [1, 1]} : vector<2x96xf32> to vector<2x32xf32>
    %417 = vector.extract_strided_slice %407 {offsets = [0, 96], sizes = [2, 32], strides = [1, 1]} : vector<2x128xf32> to vector<2x32xf32>
    %418 = math.tanh %417 : vector<2x32xf32>
    %419 = arith.mulf %415, %402 : vector<2x32xf32>
    %420 = arith.mulf %414, %418 : vector<2x32xf32>
    %421 = arith.addf %419, %420 : vector<2x32xf32>
    %422 = math.tanh %421 : vector<2x32xf32>
    %423 = arith.mulf %416, %422 : vector<2x32xf32>
    %424 = vector.extract_strided_slice %345 {offsets = [8, 0], sizes = [2, 128], strides = [1, 1]} : vector<16x128xf32> to vector<2x128xf32>
    %cst_67 = arith.constant dense<0.000000e+00> : vector<2x128xf32>
    %425 = tpu.matmul %423, %341, %cst_67 {dimension_numbers = #tpu.dot_dimension_numbers<[1], [0], [0], [1], [0, 0, 1, 1], [], []>} : vector<2x32xf32>, vector<32x128xf32>, vector<2x128xf32> -> vector<2x128xf32>
    %426 = arith.addf %424, %425 : vector<2x128xf32>
    %427 = vector.extract_strided_slice %426 {offsets = [0, 0], sizes = [2, 96], strides = [1, 1]} : vector<2x128xf32> to vector<2x96xf32>
    %428 = arith.negf %427 : vector<2x96xf32>
    %429 = math.exp %428 : vector<2x96xf32>
    %cst_68 = arith.constant 1.000000e+00 : f32
    %430 = vector.broadcast %cst_68 : f32 to vector<2x96xf32>
    %431 = arith.addf %430, %429 : vector<2x96xf32>
    %432 = arith.divf %430, %431 : vector<2x96xf32>
    %433 = vector.extract_strided_slice %432 {offsets = [0, 0], sizes = [2, 32], strides = [1, 1]} : vector<2x96xf32> to vector<2x32xf32>
    %434 = vector.extract_strided_slice %432 {offsets = [0, 32], sizes = [2, 32], strides = [1, 1]} : vector<2x96xf32> to vector<2x32xf32>
    %435 = vector.extract_strided_slice %432 {offsets = [0, 64], sizes = [2, 32], strides = [1, 1]} : vector<2x96xf32> to vector<2x32xf32>
    %436 = vector.extract_strided_slice %426 {offsets = [0, 96], sizes = [2, 32], strides = [1, 1]} : vector<2x128xf32> to vector<2x32xf32>
    %437 = math.tanh %436 : vector<2x32xf32>
    %438 = arith.mulf %434, %421 : vector<2x32xf32>
    %439 = arith.mulf %433, %437 : vector<2x32xf32>
    %440 = arith.addf %438, %439 : vector<2x32xf32>
    %441 = math.tanh %440 : vector<2x32xf32>
    %442 = arith.mulf %435, %441 : vector<2x32xf32>
    %443 = vector.extract_strided_slice %345 {offsets = [10, 0], sizes = [2, 128], strides = [1, 1]} : vector<16x128xf32> to vector<2x128xf32>
    %cst_69 = arith.constant dense<0.000000e+00> : vector<2x128xf32>
    %444 = tpu.matmul %442, %341, %cst_69 {dimension_numbers = #tpu.dot_dimension_numbers<[1], [0], [0], [1], [0, 0, 1, 1], [], []>} : vector<2x32xf32>, vector<32x128xf32>, vector<2x128xf32> -> vector<2x128xf32>
    %445 = arith.addf %443, %444 : vector<2x128xf32>
    %446 = vector.extract_strided_slice %445 {offsets = [0, 0], sizes = [2, 96], strides = [1, 1]} : vector<2x128xf32> to vector<2x96xf32>
    %447 = arith.negf %446 : vector<2x96xf32>
    %448 = math.exp %447 : vector<2x96xf32>
    %cst_70 = arith.constant 1.000000e+00 : f32
    %449 = vector.broadcast %cst_70 : f32 to vector<2x96xf32>
    %450 = arith.addf %449, %448 : vector<2x96xf32>
    %451 = arith.divf %449, %450 : vector<2x96xf32>
    %452 = vector.extract_strided_slice %451 {offsets = [0, 0], sizes = [2, 32], strides = [1, 1]} : vector<2x96xf32> to vector<2x32xf32>
    %453 = vector.extract_strided_slice %451 {offsets = [0, 32], sizes = [2, 32], strides = [1, 1]} : vector<2x96xf32> to vector<2x32xf32>
    %454 = vector.extract_strided_slice %451 {offsets = [0, 64], sizes = [2, 32], strides = [1, 1]} : vector<2x96xf32> to vector<2x32xf32>
    %455 = vector.extract_strided_slice %445 {offsets = [0, 96], sizes = [2, 32], strides = [1, 1]} : vector<2x128xf32> to vector<2x32xf32>
    %456 = math.tanh %455 : vector<2x32xf32>
    %457 = arith.mulf %453, %440 : vector<2x32xf32>
    %458 = arith.mulf %452, %456 : vector<2x32xf32>
    %459 = arith.addf %457, %458 : vector<2x32xf32>
    %460 = math.tanh %459 : vector<2x32xf32>
    %461 = arith.mulf %454, %460 : vector<2x32xf32>
    %462 = vector.extract_strided_slice %345 {offsets = [12, 0], sizes = [2, 128], strides = [1, 1]} : vector<16x128xf32> to vector<2x128xf32>
    %cst_71 = arith.constant dense<0.000000e+00> : vector<2x128xf32>
    %463 = tpu.matmul %461, %341, %cst_71 {dimension_numbers = #tpu.dot_dimension_numbers<[1], [0], [0], [1], [0, 0, 1, 1], [], []>} : vector<2x32xf32>, vector<32x128xf32>, vector<2x128xf32> -> vector<2x128xf32>
    %464 = arith.addf %462, %463 : vector<2x128xf32>
    %465 = vector.extract_strided_slice %464 {offsets = [0, 0], sizes = [2, 96], strides = [1, 1]} : vector<2x128xf32> to vector<2x96xf32>
    %466 = arith.negf %465 : vector<2x96xf32>
    %467 = math.exp %466 : vector<2x96xf32>
    %cst_72 = arith.constant 1.000000e+00 : f32
    %468 = vector.broadcast %cst_72 : f32 to vector<2x96xf32>
    %469 = arith.addf %468, %467 : vector<2x96xf32>
    %470 = arith.divf %468, %469 : vector<2x96xf32>
    %471 = vector.extract_strided_slice %470 {offsets = [0, 0], sizes = [2, 32], strides = [1, 1]} : vector<2x96xf32> to vector<2x32xf32>
    %472 = vector.extract_strided_slice %470 {offsets = [0, 32], sizes = [2, 32], strides = [1, 1]} : vector<2x96xf32> to vector<2x32xf32>
    %473 = vector.extract_strided_slice %470 {offsets = [0, 64], sizes = [2, 32], strides = [1, 1]} : vector<2x96xf32> to vector<2x32xf32>
    %474 = vector.extract_strided_slice %464 {offsets = [0, 96], sizes = [2, 32], strides = [1, 1]} : vector<2x128xf32> to vector<2x32xf32>
    %475 = math.tanh %474 : vector<2x32xf32>
    %476 = arith.mulf %472, %459 : vector<2x32xf32>
    %477 = arith.mulf %471, %475 : vector<2x32xf32>
    %478 = arith.addf %476, %477 : vector<2x32xf32>
    %479 = math.tanh %478 : vector<2x32xf32>
    %480 = arith.mulf %473, %479 : vector<2x32xf32>
    %481 = vector.extract_strided_slice %345 {offsets = [14, 0], sizes = [2, 128], strides = [1, 1]} : vector<16x128xf32> to vector<2x128xf32>
    %cst_73 = arith.constant dense<0.000000e+00> : vector<2x128xf32>
    %482 = tpu.matmul %480, %341, %cst_73 {dimension_numbers = #tpu.dot_dimension_numbers<[1], [0], [0], [1], [0, 0, 1, 1], [], []>} : vector<2x32xf32>, vector<32x128xf32>, vector<2x128xf32> -> vector<2x128xf32>
    %483 = arith.addf %481, %482 : vector<2x128xf32>
    %484 = vector.extract_strided_slice %483 {offsets = [0, 0], sizes = [2, 96], strides = [1, 1]} : vector<2x128xf32> to vector<2x96xf32>
    %485 = arith.negf %484 : vector<2x96xf32>
    %486 = math.exp %485 : vector<2x96xf32>
    %cst_74 = arith.constant 1.000000e+00 : f32
    %487 = vector.broadcast %cst_74 : f32 to vector<2x96xf32>
    %488 = arith.addf %487, %486 : vector<2x96xf32>
    %489 = arith.divf %487, %488 : vector<2x96xf32>
    %490 = vector.extract_strided_slice %489 {offsets = [0, 0], sizes = [2, 32], strides = [1, 1]} : vector<2x96xf32> to vector<2x32xf32>
    %491 = vector.extract_strided_slice %489 {offsets = [0, 32], sizes = [2, 32], strides = [1, 1]} : vector<2x96xf32> to vector<2x32xf32>
    %492 = vector.extract_strided_slice %489 {offsets = [0, 64], sizes = [2, 32], strides = [1, 1]} : vector<2x96xf32> to vector<2x32xf32>
    %493 = vector.extract_strided_slice %483 {offsets = [0, 96], sizes = [2, 32], strides = [1, 1]} : vector<2x128xf32> to vector<2x32xf32>
    %494 = math.tanh %493 : vector<2x32xf32>
    %495 = arith.mulf %491, %478 : vector<2x32xf32>
    %496 = arith.mulf %490, %494 : vector<2x32xf32>
    %497 = arith.addf %495, %496 : vector<2x32xf32>
    %498 = math.tanh %497 : vector<2x32xf32>
    %499 = arith.mulf %492, %498 : vector<2x32xf32>
    %500 = tpu.concatenate %366, %385, %404, %423, %442, %461, %480, %499 in 0 : vector<2x32xf32>, vector<2x32xf32>, vector<2x32xf32>, vector<2x32xf32>, vector<2x32xf32>, vector<2x32xf32>, vector<2x32xf32>, vector<2x32xf32> -> vector<16x32xf32>
    %c0_75 = arith.constant 0 : index
    %c0_76 = arith.constant 0 : index
    %501 = vector.load %arg10[%c0_75, %c0_76] : memref<32x128xf32, #tpu.memory_space<vmem>>, vector<32x128xf32>
    %c0_77 = arith.constant 0 : index
    %c0_78 = arith.constant 0 : index
    %502 = vector.load %arg11[%c0_77, %c0_78] : memref<32x128xf32, #tpu.memory_space<vmem>>, vector<32x128xf32>
    %c0_79 = arith.constant 0 : index
    %c0_80 = arith.constant 0 : index
    %503 = vector.load %arg12[%c0_79, %c0_80] : memref<1x128xf32, #tpu.memory_space<vmem>>, vector<1x128xf32>
    %cst_81 = arith.constant dense<0.000000e+00> : vector<16x128xf32>
    %504 = tpu.matmul %500, %501, %cst_81 {dimension_numbers = #tpu.dot_dimension_numbers<[1], [0], [0], [1], [0, 0, 1, 1], [], []>} : vector<16x32xf32>, vector<32x128xf32>, vector<16x128xf32> -> vector<16x128xf32>
    %505 = vector.broadcast %503 : vector<1x128xf32> to vector<16x128xf32>
    %506 = arith.addf %504, %505 : vector<16x128xf32>
    %cst_82 = arith.constant 0.000000e+00 : f32
    %507 = vector.broadcast %cst_82 : f32 to vector<2x32xf32>
    %cst_83 = arith.constant 0.000000e+00 : f32
    %508 = vector.broadcast %cst_83 : f32 to vector<2x32xf32>
    %509 = vector.extract_strided_slice %506 {offsets = [0, 0], sizes = [2, 128], strides = [1, 1]} : vector<16x128xf32> to vector<2x128xf32>
    %cst_84 = arith.constant dense<0.000000e+00> : vector<2x128xf32>
    %510 = tpu.matmul %507, %502, %cst_84 {dimension_numbers = #tpu.dot_dimension_numbers<[1], [0], [0], [1], [0, 0, 1, 1], [], []>} : vector<2x32xf32>, vector<32x128xf32>, vector<2x128xf32> -> vector<2x128xf32>
    %511 = arith.addf %509, %510 : vector<2x128xf32>
    %512 = vector.extract_strided_slice %511 {offsets = [0, 0], sizes = [2, 96], strides = [1, 1]} : vector<2x128xf32> to vector<2x96xf32>
    %513 = arith.negf %512 : vector<2x96xf32>
    %514 = math.exp %513 : vector<2x96xf32>
    %cst_85 = arith.constant 1.000000e+00 : f32
    %515 = vector.broadcast %cst_85 : f32 to vector<2x96xf32>
    %516 = arith.addf %515, %514 : vector<2x96xf32>
    %517 = arith.divf %515, %516 : vector<2x96xf32>
    %518 = vector.extract_strided_slice %517 {offsets = [0, 0], sizes = [2, 32], strides = [1, 1]} : vector<2x96xf32> to vector<2x32xf32>
    %519 = vector.extract_strided_slice %517 {offsets = [0, 32], sizes = [2, 32], strides = [1, 1]} : vector<2x96xf32> to vector<2x32xf32>
    %520 = vector.extract_strided_slice %517 {offsets = [0, 64], sizes = [2, 32], strides = [1, 1]} : vector<2x96xf32> to vector<2x32xf32>
    %521 = vector.extract_strided_slice %511 {offsets = [0, 96], sizes = [2, 32], strides = [1, 1]} : vector<2x128xf32> to vector<2x32xf32>
    %522 = math.tanh %521 : vector<2x32xf32>
    %523 = arith.mulf %519, %508 : vector<2x32xf32>
    %524 = arith.mulf %518, %522 : vector<2x32xf32>
    %525 = arith.addf %523, %524 : vector<2x32xf32>
    %526 = math.tanh %525 : vector<2x32xf32>
    %527 = arith.mulf %520, %526 : vector<2x32xf32>
    %528 = vector.extract_strided_slice %506 {offsets = [2, 0], sizes = [2, 128], strides = [1, 1]} : vector<16x128xf32> to vector<2x128xf32>
    %cst_86 = arith.constant dense<0.000000e+00> : vector<2x128xf32>
    %529 = tpu.matmul %527, %502, %cst_86 {dimension_numbers = #tpu.dot_dimension_numbers<[1], [0], [0], [1], [0, 0, 1, 1], [], []>} : vector<2x32xf32>, vector<32x128xf32>, vector<2x128xf32> -> vector<2x128xf32>
    %530 = arith.addf %528, %529 : vector<2x128xf32>
    %531 = vector.extract_strided_slice %530 {offsets = [0, 0], sizes = [2, 96], strides = [1, 1]} : vector<2x128xf32> to vector<2x96xf32>
    %532 = arith.negf %531 : vector<2x96xf32>
    %533 = math.exp %532 : vector<2x96xf32>
    %cst_87 = arith.constant 1.000000e+00 : f32
    %534 = vector.broadcast %cst_87 : f32 to vector<2x96xf32>
    %535 = arith.addf %534, %533 : vector<2x96xf32>
    %536 = arith.divf %534, %535 : vector<2x96xf32>
    %537 = vector.extract_strided_slice %536 {offsets = [0, 0], sizes = [2, 32], strides = [1, 1]} : vector<2x96xf32> to vector<2x32xf32>
    %538 = vector.extract_strided_slice %536 {offsets = [0, 32], sizes = [2, 32], strides = [1, 1]} : vector<2x96xf32> to vector<2x32xf32>
    %539 = vector.extract_strided_slice %536 {offsets = [0, 64], sizes = [2, 32], strides = [1, 1]} : vector<2x96xf32> to vector<2x32xf32>
    %540 = vector.extract_strided_slice %530 {offsets = [0, 96], sizes = [2, 32], strides = [1, 1]} : vector<2x128xf32> to vector<2x32xf32>
    %541 = math.tanh %540 : vector<2x32xf32>
    %542 = arith.mulf %538, %525 : vector<2x32xf32>
    %543 = arith.mulf %537, %541 : vector<2x32xf32>
    %544 = arith.addf %542, %543 : vector<2x32xf32>
    %545 = math.tanh %544 : vector<2x32xf32>
    %546 = arith.mulf %539, %545 : vector<2x32xf32>
    %547 = vector.extract_strided_slice %506 {offsets = [4, 0], sizes = [2, 128], strides = [1, 1]} : vector<16x128xf32> to vector<2x128xf32>
    %cst_88 = arith.constant dense<0.000000e+00> : vector<2x128xf32>
    %548 = tpu.matmul %546, %502, %cst_88 {dimension_numbers = #tpu.dot_dimension_numbers<[1], [0], [0], [1], [0, 0, 1, 1], [], []>} : vector<2x32xf32>, vector<32x128xf32>, vector<2x128xf32> -> vector<2x128xf32>
    %549 = arith.addf %547, %548 : vector<2x128xf32>
    %550 = vector.extract_strided_slice %549 {offsets = [0, 0], sizes = [2, 96], strides = [1, 1]} : vector<2x128xf32> to vector<2x96xf32>
    %551 = arith.negf %550 : vector<2x96xf32>
    %552 = math.exp %551 : vector<2x96xf32>
    %cst_89 = arith.constant 1.000000e+00 : f32
    %553 = vector.broadcast %cst_89 : f32 to vector<2x96xf32>
    %554 = arith.addf %553, %552 : vector<2x96xf32>
    %555 = arith.divf %553, %554 : vector<2x96xf32>
    %556 = vector.extract_strided_slice %555 {offsets = [0, 0], sizes = [2, 32], strides = [1, 1]} : vector<2x96xf32> to vector<2x32xf32>
    %557 = vector.extract_strided_slice %555 {offsets = [0, 32], sizes = [2, 32], strides = [1, 1]} : vector<2x96xf32> to vector<2x32xf32>
    %558 = vector.extract_strided_slice %555 {offsets = [0, 64], sizes = [2, 32], strides = [1, 1]} : vector<2x96xf32> to vector<2x32xf32>
    %559 = vector.extract_strided_slice %549 {offsets = [0, 96], sizes = [2, 32], strides = [1, 1]} : vector<2x128xf32> to vector<2x32xf32>
    %560 = math.tanh %559 : vector<2x32xf32>
    %561 = arith.mulf %557, %544 : vector<2x32xf32>
    %562 = arith.mulf %556, %560 : vector<2x32xf32>
    %563 = arith.addf %561, %562 : vector<2x32xf32>
    %564 = math.tanh %563 : vector<2x32xf32>
    %565 = arith.mulf %558, %564 : vector<2x32xf32>
    %566 = vector.extract_strided_slice %506 {offsets = [6, 0], sizes = [2, 128], strides = [1, 1]} : vector<16x128xf32> to vector<2x128xf32>
    %cst_90 = arith.constant dense<0.000000e+00> : vector<2x128xf32>
    %567 = tpu.matmul %565, %502, %cst_90 {dimension_numbers = #tpu.dot_dimension_numbers<[1], [0], [0], [1], [0, 0, 1, 1], [], []>} : vector<2x32xf32>, vector<32x128xf32>, vector<2x128xf32> -> vector<2x128xf32>
    %568 = arith.addf %566, %567 : vector<2x128xf32>
    %569 = vector.extract_strided_slice %568 {offsets = [0, 0], sizes = [2, 96], strides = [1, 1]} : vector<2x128xf32> to vector<2x96xf32>
    %570 = arith.negf %569 : vector<2x96xf32>
    %571 = math.exp %570 : vector<2x96xf32>
    %cst_91 = arith.constant 1.000000e+00 : f32
    %572 = vector.broadcast %cst_91 : f32 to vector<2x96xf32>
    %573 = arith.addf %572, %571 : vector<2x96xf32>
    %574 = arith.divf %572, %573 : vector<2x96xf32>
    %575 = vector.extract_strided_slice %574 {offsets = [0, 0], sizes = [2, 32], strides = [1, 1]} : vector<2x96xf32> to vector<2x32xf32>
    %576 = vector.extract_strided_slice %574 {offsets = [0, 32], sizes = [2, 32], strides = [1, 1]} : vector<2x96xf32> to vector<2x32xf32>
    %577 = vector.extract_strided_slice %574 {offsets = [0, 64], sizes = [2, 32], strides = [1, 1]} : vector<2x96xf32> to vector<2x32xf32>
    %578 = vector.extract_strided_slice %568 {offsets = [0, 96], sizes = [2, 32], strides = [1, 1]} : vector<2x128xf32> to vector<2x32xf32>
    %579 = math.tanh %578 : vector<2x32xf32>
    %580 = arith.mulf %576, %563 : vector<2x32xf32>
    %581 = arith.mulf %575, %579 : vector<2x32xf32>
    %582 = arith.addf %580, %581 : vector<2x32xf32>
    %583 = math.tanh %582 : vector<2x32xf32>
    %584 = arith.mulf %577, %583 : vector<2x32xf32>
    %585 = vector.extract_strided_slice %506 {offsets = [8, 0], sizes = [2, 128], strides = [1, 1]} : vector<16x128xf32> to vector<2x128xf32>
    %cst_92 = arith.constant dense<0.000000e+00> : vector<2x128xf32>
    %586 = tpu.matmul %584, %502, %cst_92 {dimension_numbers = #tpu.dot_dimension_numbers<[1], [0], [0], [1], [0, 0, 1, 1], [], []>} : vector<2x32xf32>, vector<32x128xf32>, vector<2x128xf32> -> vector<2x128xf32>
    %587 = arith.addf %585, %586 : vector<2x128xf32>
    %588 = vector.extract_strided_slice %587 {offsets = [0, 0], sizes = [2, 96], strides = [1, 1]} : vector<2x128xf32> to vector<2x96xf32>
    %589 = arith.negf %588 : vector<2x96xf32>
    %590 = math.exp %589 : vector<2x96xf32>
    %cst_93 = arith.constant 1.000000e+00 : f32
    %591 = vector.broadcast %cst_93 : f32 to vector<2x96xf32>
    %592 = arith.addf %591, %590 : vector<2x96xf32>
    %593 = arith.divf %591, %592 : vector<2x96xf32>
    %594 = vector.extract_strided_slice %593 {offsets = [0, 0], sizes = [2, 32], strides = [1, 1]} : vector<2x96xf32> to vector<2x32xf32>
    %595 = vector.extract_strided_slice %593 {offsets = [0, 32], sizes = [2, 32], strides = [1, 1]} : vector<2x96xf32> to vector<2x32xf32>
    %596 = vector.extract_strided_slice %593 {offsets = [0, 64], sizes = [2, 32], strides = [1, 1]} : vector<2x96xf32> to vector<2x32xf32>
    %597 = vector.extract_strided_slice %587 {offsets = [0, 96], sizes = [2, 32], strides = [1, 1]} : vector<2x128xf32> to vector<2x32xf32>
    %598 = math.tanh %597 : vector<2x32xf32>
    %599 = arith.mulf %595, %582 : vector<2x32xf32>
    %600 = arith.mulf %594, %598 : vector<2x32xf32>
    %601 = arith.addf %599, %600 : vector<2x32xf32>
    %602 = math.tanh %601 : vector<2x32xf32>
    %603 = arith.mulf %596, %602 : vector<2x32xf32>
    %604 = vector.extract_strided_slice %506 {offsets = [10, 0], sizes = [2, 128], strides = [1, 1]} : vector<16x128xf32> to vector<2x128xf32>
    %cst_94 = arith.constant dense<0.000000e+00> : vector<2x128xf32>
    %605 = tpu.matmul %603, %502, %cst_94 {dimension_numbers = #tpu.dot_dimension_numbers<[1], [0], [0], [1], [0, 0, 1, 1], [], []>} : vector<2x32xf32>, vector<32x128xf32>, vector<2x128xf32> -> vector<2x128xf32>
    %606 = arith.addf %604, %605 : vector<2x128xf32>
    %607 = vector.extract_strided_slice %606 {offsets = [0, 0], sizes = [2, 96], strides = [1, 1]} : vector<2x128xf32> to vector<2x96xf32>
    %608 = arith.negf %607 : vector<2x96xf32>
    %609 = math.exp %608 : vector<2x96xf32>
    %cst_95 = arith.constant 1.000000e+00 : f32
    %610 = vector.broadcast %cst_95 : f32 to vector<2x96xf32>
    %611 = arith.addf %610, %609 : vector<2x96xf32>
    %612 = arith.divf %610, %611 : vector<2x96xf32>
    %613 = vector.extract_strided_slice %612 {offsets = [0, 0], sizes = [2, 32], strides = [1, 1]} : vector<2x96xf32> to vector<2x32xf32>
    %614 = vector.extract_strided_slice %612 {offsets = [0, 32], sizes = [2, 32], strides = [1, 1]} : vector<2x96xf32> to vector<2x32xf32>
    %615 = vector.extract_strided_slice %612 {offsets = [0, 64], sizes = [2, 32], strides = [1, 1]} : vector<2x96xf32> to vector<2x32xf32>
    %616 = vector.extract_strided_slice %606 {offsets = [0, 96], sizes = [2, 32], strides = [1, 1]} : vector<2x128xf32> to vector<2x32xf32>
    %617 = math.tanh %616 : vector<2x32xf32>
    %618 = arith.mulf %614, %601 : vector<2x32xf32>
    %619 = arith.mulf %613, %617 : vector<2x32xf32>
    %620 = arith.addf %618, %619 : vector<2x32xf32>
    %621 = math.tanh %620 : vector<2x32xf32>
    %622 = arith.mulf %615, %621 : vector<2x32xf32>
    %623 = vector.extract_strided_slice %506 {offsets = [12, 0], sizes = [2, 128], strides = [1, 1]} : vector<16x128xf32> to vector<2x128xf32>
    %cst_96 = arith.constant dense<0.000000e+00> : vector<2x128xf32>
    %624 = tpu.matmul %622, %502, %cst_96 {dimension_numbers = #tpu.dot_dimension_numbers<[1], [0], [0], [1], [0, 0, 1, 1], [], []>} : vector<2x32xf32>, vector<32x128xf32>, vector<2x128xf32> -> vector<2x128xf32>
    %625 = arith.addf %623, %624 : vector<2x128xf32>
    %626 = vector.extract_strided_slice %625 {offsets = [0, 0], sizes = [2, 96], strides = [1, 1]} : vector<2x128xf32> to vector<2x96xf32>
    %627 = arith.negf %626 : vector<2x96xf32>
    %628 = math.exp %627 : vector<2x96xf32>
    %cst_97 = arith.constant 1.000000e+00 : f32
    %629 = vector.broadcast %cst_97 : f32 to vector<2x96xf32>
    %630 = arith.addf %629, %628 : vector<2x96xf32>
    %631 = arith.divf %629, %630 : vector<2x96xf32>
    %632 = vector.extract_strided_slice %631 {offsets = [0, 0], sizes = [2, 32], strides = [1, 1]} : vector<2x96xf32> to vector<2x32xf32>
    %633 = vector.extract_strided_slice %631 {offsets = [0, 32], sizes = [2, 32], strides = [1, 1]} : vector<2x96xf32> to vector<2x32xf32>
    %634 = vector.extract_strided_slice %631 {offsets = [0, 64], sizes = [2, 32], strides = [1, 1]} : vector<2x96xf32> to vector<2x32xf32>
    %635 = vector.extract_strided_slice %625 {offsets = [0, 96], sizes = [2, 32], strides = [1, 1]} : vector<2x128xf32> to vector<2x32xf32>
    %636 = math.tanh %635 : vector<2x32xf32>
    %637 = arith.mulf %633, %620 : vector<2x32xf32>
    %638 = arith.mulf %632, %636 : vector<2x32xf32>
    %639 = arith.addf %637, %638 : vector<2x32xf32>
    %640 = math.tanh %639 : vector<2x32xf32>
    %641 = arith.mulf %634, %640 : vector<2x32xf32>
    %642 = vector.extract_strided_slice %506 {offsets = [14, 0], sizes = [2, 128], strides = [1, 1]} : vector<16x128xf32> to vector<2x128xf32>
    %cst_98 = arith.constant dense<0.000000e+00> : vector<2x128xf32>
    %643 = tpu.matmul %641, %502, %cst_98 {dimension_numbers = #tpu.dot_dimension_numbers<[1], [0], [0], [1], [0, 0, 1, 1], [], []>} : vector<2x32xf32>, vector<32x128xf32>, vector<2x128xf32> -> vector<2x128xf32>
    %644 = arith.addf %642, %643 : vector<2x128xf32>
    %645 = vector.extract_strided_slice %644 {offsets = [0, 0], sizes = [2, 96], strides = [1, 1]} : vector<2x128xf32> to vector<2x96xf32>
    %646 = arith.negf %645 : vector<2x96xf32>
    %647 = math.exp %646 : vector<2x96xf32>
    %cst_99 = arith.constant 1.000000e+00 : f32
    %648 = vector.broadcast %cst_99 : f32 to vector<2x96xf32>
    %649 = arith.addf %648, %647 : vector<2x96xf32>
    %650 = arith.divf %648, %649 : vector<2x96xf32>
    %651 = vector.extract_strided_slice %650 {offsets = [0, 0], sizes = [2, 32], strides = [1, 1]} : vector<2x96xf32> to vector<2x32xf32>
    %652 = vector.extract_strided_slice %650 {offsets = [0, 32], sizes = [2, 32], strides = [1, 1]} : vector<2x96xf32> to vector<2x32xf32>
    %653 = vector.extract_strided_slice %650 {offsets = [0, 64], sizes = [2, 32], strides = [1, 1]} : vector<2x96xf32> to vector<2x32xf32>
    %654 = vector.extract_strided_slice %644 {offsets = [0, 96], sizes = [2, 32], strides = [1, 1]} : vector<2x128xf32> to vector<2x32xf32>
    %655 = math.tanh %654 : vector<2x32xf32>
    %656 = arith.mulf %652, %639 : vector<2x32xf32>
    %657 = arith.mulf %651, %655 : vector<2x32xf32>
    %658 = arith.addf %656, %657 : vector<2x32xf32>
    %659 = math.tanh %658 : vector<2x32xf32>
    %660 = arith.mulf %653, %659 : vector<2x32xf32>
    %661 = tpu.concatenate %527, %546, %565, %584, %603, %622, %641, %660 in 1 : vector<2x32xf32>, vector<2x32xf32>, vector<2x32xf32>, vector<2x32xf32>, vector<2x32xf32>, vector<2x32xf32>, vector<2x32xf32>, vector<2x32xf32> -> vector<2x256xf32>
    %c0_100 = arith.constant 0 : index
    %c0_101 = arith.constant 0 : index
    %662 = vector.load %arg13[%c0_100, %c0_101] : memref<2x256xf32, #tpu.memory_space<vmem>>, vector<2x256xf32>
    tpu.vector_store %arg13[%c0_100, %c0_101], %661 {strides = array<i32>} : memref<2x256xf32, #tpu.memory_space<vmem>>, vector<2x256xf32>,
    return
  }
}

</mosaic_0001>

<llo_original>
// kernel: text_to_speech_forward.1
$region0: #{text_to_speech_forward.1}
  #allocation0 [shape = 'u32[]', space=smem, size = 0x4, offset = 0x4, fixed_abs, tag = 'smem constant byte address 0x4 - core index']
  #allocation1 [shape = 'u32[144,128]{1,0:T(1,128)}', space=vmem, size = 0x12000, scoped, tag = 'internal scratch']
  %s0 = inlined_call_operand.vmem [shape: f32[16,16], index: 0, kind: input, shape index: {}]
  %s1 = inlined_call_operand.hbm [shape: f32[16,128], index: 1, kind: input, shape index: {}]
  %s2 = inlined_call_operand.hbm [shape: f32[32,128], index: 2, kind: input, shape index: {}]
  %s3 = inlined_call_operand.vmem [shape: f32[1,128], index: 3, kind: input, shape index: {}]
  %s4 = inlined_call_operand.hbm [shape: f32[32,128], index: 4, kind: input, shape index: {}]
  %s5 = inlined_call_operand.hbm [shape: f32[32,128], index: 5, kind: input, shape index: {}]
  %s6 = inlined_call_operand.hbm [shape: f32[1,128], index: 6, kind: input, shape index: {}]
  %s7 = inlined_call_operand.hbm [shape: f32[32,128], index: 7, kind: input, shape index: {}]
  %s8 = inlined_call_operand.hbm [shape: f32[32,128], index: 8, kind: input, shape index: {}]
  %s9 = inlined_call_operand.hbm [shape: f32[1,128], index: 9, kind: input, shape index: {}]
  %s10 = inlined_call_operand.vmem [shape: f32[32,128], index: 10, kind: input, shape index: {}]
  %s11 = inlined_call_operand.hbm [shape: f32[32,128], index: 11, kind: input, shape index: {}]
  %s12 = inlined_call_operand.hbm [shape: f32[1,128], index: 12, kind: input, shape index: {}]
  %s13 = inlined_call_operand.vmem [shape: f32[2,256], index: 13, kind: output, shape index: {}]
  %s14 = sld [smem:[#allocation0]]
  $region102: #{text_to_speech_forward.1} parent=0
    _
  %s16 = ssub.s32 1, %s14
  %s17 = scalar_select 0, %s16, %s14
  $region1: #{text_to_speech_forward.1} parent=0
    #allocation2 [shape = 'u8[8192]{0}', space=vmem, size = 0x2000, scoped, tag = 'input window, operand 1, single buffered']
    #allocation3 [shape = 's32[1]{0}', space=sflag, size = 0x4, scoped, tag = 'scoped memory for text_to_speech_forward.1']
    #allocation4 [shape = 'u8[16384]{0}', space=vmem, size = 0x4000, scoped, tag = 'input window, operand 2, single buffered']
    #allocation5 [shape = 's32[1]{0}', space=sflag, size = 0x4, scoped, tag = 'scoped memory for text_to_speech_forward.1']
    #allocation6 [shape = 'u8[16384]{0}', space=vmem, size = 0x4000, scoped, tag = 'input window, operand 4, single buffered']
    #allocation7 [shape = 'u8[16384]{0}', space=vmem, size = 0x4000, scoped, tag = 'input window, operand 5, single buffered']
    #allocation8 [shape = 's32[1]{0}', space=sflag, size = 0x4, scoped, tag = 'scoped memory for text_to_speech_forward.1']
    #allocation9 [shape = 'u8[512]{0}', space=vmem, size = 0x400, scoped, tag = 'input window, operand 6, single buffered']
    #allocation10 [shape = 'u8[16384]{0}', space=vmem, size = 0x4000, scoped, tag = 'input window, operand 7, single buffered']
    #allocation11 [shape = 's32[1]{0}', space=sflag, size = 0x4, scoped, tag = 'scoped memory for text_to_speech_forward.1']
    #allocation12 [shape = 'u8[16384]{0}', space=vmem, size = 0x4000, scoped, tag = 'input window, operand 8, single buffered']
    #allocation13 [shape = 'u8[512]{0}', space=vmem, size = 0x400, scoped, tag = 'input window, operand 9, single buffered']
    #allocation14 [shape = 's32[1]{0}', space=sflag, size = 0x4, scoped, tag = 'scoped memory for text_to_speech_forward.1']
    #allocation15 [shape = 'u8[16384]{0}', space=vmem, size = 0x4000, scoped, tag = 'input window, operand 11, single buffered']
    #allocation16 [shape = 'u8[512]{0}', space=vmem, size = 0x400, scoped, tag = 'input window, operand 12, single buffered']
    #allocation17 [shape = 's32[1]{0}', space=sflag, size = 0x4, scoped, tag = 'scoped memory for text_to_speech_forward.1']
    %18 = vsyncpa [#allocation3], 0
    %19 = vsyncpa [#allocation5], 0
    %20 = vsyncpa [#allocation8], 0
    %21 = vsyncpa [#allocation11], 0
    %22 = vsyncpa [#allocation14], 0
    %23 = vsyncpa [#allocation17], 0
    // Predicated region
    $region2: #{text_to_speech_forward.1} parent=1 // pred_check
      _
    $region3: #{text_to_speech_forward.1} parent=1 // pred_check_branch
      %25 = sbr.rel (0) target = $region5
    $region4: #{text_to_speech_forward.1} parent=1 // pred_region
      _
    $region5: #{text_to_speech_forward.1} parent=1 // pred_fallthru
      _
    // Predicated region
    $region6: #{text_to_speech_forward.1} parent=1 // pred_check
      _
    $region7: #{text_to_speech_forward.1} parent=1 // pred_check_branch
      %27 = sbr.rel (0) target = $region9
    $region8: #{text_to_speech_forward.1} parent=1 // pred_region
      %s29 = ssub.s32 256, 256
      %30 = vsyncadd [#allocation3], %s29
      %s31 = sshll.u32 [#allocation2], 4
      %s32 = int_to_ptr.vmem [resolvable:$true] %s31
      %37 = dma.hbm_to_vmem [thread:$0]  %s1, 256, %s32, [#allocation3], 128, 128, 8
    $region9: #{text_to_speech_forward.1} parent=1 // pred_fallthru
      _
    // Predicated region
    $region10: #{text_to_speech_forward.1} parent=1 // pred_check
      _
    $region11: #{text_to_speech_forward.1} parent=1 // pred_check_branch
      %39 = sbr.rel (0) target = $region13
    $region12: #{text_to_speech_forward.1} parent=1 // pred_region
      %s41 = ssub.s32 512, 512
      %42 = vsyncadd [#allocation5], %s41
      %s43 = sshll.u32 [#allocation4], 4
      %s44 = int_to_ptr.vmem [resolvable:$true] %s43
      %49 = dma.hbm_to_vmem [thread:$0]  %s2, 512, %s44, [#allocation5], 128, 128, 8
    $region13: #{text_to_speech_forward.1} parent=1 // pred_fallthru
      _
    // Predicated region
    $region14: #{text_to_speech_forward.1} parent=1 // pred_check
      _
    $region15: #{text_to_speech_forward.1} parent=1 // pred_check_branch
      %51 = sbr.rel (0) target = $region17
    $region16: #{text_to_speech_forward.1} parent=1 // pred_region
      _
    $region17: #{text_to_speech_forward.1} parent=1 // pred_fallthru
      _
    // Predicated region
    $region18: #{text_to_speech_forward.1} parent=1 // pred_check
      _
    $region19: #{text_to_speech_forward.1} parent=1 // pred_check_branch
      %53 = sbr.rel (0) target = $region21
    $region20: #{text_to_speech_forward.1} parent=1 // pred_region
      %s55 = ssub.s32 512, 512
      %56 = vsyncadd [#allocation5], %s55
      %s57 = sshll.u32 [#allocation6], 4
      %s58 = int_to_ptr.vmem [resolvable:$true] %s57
      %63 = dma.hbm_to_vmem [thread:$0]  %s4, 512, %s58, [#allocation5], 128, 128, 8
    $region21: #{text_to_speech_forward.1} parent=1 // pred_fallthru
      _
    // Predicated region
    $region22: #{text_to_speech_forward.1} parent=1 // pred_check
      _
    $region23: #{text_to_speech_forward.1} parent=1 // pred_check_branch
      %65 = sbr.rel (0) target = $region25
    $region24: #{text_to_speech_forward.1} parent=1 // pred_region
      %s67 = ssub.s32 512, 512
      %68 = vsyncadd [#allocation8], %s67
      %s69 = sshll.u32 [#allocation7], 4
      %s70 = int_to_ptr.vmem [resolvable:$true] %s69
      %75 = dma.hbm_to_vmem [thread:$0]  %s5, 512, %s70, [#allocation8], 128, 128, 8
    $region25: #{text_to_speech_forward.1} parent=1 // pred_fallthru
      _
    // Predicated region
    $region26: #{text_to_speech_forward.1} parent=1 // pred_check
      _
    $region27: #{text_to_speech_forward.1} parent=1 // pred_check_branch
      %77 = sbr.rel (0) target = $region29
    $region28: #{text_to_speech_forward.1} parent=1 // pred_region
      %s79 = ssub.s32 16, 16
      %80 = vsyncadd [#allocation8], %s79
      %s82 = sshll.u32 [#allocation9], 4
      %s83 = int_to_ptr.vmem [resolvable:$true] %s82
      %85 = dma.hbm_to_vmem [thread:$0]  %s6, 16, %s83, [#allocation8]
    $region29: #{text_to_speech_forward.1} parent=1 // pred_fallthru
      _
    // Predicated region
    $region30: #{text_to_speech_forward.1} parent=1 // pred_check
      _
    $region31: #{text_to_speech_forward.1} parent=1 // pred_check_branch
      %87 = sbr.rel (0) target = $region33
    $region32: #{text_to_speech_forward.1} parent=1 // pred_region
      %s89 = ssub.s32 512, 512
      %90 = vsyncadd [#allocation11], %s89
      %s91 = sshll.u32 [#allocation10], 4
      %s92 = int_to_ptr.vmem [resolvable:$true] %s91
      %97 = dma.hbm_to_vmem [thread:$0]  %s7, 512, %s92, [#allocation11], 128, 128, 8
    $region33: #{text_to_speech_forward.1} parent=1 // pred_fallthru
      _
    // Predicated region
    $region34: #{text_to_speech_forward.1} parent=1 // pred_check
      _
    $region35: #{text_to_speech_forward.1} parent=1 // pred_check_branch
      %99 = sbr.rel (0) target = $region37
    $region36: #{text_to_speech_forward.1} parent=1 // pred_region
      %s101 = ssub.s32 512, 512
      %102 = vsyncadd [#allocation11], %s101
      %s103 = sshll.u32 [#allocation12], 4
      %s104 = int_to_ptr.vmem [resolvable:$true] %s103
      %109 = dma.hbm_to_vmem [thread:$0]  %s8, 512, %s104, [#allocation11], 128, 128, 8
    $region37: #{text_to_speech_forward.1} parent=1 // pred_fallthru
      _
    // Predicated region
    $region38: #{text_to_speech_forward.1} parent=1 // pred_check
      _
    $region39: #{text_to_speech_forward.1} parent=1 // pred_check_branch
      %111 = sbr.rel (0) target = $region41
    $region40: #{text_to_speech_forward.1} parent=1 // pred_region
      %s113 = ssub.s32 16, 16
      %114 = vsyncadd [#allocation14], %s113
      %s116 = sshll.u32 [#allocation13], 4
      %s117 = int_to_ptr.vmem [resolvable:$true] %s116
      %119 = dma.hbm_to_vmem [thread:$0]  %s9, 16, %s117, [#allocation14]
    $region41: #{text_to_speech_forward.1} parent=1 // pred_fallthru
      _
    // Predicated region
    $region42: #{text_to_speech_forward.1} parent=1 // pred_check
      _
    $region43: #{text_to_speech_forward.1} parent=1 // pred_check_branch
      %121 = sbr.rel (0) target = $region45
    $region44: #{text_to_speech_forward.1} parent=1 // pred_region
      _
    $region45: #{text_to_speech_forward.1} parent=1 // pred_fallthru
      _
    // Predicated region
    $region46: #{text_to_speech_forward.1} parent=1 // pred_check
      _
    $region47: #{text_to_speech_forward.1} parent=1 // pred_check_branch
      %123 = sbr.rel (0) target = $region49
    $region48: #{text_to_speech_forward.1} parent=1 // pred_region
      %s125 = ssub.s32 512, 512
      %126 = vsyncadd [#allocation14], %s125
      %s127 = sshll.u32 [#allocation15], 4
      %s128 = int_to_ptr.vmem [resolvable:$true] %s127
      %133 = dma.hbm_to_vmem [thread:$0]  %s11, 512, %s128, [#allocation14], 128, 128, 8
    $region49: #{text_to_speech_forward.1} parent=1 // pred_fallthru
      _
    // Predicated region
    $region50: #{text_to_speech_forward.1} parent=1 // pred_check
      _
    $region51: #{text_to_speech_forward.1} parent=1 // pred_check_branch
      %135 = sbr.rel (0) target = $region53
    $region52: #{text_to_speech_forward.1} parent=1 // pred_region
      %s137 = ssub.s32 16, 16
      %138 = vsyncadd [#allocation17], %s137
      %s140 = sshll.u32 [#allocation16], 4
      %s141 = int_to_ptr.vmem [resolvable:$true] %s140
      %143 = dma.hbm_to_vmem [thread:$0]  %s12, 16, %s141, [#allocation17]
    $region53: #{text_to_speech_forward.1} parent=1 // pred_fallthru
      _
    // Predicated region
    $region54: #{text_to_speech_forward.1} parent=1 // pred_check
      _
    $region55: #{text_to_speech_forward.1} parent=1 // pred_check_branch
      %145 = sbr.rel (0) target = $region57
    $region56: #{text_to_speech_forward.1} parent=1 // pred_region
      %146 = dma.done [#allocation3], 256
    $region57: #{text_to_speech_forward.1} parent=1 // pred_fallthru
      _
    // Predicated region
    $region58: #{text_to_speech_forward.1} parent=1 // pred_check
      _
    $region59: #{text_to_speech_forward.1} parent=1 // pred_check_branch
      %148 = sbr.rel (0) target = $region61
    $region60: #{text_to_speech_forward.1} parent=1 // pred_region
      %149 = dma.done [#allocation5], 512
    $region61: #{text_to_speech_forward.1} parent=1 // pred_fallthru
      _
    // Predicated region
    $region62: #{text_to_speech_forward.1} parent=1 // pred_check
      _
    $region63: #{text_to_speech_forward.1} parent=1 // pred_check_branch
      %151 = sbr.rel (0) target = $region65
    $region64: #{text_to_speech_forward.1} parent=1 // pred_region
      %152 = dma.done [#allocation5], 512
    $region65: #{text_to_speech_forward.1} parent=1 // pred_fallthru
      _
    // Predicated region
    $region66: #{text_to_speech_forward.1} parent=1 // pred_check
      _
    $region67: #{text_to_speech_forward.1} parent=1 // pred_check_branch
      %154 = sbr.rel (0) target = $region69
    $region68: #{text_to_speech_forward.1} parent=1 // pred_region
      %155 = dma.done [#allocation8], 512
    $region69: #{text_to_speech_forward.1} parent=1 // pred_fallthru
      _
    // Predicated region
    $region70: #{text_to_speech_forward.1} parent=1 // pred_check
      _
    $region71: #{text_to_speech_forward.1} parent=1 // pred_check_branch
      %157 = sbr.rel (0) target = $region73
    $region72: #{text_to_speech_forward.1} parent=1 // pred_region
      %158 = dma.done [#allocation8], 16
    $region73: #{text_to_speech_forward.1} parent=1 // pred_fallthru
      _
    // Predicated region
    $region74: #{text_to_speech_forward.1} parent=1 // pred_check
      _
    $region75: #{text_to_speech_forward.1} parent=1 // pred_check_branch
      %160 = sbr.rel (0) target = $region77
    $region76: #{text_to_speech_forward.1} parent=1 // pred_region
      %161 = dma.done [#allocation11], 512
    $region77: #{text_to_speech_forward.1} parent=1 // pred_fallthru
      _
    // Predicated region
    $region78: #{text_to_speech_forward.1} parent=1 // pred_check
      _
    $region79: #{text_to_speech_forward.1} parent=1 // pred_check_branch
      %163 = sbr.rel (0) target = $region81
    $region80: #{text_to_speech_forward.1} parent=1 // pred_region
      %164 = dma.done [#allocation11], 512
    $region81: #{text_to_speech_forward.1} parent=1 // pred_fallthru
      _
    // Predicated region
    $region82: #{text_to_speech_forward.1} parent=1 // pred_check
      _
    $region83: #{text_to_speech_forward.1} parent=1 // pred_check_branch
      %166 = sbr.rel (0) target = $region85
    $region84: #{text_to_speech_forward.1} parent=1 // pred_region
      %167 = dma.done [#allocation14], 16
    $region85: #{text_to_speech_forward.1} parent=1 // pred_fallthru
      _
    // Predicated region
    $region86: #{text_to_speech_forward.1} parent=1 // pred_check
      _
    $region87: #{text_to_speech_forward.1} parent=1 // pred_check_branch
      %169 = sbr.rel (0) target = $region89
    $region88: #{text_to_speech_forward.1} parent=1 // pred_region
      %170 = dma.done [#allocation14], 512
    $region89: #{text_to_speech_forward.1} parent=1 // pred_fallthru
      _
    // Predicated region
    $region90: #{text_to_speech_forward.1} parent=1 // pred_check
      _
    $region91: #{text_to_speech_forward.1} parent=1 // pred_check_branch
      %172 = sbr.rel (0) target = $region93
    $region92: #{text_to_speech_forward.1} parent=1 // pred_region
      %173 = dma.done [#allocation17], 16
    $region93: #{text_to_speech_forward.1} parent=1 // pred_fallthru
      _
    %v174 = vld [vmem:[%s0] sm:$0xff]
    %v175 = vld [vmem:[%s0 + $0x8] sm:$0xff]
    %v177 = vrot.slane %v175, 7
    %v180 = vrot.slane %v174, 7
    %v182 = vrot.slane %v175, 6
    %v184 = vrot.slane %v174, 6
    %v186 = vrot.slane %v175, 5
    %v188 = vrot.slane %v174, 5
    %v190 = vrot.slane %v175, 4
    %v192 = vrot.slane %v174, 4
    %v194 = vrot.slane %v175, 3
    %v196 = vrot.slane %v174, 3
    %v198 = vrot.slane %v175, 2
    %v200 = vrot.slane %v174, 2
    %v202 = vrot.slane %v175, 1
    %v204 = vrot.slane %v174, 1
    %vm206 = vcmask 1040384
    %v207 = vsel %vm206, %v174, %v177
    %vm208 = vcmask 1041408
    %v209 = vsel %vm208, %v207, %v180
    %vm210 = vcmask 1042432
    %v211 = vsel %vm210, %v209, %v182
    %vm212 = vcmask 1043456
    %v213 = vsel %vm212, %v211, %v184
    %vm214 = vcmask 1044480
    %v215 = vsel %vm214, %v213, %v186
    %vm216 = vcmask 1045504
    %v217 = vsel %vm216, %v215, %v188
    %vm218 = vcmask 1046528
    %v219 = vsel %vm218, %v217, %v190
    %v220 = vsel %vm206, %v192, %v194
    %v221 = vsel %vm208, %v220, %v196
    %v222 = vsel %vm210, %v221, %v198
    %v223 = vsel %vm212, %v222, %v200
    %v224 = vsel %vm214, %v223, %v202
    %v225 = vsel %vm216, %v224, %v204
    %v226 = vsel %vm218, %v225, %v175
    %v227 = vld [vmem:[#allocation2] sm:$0xff]
    %v228 = vld [vmem:[#allocation2 + $0x8] sm:$0xff]
    %v229 = vld [vmem:[#allocation4] sm:$0xff]
    %v230 = vld [vmem:[#allocation4 + $0x8] sm:$0xff]
    %v231 = vld [vmem:[#allocation4 + $0x10] sm:$0xff]
    %v232 = vld [vmem:[#allocation4 + $0x18] sm:$0xff]
    %v233 = vld [vmem:[%s3] sm:$0x1]
    %v235 = vlaneseq
    %v236 = vshrl.u32 %v235, 7
    %v237 = vsub.s32 0, %v236
    %v238 = vrot.slane %v233, %v237
    %vm240 = vcmask 130048
    %v242 = vsel %vm240, %v219, 0
    %v245 = vsel %vm240, %v226, 0
    %247 = vmatprep.subr.mxu0 0.0
    %248 = vmatpush1.msra.mxu0 %v227
    %249 = vmatprep.subr.mxu0 0.0
    %250 = vmatpush1.msra.mxu0 %v228
    %251 = vmatprep.subr.mxu0 0.0
    %252 = vmatpush1.msra.mxu0 0.0
    %253 = vmatprep.subr.mxu0 0.0
    %254 = vmatpush1.msra.mxu0 0.0
    %255 = vmatprep.subr.mxu0 0.0
    %256 = vmatpush1.msra.mxu0 0.0
    %257 = vmatprep.subr.mxu0 0.0
    %258 = vmatpush1.msra.mxu0 0.0
    %259 = vmatprep.subr.mxu0 0.0
    %260 = vmatpush1.msra.mxu0 0.0
    %261 = vmatprep.subr.mxu0 0.0
    %262 = vmatpush1.msra.mxu0 0.0
    %263 = vmatprep.subr.mxu0 0.0
    %264 = vmatpush1.msra.mxu0 0.0
    %265 = vmatprep.subr.mxu0 0.0
    %266 = vmatpush1.msra.mxu0 0.0
    %267 = vmatprep.subr.mxu0 0.0
    %268 = vmatpush1.msra.mxu0 0.0
    %269 = vmatprep.subr.mxu0 0.0
    %270 = vmatpush1.msra.mxu0 0.0
    %271 = vmatprep.subr.mxu0 0.0
    %272 = vmatpush1.msra.mxu0 0.0
    %273 = vmatprep.subr.mxu0 0.0
    %274 = vmatpush1.msra.mxu0 0.0
    %275 = vmatprep.subr.mxu0 0.0
    %276 = vmatpush1.msra.mxu0 0.0
    %277 = vmatprep.subr.mxu0 0.0
    %278 = vmatpush1.msra.mxu0 0.0
    %279 = vmatprep.subr.mxu0 0.0
    %280 = vmatpush1.msra.mxu0 0.0
    %281 = vmatprep.subr.mxu0 0.0
    %282 = vmatpush1.msra.mxu0 0.0
    %283 = vmatprep.subr.mxu0 0.0
    %284 = vmatpush1.msra.mxu0 0.0
    %285 = vmatprep.subr.mxu0 0.0
    %286 = vmatpush1.msra.mxu0 0.0
    %287 = vmatprep.subr.mxu0 0.0
    %288 = vmatpush1.msra.mxu0 0.0
    %289 = vmatprep.subr.mxu0 0.0
    %290 = vmatpush1.msra.mxu0 0.0
    %291 = vmatprep.subr.mxu0 0.0
    %292 = vmatpush1.msra.mxu0 0.0
    %293 = vmatprep.subr.mxu0 0.0
    %294 = vmatpush1.msra.mxu0 0.0
    %295 = vmatprep.subr.mxu0 0.0
    %296 = vmatpush1.msra.mxu0 0.0
    %297 = vmatprep.subr.mxu0 0.0
    %298 = vmatpush1.msra.mxu0 0.0
    %299 = vmatprep.subr.mxu0 0.0
    %300 = vmatpush1.msra.mxu0 0.0
    %301 = vmatprep.subr.mxu0 0.0
    %302 = vmatpush1.msra.mxu0 0.0
    %303 = vmatprep.subr.mxu0 0.0
    %304 = vmatpush1.msra.mxu0 0.0
    %305 = vmatprep.subr.mxu0 0.0
    %306 = vmatpush1.msra.mxu0 0.0
    %307 = vmatprep.subr.mxu0 0.0
    %308 = vmatpush1.msra.mxu0 0.0
    %309 = vmatprep.subr.mxu0 0.0
    %310 = vmatpush1.msra.mxu0 0.0
    %311 = vmatprep.mubr.f32.mxu0 0.0
    %312 = vmatmul.mubr.f32.gmra.mrb[0].mxu0 %v242
    %v313 = vpop.f32.mrb[0].mxu0
    %v314 = vadd.f32 %v238, %v313
    %v315 = vpop.f32.mrb[0].mxu0
    %316 = vmatprep.mubr.f32.mxu0 0.0
    %317 = vmatmul.mubr.f32.gmra.mrb[0].mxu0 %v245
    %v318 = vpop.f32.mrb[0].mxu0
    %v319 = vadd.f32 %v238, %v318
    %v320 = vpop.f32.mrb[0].mxu0
    %321 = vdwg.mxu0
    %vm322 = vcmask 261120
    %v324 = vsel %vm322, 0.0, 0
    %326 = vmatprep.subr.mxu0 0.0
    %327 = vmatpush1.msra.mxu0 %v229
    %328 = vmatprep.subr.mxu0 0.0
    %329 = vmatpush1.msra.mxu0 %v230
    %330 = vmatprep.subr.mxu0 0.0
    %331 = vmatpush1.msra.mxu0 %v231
    %332 = vmatprep.subr.mxu0 0.0
    %333 = vmatpush1.msra.mxu0 %v232
    %334 = vmatprep.subr.mxu0 0.0
    %335 = vmatpush1.msra.mxu0 0.0
    %336 = vmatprep.subr.mxu0 0.0
    %337 = vmatpush1.msra.mxu0 0.0
    %338 = vmatprep.subr.mxu0 0.0
    %339 = vmatpush1.msra.mxu0 0.0
    %340 = vmatprep.subr.mxu0 0.0
    %341 = vmatpush1.msra.mxu0 0.0
    %342 = vmatprep.subr.mxu0 0.0
    %343 = vmatpush1.msra.mxu0 0.0
    %344 = vmatprep.subr.mxu0 0.0
    %345 = vmatpush1.msra.mxu0 0.0
    %346 = vmatprep.subr.mxu0 0.0
    %347 = vmatpush1.msra.mxu0 0.0
    %348 = vmatprep.subr.mxu0 0.0
    %349 = vmatpush1.msra.mxu0 0.0
    %350 = vmatprep.subr.mxu0 0.0
    %351 = vmatpush1.msra.mxu0 0.0
    %352 = vmatprep.subr.mxu0 0.0
    %353 = vmatpush1.msra.mxu0 0.0
    %354 = vmatprep.subr.mxu0 0.0
    %355 = vmatpush1.msra.mxu0 0.0
    %356 = vmatprep.subr.mxu0 0.0
    %357 = vmatpush1.msra.mxu0 0.0
    %358 = vmatprep.subr.mxu0 0.0
    %359 = vmatpush1.msra.mxu0 0.0
    %360 = vmatprep.subr.mxu0 0.0
    %361 = vmatpush1.msra.mxu0 0.0
    %362 = vmatprep.subr.mxu0 0.0
    %363 = vmatpush1.msra.mxu0 0.0
    %364 = vmatprep.subr.mxu0 0.0
    %365 = vmatpush1.msra.mxu0 0.0
    %366 = vmatprep.subr.mxu0 0.0
    %367 = vmatpush1.msra.mxu0 0.0
    %368 = vmatprep.subr.mxu0 0.0
    %369 = vmatpush1.msra.mxu0 0.0
    %370 = vmatprep.subr.mxu0 0.0
    %371 = vmatpush1.msra.mxu0 0.0
    %372 = vmatprep.subr.mxu0 0.0
    %373 = vmatpush1.msra.mxu0 0.0
    %374 = vmatprep.subr.mxu0 0.0
    %375 = vmatpush1.msra.mxu0 0.0
    %376 = vmatprep.subr.mxu0 0.0
    %377 = vmatpush1.msra.mxu0 0.0
    %378 = vmatprep.subr.mxu0 0.0
    %379 = vmatpush1.msra.mxu0 0.0
    %380 = vmatprep.subr.mxu0 0.0
    %381 = vmatpush1.msra.mxu0 0.0
    %382 = vmatprep.subr.mxu0 0.0
    %383 = vmatpush1.msra.mxu0 0.0
    %384 = vmatprep.subr.mxu0 0.0
    %385 = vmatpush1.msra.mxu0 0.0
    %386 = vmatprep.subr.mxu0 0.0
    %387 = vmatpush1.msra.mxu0 0.0
    %388 = vmatprep.subr.mxu0 0.0
    %389 = vmatpush1.msra.mxu0 0.0
    %390 = vmatprep.mubr.f32.mxu0 0.0
    %391 = vmatmul.mubr.f32.gmra.mrb[0].mxu0 %v324
    %v392 = vpop.f32.mrb[0].mxu0
    %v393 = vadd.f32 0.0, %v392
    %v394 = vpop.f32.mrb[0].mxu0
    %395 = vdwg.mxu0
    %v396 = vadd.f32 %v314, %v393
    %v397 = vxor.u32 %v396, 2147483648
    %v398 = vmul.f32 %v397, 1.442695
    %v399 = vpow.pop %v398
    %v400 = vadd.f32 %v399, 1.0
    %v401 = vrcp.pop %v400
    %v402 = vmul.f32 1.0, %v401
    %v403 = vtanh.pop %v396
    %v404 = vmul.f32 %v402, 0.0
    %406 = vrot.lane.b32.xlu0 %v403, 32
    %v407 = vpop.permute.xlu0 %406
    %v409 = vmul.f32 %v402, %v407
    %411 = vrot.lane.b32.xlu0 %v409, 32
    %v412 = vpop.permute.xlu0 %411
    %v414 = vadd.f32 %v404, %v412
    %v415 = vtanh.pop %v414
    %417 = vrot.lane.b32.xlu0 %v415, 32
    %v418 = vpop.permute.xlu0 %417
    %v420 = vmul.f32 %v402, %v418
    %422 = vrot.lane.b32.xlu0 %v420, 64
    %v423 = vpop.permute.xlu0 %422
    %v424 = vsel %vm322, %v423, 0
    %426 = vmatprep.subr.mxu0 0.0
    %427 = vmatpush1.msra.mxu0 %v229
    %428 = vmatprep.subr.mxu0 0.0
    %429 = vmatpush1.msra.mxu0 %v230
    %430 = vmatprep.subr.mxu0 0.0
    %431 = vmatpush1.msra.mxu0 %v231
    %432 = vmatprep.subr.mxu0 0.0
    %433 = vmatpush1.msra.mxu0 %v232
    %434 = vmatprep.subr.mxu0 0.0
    %435 = vmatpush1.msra.mxu0 0.0
    %436 = vmatprep.subr.mxu0 0.0
    %437 = vmatpush1.msra.mxu0 0.0
    %438 = vmatprep.subr.mxu0 0.0
    %439 = vmatpush1.msra.mxu0 0.0
    %440 = vmatprep.subr.mxu0 0.0
    %441 = vmatpush1.msra.mxu0 0.0
    %442 = vmatprep.subr.mxu0 0.0
    %443 = vmatpush1.msra.mxu0 0.0
    %444 = vmatprep.subr.mxu0 0.0
    %445 = vmatpush1.msra.mxu0 0.0
    %446 = vmatprep.subr.mxu0 0.0
    %447 = vmatpush1.msra.mxu0 0.0
    %448 = vmatprep.subr.mxu0 0.0
    %449 = vmatpush1.msra.mxu0 0.0
    %450 = vmatprep.subr.mxu0 0.0
    %451 = vmatpush1.msra.mxu0 0.0
    %452 = vmatprep.subr.mxu0 0.0
    %453 = vmatpush1.msra.mxu0 0.0
    %454 = vmatprep.subr.mxu0 0.0
    %455 = vmatpush1.msra.mxu0 0.0
    %456 = vmatprep.subr.mxu0 0.0
    %457 = vmatpush1.msra.mxu0 0.0
    %458 = vmatprep.subr.mxu0 0.0
    %459 = vmatpush1.msra.mxu0 0.0
    %460 = vmatprep.subr.mxu0 0.0
    %461 = vmatpush1.msra.mxu0 0.0
    %462 = vmatprep.subr.mxu0 0.0
    %463 = vmatpush1.msra.mxu0 0.0
    %464 = vmatprep.subr.mxu0 0.0
    %465 = vmatpush1.msra.mxu0 0.0
    %466 = vmatprep.subr.mxu0 0.0
    %467 = vmatpush1.msra.mxu0 0.0
    %468 = vmatprep.subr.mxu0 0.0
    %469 = vmatpush1.msra.mxu0 0.0
    %470 = vmatprep.subr.mxu0 0.0
    %471 = vmatpush1.msra.mxu0 0.0
    %472 = vmatprep.subr.mxu0 0.0
    %473 = vmatpush1.msra.mxu0 0.0
    %474 = vmatprep.subr.mxu0 0.0
    %475 = vmatpush1.msra.mxu0 0.0
    %476 = vmatprep.subr.mxu0 0.0
    %477 = vmatpush1.msra.mxu0 0.0
    %478 = vmatprep.subr.mxu0 0.0
    %479 = vmatpush1.msra.mxu0 0.0
    %480 = vmatprep.subr.mxu0 0.0
    %481 = vmatpush1.msra.mxu0 0.0
    %482 = vmatprep.subr.mxu0 0.0
    %483 = vmatpush1.msra.mxu0 0.0
    %484 = vmatprep.subr.mxu0 0.0
    %485 = vmatpush1.msra.mxu0 0.0
    %486 = vmatprep.subr.mxu0 0.0
    %487 = vmatpush1.msra.mxu0 0.0
    %488 = vmatprep.subr.mxu0 0.0
    %489 = vmatpush1.msra.mxu0 0.0
    %490 = vmatprep.mubr.f32.mxu0 0.0
    %491 = vmatmul.mubr.f32.gmra.mrb[0].mxu0 %v424
    %v492 = vpop.f32.mrb[0].mxu0
    %v493 = vadd.f32 0.0, %v492
    %v494 = vpop.f32.mrb[0].mxu0
    %495 = vdwg.mxu0
    %v497 = vrot.slane %v493, 6
    %v499 = vadd.f32 %v314, %v497
    %v500 = vxor.u32 %v499, 2147483648
    %v501 = vmul.f32 %v500, 1.442695
    %v502 = vpow.pop %v501
    %v503 = vadd.f32 %v502, 1.0
    %v504 = vrcp.pop %v503
    %v505 = vmul.f32 1.0, %v504
    %v506 = vtanh.pop %v499
    %v508 = vrot.slane %v414, 6
    %v510 = vmul.f32 %v505, %v508
    %512 = vrot.lane.b32.xlu0 %v506, 32
    %v513 = vpop.permute.xlu0 %512
    %v515 = vmul.f32 %v505, %v513
    %517 = vrot.lane.b32.xlu0 %v515, 32
    %v518 = vpop.permute.xlu0 %517
    %v520 = vadd.f32 %v510, %v518
    %v521 = vtanh.pop %v520
    %523 = vrot.lane.b32.xlu0 %v521, 32
    %v524 = vpop.permute.xlu0 %523
    %v526 = vmul.f32 %v505, %v524
    %v528 = vrot.slane %v526, 2
    %529 = vrot.lane.b32.xlu0 %v528, 64
    %v530 = vpop.permute.xlu0 %529
    %v531 = vsel %vm322, %v530, 0
    %533 = vmatprep.subr.mxu0 0.0
    %534 = vmatpush1.msra.mxu0 %v229
    %535 = vmatprep.subr.mxu0 0.0
    %536 = vmatpush1.msra.mxu0 %v230
    %537 = vmatprep.subr.mxu0 0.0
    %538 = vmatpush1.msra.mxu0 %v231
    %539 = vmatprep.subr.mxu0 0.0
    %540 = vmatpush1.msra.mxu0 %v232
    %541 = vmatprep.subr.mxu0 0.0
    %542 = vmatpush1.msra.mxu0 0.0
    %543 = vmatprep.subr.mxu0 0.0
    %544 = vmatpush1.msra.mxu0 0.0
    %545 = vmatprep.subr.mxu0 0.0
    %546 = vmatpush1.msra.mxu0 0.0
    %547 = vmatprep.subr.mxu0 0.0
    %548 = vmatpush1.msra.mxu0 0.0
    %549 = vmatprep.subr.mxu0 0.0
    %550 = vmatpush1.msra.mxu0 0.0
    %551 = vmatprep.subr.mxu0 0.0
    %552 = vmatpush1.msra.mxu0 0.0
    %553 = vmatprep.subr.mxu0 0.0
    %554 = vmatpush1.msra.mxu0 0.0
    %555 = vmatprep.subr.mxu0 0.0
    %556 = vmatpush1.msra.mxu0 0.0
    %557 = vmatprep.subr.mxu0 0.0
    %558 = vmatpush1.msra.mxu0 0.0
    %559 = vmatprep.subr.mxu0 0.0
    %560 = vmatpush1.msra.mxu0 0.0
    %561 = vmatprep.subr.mxu0 0.0
    %562 = vmatpush1.msra.mxu0 0.0
    %563 = vmatprep.subr.mxu0 0.0
    %564 = vmatpush1.msra.mxu0 0.0
    %565 = vmatprep.subr.mxu0 0.0
    %566 = vmatpush1.msra.mxu0 0.0
    %567 = vmatprep.subr.mxu0 0.0
    %568 = vmatpush1.msra.mxu0 0.0
    %569 = vmatprep.subr.mxu0 0.0
    %570 = vmatpush1.msra.mxu0 0.0
    %571 = vmatprep.subr.mxu0 0.0
    %572 = vmatpush1.msra.mxu0 0.0
    %573 = vmatprep.subr.mxu0 0.0
    %574 = vmatpush1.msra.mxu0 0.0
    %575 = vmatprep.subr.mxu0 0.0
    %576 = vmatpush1.msra.mxu0 0.0
    %577 = vmatprep.subr.mxu0 0.0
    %578 = vmatpush1.msra.mxu0 0.0
    %579 = vmatprep.subr.mxu0 0.0
    %580 = vmatpush1.msra.mxu0 0.0
    %581 = vmatprep.subr.mxu0 0.0
    %582 = vmatpush1.msra.mxu0 0.0
    %583 = vmatprep.subr.mxu0 0.0
    %584 = vmatpush1.msra.mxu0 0.0
    %585 = vmatprep.subr.mxu0 0.0
    %586 = vmatpush1.msra.mxu0 0.0
    %587 = vmatprep.subr.mxu0 0.0
    %588 = vmatpush1.msra.mxu0 0.0
    %589 = vmatprep.subr.mxu0 0.0
    %590 = vmatpush1.msra.mxu0 0.0
    %591 = vmatprep.subr.mxu0 0.0
    %592 = vmatpush1.msra.mxu0 0.0
    %593 = vmatprep.subr.mxu0 0.0
    %594 = vmatpush1.msra.mxu0 0.0
    %595 = vmatprep.subr.mxu0 0.0
    %596 = vmatpush1.msra.mxu0 0.0
    %597 = vmatprep.mubr.f32.mxu0 0.0
    %598 = vmatmul.mubr.f32.gmra.mrb[0].mxu0 %v531
    %v599 = vpop.f32.mrb[0].mxu0
    %v600 = vadd.f32 0.0, %v599
    %v601 = vpop.f32.mrb[0].mxu0
    %602 = vdwg.mxu0
    %v604 = vrot.slane %v600, 4
    %v606 = vadd.f32 %v314, %v604
    %v607 = vxor.u32 %v606, 2147483648
    %v608 = vmul.f32 %v607, 1.442695
    %v609 = vpow.pop %v608
    %v610 = vadd.f32 %v609, 1.0
    %v611 = vrcp.pop %v610
    %v612 = vmul.f32 1.0, %v611
    %v613 = vtanh.pop %v606
    %v615 = vrot.slane %v520, 6
    %v617 = vmul.f32 %v612, %v615
    %619 = vrot.lane.b32.xlu0 %v613, 32
    %v620 = vpop.permute.xlu0 %619
    %v622 = vmul.f32 %v612, %v620
    %624 = vrot.lane.b32.xlu0 %v622, 32
    %v625 = vpop.permute.xlu0 %624
    %v627 = vadd.f32 %v617, %v625
    %v628 = vtanh.pop %v627
    %630 = vrot.lane.b32.xlu0 %v628, 32
    %v631 = vpop.permute.xlu0 %630
    %v633 = vmul.f32 %v612, %v631
    %v635 = vrot.slane %v633, 4
    %636 = vrot.lane.b32.xlu0 %v635, 64
    %v637 = vpop.permute.xlu0 %636
    %v638 = vsel %vm322, %v637, 0
    %640 = vmatprep.subr.mxu0 0.0
    %641 = vmatpush1.msra.mxu0 %v229
    %642 = vmatprep.subr.mxu0 0.0
    %643 = vmatpush1.msra.mxu0 %v230
    %644 = vmatprep.subr.mxu0 0.0
    %645 = vmatpush1.msra.mxu0 %v231
    %646 = vmatprep.subr.mxu0 0.0
    %647 = vmatpush1.msra.mxu0 %v232
    %648 = vmatprep.subr.mxu0 0.0
    %649 = vmatpush1.msra.mxu0 0.0
    %650 = vmatprep.subr.mxu0 0.0
    %651 = vmatpush1.msra.mxu0 0.0
    %652 = vmatprep.subr.mxu0 0.0
    %653 = vmatpush1.msra.mxu0 0.0
    %654 = vmatprep.subr.mxu0 0.0
    %655 = vmatpush1.msra.mxu0 0.0
    %656 = vmatprep.subr.mxu0 0.0
    %657 = vmatpush1.msra.mxu0 0.0
    %658 = vmatprep.subr.mxu0 0.0
    %659 = vmatpush1.msra.mxu0 0.0
    %660 = vmatprep.subr.mxu0 0.0
    %661 = vmatpush1.msra.mxu0 0.0
    %662 = vmatprep.subr.mxu0 0.0
    %663 = vmatpush1.msra.mxu0 0.0
    %664 = vmatprep.subr.mxu0 0.0
    %665 = vmatpush1.msra.mxu0 0.0
    %666 = vmatprep.subr.mxu0 0.0
    %667 = vmatpush1.msra.mxu0 0.0
    %668 = vmatprep.subr.mxu0 0.0
    %669 = vmatpush1.msra.mxu0 0.0
    %670 = vmatprep.subr.mxu0 0.0
    %671 = vmatpush1.msra.mxu0 0.0
    %672 = vmatprep.subr.mxu0 0.0
    %673 = vmatpush1.msra.mxu0 0.0
    %674 = vmatprep.subr.mxu0 0.0
    %675 = vmatpush1.msra.mxu0 0.0
    %676 = vmatprep.subr.mxu0 0.0
    %677 = vmatpush1.msra.mxu0 0.0
    %678 = vmatprep.subr.mxu0 0.0
    %679 = vmatpush1.msra.mxu0 0.0
    %680 = vmatprep.subr.mxu0 0.0
    %681 = vmatpush1.msra.mxu0 0.0
    %682 = vmatprep.subr.mxu0 0.0
    %683 = vmatpush1.msra.mxu0 0.0
    %684 = vmatprep.subr.mxu0 0.0
    %685 = vmatpush1.msra.mxu0 0.0
    %686 = vmatprep.subr.mxu0 0.0
    %687 = vmatpush1.msra.mxu0 0.0
    %688 = vmatprep.subr.mxu0 0.0
    %689 = vmatpush1.msra.mxu0 0.0
    %690 = vmatprep.subr.mxu0 0.0
    %691 = vmatpush1.msra.mxu0 0.0
    %692 = vmatprep.subr.mxu0 0.0
    %693 = vmatpush1.msra.mxu0 0.0
    %694 = vmatprep.subr.mxu0 0.0
    %695 = vmatpush1.msra.mxu0 0.0
    %696 = vmatprep.subr.mxu0 0.0
    %697 = vmatpush1.msra.mxu0 0.0
    %698 = vmatprep.subr.mxu0 0.0
    %699 = vmatpush1.msra.mxu0 0.0
    %700 = vmatprep.subr.mxu0 0.0
    %701 = vmatpush1.msra.mxu0 0.0
    %702 = vmatprep.subr.mxu0 0.0
    %703 = vmatpush1.msra.mxu0 0.0
    %704 = vmatprep.mubr.f32.mxu0 0.0
    %705 = vmatmul.mubr.f32.gmra.mrb[0].mxu0 %v638
    %v706 = vpop.f32.mrb[0].mxu0
    %v707 = vadd.f32 0.0, %v706
    %v708 = vpop.f32.mrb[0].mxu0
    %709 = vdwg.mxu0
    %v711 = vrot.slane %v707, 2
    %v713 = vadd.f32 %v314, %v711
    %v714 = vxor.u32 %v713, 2147483648
    %v715 = vmul.f32 %v714, 1.442695
    %v716 = vpow.pop %v715
    %v717 = vadd.f32 %v716, 1.0
    %v718 = vrcp.pop %v717
    %v719 = vmul.f32 1.0, %v718
    %v720 = vtanh.pop %v713
    %v722 = vrot.slane %v627, 6
    %v724 = vmul.f32 %v719, %v722
    %726 = vrot.lane.b32.xlu0 %v720, 32
    %v727 = vpop.permute.xlu0 %726
    %v729 = vmul.f32 %v719, %v727
    %731 = vrot.lane.b32.xlu0 %v729, 32
    %v732 = vpop.permute.xlu0 %731
    %v734 = vadd.f32 %v724, %v732
    %v735 = vtanh.pop %v734
    %737 = vrot.lane.b32.xlu0 %v735, 32
    %v738 = vpop.permute.xlu0 %737
    %v740 = vmul.f32 %v719, %v738
    %v742 = vrot.slane %v740, 6
    %743 = vrot.lane.b32.xlu0 %v742, 64
    %v744 = vpop.permute.xlu0 %743
    %v745 = vsel %vm322, %v744, 0
    %747 = vmatprep.subr.mxu0 0.0
    %748 = vmatpush1.msra.mxu0 %v229
    %749 = vmatprep.subr.mxu0 0.0
    %750 = vmatpush1.msra.mxu0 %v230
    %751 = vmatprep.subr.mxu0 0.0
    %752 = vmatpush1.msra.mxu0 %v231
    %753 = vmatprep.subr.mxu0 0.0
    %754 = vmatpush1.msra.mxu0 %v232
    %755 = vmatprep.subr.mxu0 0.0
    %756 = vmatpush1.msra.mxu0 0.0
    %757 = vmatprep.subr.mxu0 0.0
    %758 = vmatpush1.msra.mxu0 0.0
    %759 = vmatprep.subr.mxu0 0.0
    %760 = vmatpush1.msra.mxu0 0.0
    %761 = vmatprep.subr.mxu0 0.0
    %762 = vmatpush1.msra.mxu0 0.0
    %763 = vmatprep.subr.mxu0 0.0
    %764 = vmatpush1.msra.mxu0 0.0
    %765 = vmatprep.subr.mxu0 0.0
    %766 = vmatpush1.msra.mxu0 0.0
    %767 = vmatprep.subr.mxu0 0.0
    %768 = vmatpush1.msra.mxu0 0.0
    %769 = vmatprep.subr.mxu0 0.0
    %770 = vmatpush1.msra.mxu0 0.0
    %771 = vmatprep.subr.mxu0 0.0
    %772 = vmatpush1.msra.mxu0 0.0
    %773 = vmatprep.subr.mxu0 0.0
    %774 = vmatpush1.msra.mxu0 0.0
    %775 = vmatprep.subr.mxu0 0.0
    %776 = vmatpush1.msra.mxu0 0.0
    %777 = vmatprep.subr.mxu0 0.0
    %778 = vmatpush1.msra.mxu0 0.0
    %779 = vmatprep.subr.mxu0 0.0
    %780 = vmatpush1.msra.mxu0 0.0
    %781 = vmatprep.subr.mxu0 0.0
    %782 = vmatpush1.msra.mxu0 0.0
    %783 = vmatprep.subr.mxu0 0.0
    %784 = vmatpush1.msra.mxu0 0.0
    %785 = vmatprep.subr.mxu0 0.0
    %786 = vmatpush1.msra.mxu0 0.0
    %787 = vmatprep.subr.mxu0 0.0
    %788 = vmatpush1.msra.mxu0 0.0
    %789 = vmatprep.subr.mxu0 0.0
    %790 = vmatpush1.msra.mxu0 0.0
    %791 = vmatprep.subr.mxu0 0.0
    %792 = vmatpush1.msra.mxu0 0.0
    %793 = vmatprep.subr.mxu0 0.0
    %794 = vmatpush1.msra.mxu0 0.0
    %795 = vmatprep.subr.mxu0 0.0
    %796 = vmatpush1.msra.mxu0 0.0
    %797 = vmatprep.subr.mxu0 0.0
    %798 = vmatpush1.msra.mxu0 0.0
    %799 = vmatprep.subr.mxu0 0.0
    %800 = vmatpush1.msra.mxu0 0.0
    %801 = vmatprep.subr.mxu0 0.0
    %802 = vmatpush1.msra.mxu0 0.0
    %803 = vmatprep.subr.mxu0 0.0
    %804 = vmatpush1.msra.mxu0 0.0
    %805 = vmatprep.subr.mxu0 0.0
    %806 = vmatpush1.msra.mxu0 0.0
    %807 = vmatprep.subr.mxu0 0.0
    %808 = vmatpush1.msra.mxu0 0.0
    %809 = vmatprep.subr.mxu0 0.0
    %810 = vmatpush1.msra.mxu0 0.0
    %811 = vmatprep.mubr.f32.mxu0 0.0
    %812 = vmatmul.mubr.f32.gmra.mrb[0].mxu0 %v745
    %v813 = vpop.f32.mrb[0].mxu0
    %v814 = vadd.f32 0.0, %v813
    %v815 = vpop.f32.mrb[0].mxu0
    %816 = vdwg.mxu0
    %v817 = vadd.f32 %v319, %v814
    %v818 = vxor.u32 %v817, 2147483648
    %v819 = vmul.f32 %v818, 1.442695
    %v820 = vpow.pop %v819
    %v821 = vadd.f32 %v820, 1.0
    %v822 = vrcp.pop %v821
    %v823 = vmul.f32 1.0, %v822
    %v824 = vtanh.pop %v817
    %v826 = vrot.slane %v734, 6
    %v828 = vmul.f32 %v823, %v826
    %830 = vrot.lane.b32.xlu0 %v824, 32
    %v831 = vpop.permute.xlu0 %830
    %v833 = vmul.f32 %v823, %v831
    %835 = vrot.lane.b32.xlu0 %v833, 32
    %v836 = vpop.permute.xlu0 %835
    %v838 = vadd.f32 %v828, %v836
    %v839 = vtanh.pop %v838
    %841 = vrot.lane.b32.xlu0 %v839, 32
    %v842 = vpop.permute.xlu0 %841
    %v844 = vmul.f32 %v823, %v842
    %846 = vrot.lane.b32.xlu0 %v844, 64
    %v847 = vpop.permute.xlu0 %846
    %v848 = vsel %vm322, %v847, 0
    %850 = vmatprep.subr.mxu0 0.0
    %851 = vmatpush1.msra.mxu0 %v229
    %852 = vmatprep.subr.mxu0 0.0
    %853 = vmatpush1.msra.mxu0 %v230
    %854 = vmatprep.subr.mxu0 0.0
    %855 = vmatpush1.msra.mxu0 %v231
    %856 = vmatprep.subr.mxu0 0.0
    %857 = vmatpush1.msra.mxu0 %v232
    %858 = vmatprep.subr.mxu0 0.0
    %859 = vmatpush1.msra.mxu0 0.0
    %860 = vmatprep.subr.mxu0 0.0
    %861 = vmatpush1.msra.mxu0 0.0
    %862 = vmatprep.subr.mxu0 0.0
    %863 = vmatpush1.msra.mxu0 0.0
    %864 = vmatprep.subr.mxu0 0.0
    %865 = vmatpush1.msra.mxu0 0.0
    %866 = vmatprep.subr.mxu0 0.0
    %867 = vmatpush1.msra.mxu0 0.0
    %868 = vmatprep.subr.mxu0 0.0
    %869 = vmatpush1.msra.mxu0 0.0
    %870 = vmatprep.subr.mxu0 0.0
    %871 = vmatpush1.msra.mxu0 0.0
    %872 = vmatprep.subr.mxu0 0.0
    %873 = vmatpush1.msra.mxu0 0.0
    %874 = vmatprep.subr.mxu0 0.0
    %875 = vmatpush1.msra.mxu0 0.0
    %876 = vmatprep.subr.mxu0 0.0
    %877 = vmatpush1.msra.mxu0 0.0
    %878 = vmatprep.subr.mxu0 0.0
    %879 = vmatpush1.msra.mxu0 0.0
    %880 = vmatprep.subr.mxu0 0.0
    %881 = vmatpush1.msra.mxu0 0.0
    %882 = vmatprep.subr.mxu0 0.0
    %883 = vmatpush1.msra.mxu0 0.0
    %884 = vmatprep.subr.mxu0 0.0
    %885 = vmatpush1.msra.mxu0 0.0
    %886 = vmatprep.subr.mxu0 0.0
    %887 = vmatpush1.msra.mxu0 0.0
    %888 = vmatprep.subr.mxu0 0.0
    %889 = vmatpush1.msra.mxu0 0.0
    %890 = vmatprep.subr.mxu0 0.0
    %891 = vmatpush1.msra.mxu0 0.0
    %892 = vmatprep.subr.mxu0 0.0
    %893 = vmatpush1.msra.mxu0 0.0
    %894 = vmatprep.subr.mxu0 0.0
    %895 = vmatpush1.msra.mxu0 0.0
    %896 = vmatprep.subr.mxu0 0.0
    %897 = vmatpush1.msra.mxu0 0.0
    %898 = vmatprep.subr.mxu0 0.0
    %899 = vmatpush1.msra.mxu0 0.0
    %900 = vmatprep.subr.mxu0 0.0
    %901 = vmatpush1.msra.mxu0 0.0
    %902 = vmatprep.subr.mxu0 0.0
    %903 = vmatpush1.msra.mxu0 0.0
    %904 = vmatprep.subr.mxu0 0.0
    %905 = vmatpush1.msra.mxu0 0.0
    %906 = vmatprep.subr.mxu0 0.0
    %907 = vmatpush1.msra.mxu0 0.0
    %908 = vmatprep.subr.mxu0 0.0
    %909 = vmatpush1.msra.mxu0 0.0
    %910 = vmatprep.subr.mxu0 0.0
    %911 = vmatpush1.msra.mxu0 0.0
    %912 = vmatprep.subr.mxu0 0.0
    %913 = vmatpush1.msra.mxu0 0.0
    %914 = vmatprep.mubr.f32.mxu0 0.0
    %915 = vmatmul.mubr.f32.gmra.mrb[0].mxu0 %v848
    %v916 = vpop.f32.mrb[0].mxu0
    %v917 = vadd.f32 0.0, %v916
    %v918 = vpop.f32.mrb[0].mxu0
    %919 = vdwg.mxu0
    %v921 = vrot.slane %v917, 6
    %v923 = vadd.f32 %v319, %v921
    %v924 = vxor.u32 %v923, 2147483648
    %v925 = vmul.f32 %v924, 1.442695
    %v926 = vpow.pop %v925
    %v927 = vadd.f32 %v926, 1.0
    %v928 = vrcp.pop %v927
    %v929 = vmul.f32 1.0, %v928
    %v930 = vtanh.pop %v923
    %v932 = vrot.slane %v838, 6
    %v934 = vmul.f32 %v929, %v932
    %936 = vrot.lane.b32.xlu0 %v930, 32
    %v937 = vpop.permute.xlu0 %936
    %v939 = vmul.f32 %v929, %v937
    %941 = vrot.lane.b32.xlu0 %v939, 32
    %v942 = vpop.permute.xlu0 %941
    %v944 = vadd.f32 %v934, %v942
    %v945 = vtanh.pop %v944
    %947 = vrot.lane.b32.xlu0 %v945, 32
    %v948 = vpop.permute.xlu0 %947
    %v950 = vmul.f32 %v929, %v948
    %v952 = vrot.slane %v950, 2
    %953 = vrot.lane.b32.xlu0 %v952, 64
    %v954 = vpop.permute.xlu0 %953
    %v955 = vsel %vm322, %v954, 0
    %957 = vmatprep.subr.mxu0 0.0
    %958 = vmatpush1.msra.mxu0 %v229
    %959 = vmatprep.subr.mxu0 0.0
    %960 = vmatpush1.msra.mxu0 %v230
    %961 = vmatprep.subr.mxu0 0.0
    %962 = vmatpush1.msra.mxu0 %v231
    %963 = vmatprep.subr.mxu0 0.0
    %964 = vmatpush1.msra.mxu0 %v232
    %965 = vmatprep.subr.mxu0 0.0
    %966 = vmatpush1.msra.mxu0 0.0
    %967 = vmatprep.subr.mxu0 0.0
    %968 = vmatpush1.msra.mxu0 0.0
    %969 = vmatprep.subr.mxu0 0.0
    %970 = vmatpush1.msra.mxu0 0.0
    %971 = vmatprep.subr.mxu0 0.0
    %972 = vmatpush1.msra.mxu0 0.0
    %973 = vmatprep.subr.mxu0 0.0
    %974 = vmatpush1.msra.mxu0 0.0
    %975 = vmatprep.subr.mxu0 0.0
    %976 = vmatpush1.msra.mxu0 0.0
    %977 = vmatprep.subr.mxu0 0.0
    %978 = vmatpush1.msra.mxu0 0.0
    %979 = vmatprep.subr.mxu0 0.0
    %980 = vmatpush1.msra.mxu0 0.0
    %981 = vmatprep.subr.mxu0 0.0
    %982 = vmatpush1.msra.mxu0 0.0
    %983 = vmatprep.subr.mxu0 0.0
    %984 = vmatpush1.msra.mxu0 0.0
    %985 = vmatprep.subr.mxu0 0.0
    %986 = vmatpush1.msra.mxu0 0.0
    %987 = vmatprep.subr.mxu0 0.0
    %988 = vmatpush1.msra.mxu0 0.0
    %989 = vmatprep.subr.mxu0 0.0
    %990 = vmatpush1.msra.mxu0 0.0
    %991 = vmatprep.subr.mxu0 0.0
    %992 = vmatpush1.msra.mxu0 0.0
    %993 = vmatprep.subr.mxu0 0.0
    %994 = vmatpush1.msra.mxu0 0.0
    %995 = vmatprep.subr.mxu0 0.0
    %996 = vmatpush1.msra.mxu0 0.0
    %997 = vmatprep.subr.mxu0 0.0
    %998 = vmatpush1.msra.mxu0 0.0
    %999 = vmatprep.subr.mxu0 0.0
    %1000 = vmatpush1.msra.mxu0 0.0
    %1001 = vmatprep.subr.mxu0 0.0
    %1002 = vmatpush1.msra.mxu0 0.0
    %1003 = vmatprep.subr.mxu0 0.0
    %1004 = vmatpush1.msra.mxu0 0.0
    %1005 = vmatprep.subr.mxu0 0.0
    %1006 = vmatpush1.msra.mxu0 0.0
    %1007 = vmatprep.subr.mxu0 0.0
    %1008 = vmatpush1.msra.mxu0 0.0
    %1009 = vmatprep.subr.mxu0 0.0
    %1010 = vmatpush1.msra.mxu0 0.0
    %1011 = vmatprep.subr.mxu0 0.0
    %1012 = vmatpush1.msra.mxu0 0.0
    %1013 = vmatprep.subr.mxu0 0.0
    %1014 = vmatpush1.msra.mxu0 0.0
    %1015 = vmatprep.subr.mxu0 0.0
    %1016 = vmatpush1.msra.mxu0 0.0
    %1017 = vmatprep.subr.mxu0 0.0
    %1018 = vmatpush1.msra.mxu0 0.0
    %1019 = vmatprep.subr.mxu0 0.0
    %1020 = vmatpush1.msra.mxu0 0.0
    %1021 = vmatprep.mubr.f32.mxu0 0.0
    %1022 = vmatmul.mubr.f32.gmra.mrb[0].mxu0 %v955
    %v1023 = vpop.f32.mrb[0].mxu0
    %v1024 = vadd.f32 0.0, %v1023
    %v1025 = vpop.f32.mrb[0].mxu0
    %1026 = vdwg.mxu0
    %v1028 = vrot.slane %v1024, 4
    %v1030 = vadd.f32 %v319, %v1028
    %v1031 = vxor.u32 %v1030, 2147483648
    %v1032 = vmul.f32 %v1031, 1.442695
    %v1033 = vpow.pop %v1032
    %v1034 = vadd.f32 %v1033, 1.0
    %v1035 = vrcp.pop %v1034
    %v1036 = vmul.f32 1.0, %v1035
    %v1037 = vtanh.pop %v1030
    %v1039 = vrot.slane %v944, 6
    %v1041 = vmul.f32 %v1036, %v1039
    %1043 = vrot.lane.b32.xlu0 %v1037, 32
    %v1044 = vpop.permute.xlu0 %1043
    %v1046 = vmul.f32 %v1036, %v1044
    %1048 = vrot.lane.b32.xlu0 %v1046, 32
    %v1049 = vpop.permute.xlu0 %1048
    %v1051 = vadd.f32 %v1041, %v1049
    %v1052 = vtanh.pop %v1051
    %1054 = vrot.lane.b32.xlu0 %v1052, 32
    %v1055 = vpop.permute.xlu0 %1054
    %v1057 = vmul.f32 %v1036, %v1055
    %v1059 = vrot.slane %v1057, 4
    %1060 = vrot.lane.b32.xlu0 %v1059, 64
    %v1061 = vpop.permute.xlu0 %1060
    %v1062 = vsel %vm322, %v1061, 0
    %1064 = vmatprep.subr.mxu0 0.0
    %1065 = vmatpush1.msra.mxu0 %v229
    %1066 = vmatprep.subr.mxu0 0.0
    %1067 = vmatpush1.msra.mxu0 %v230
    %1068 = vmatprep.subr.mxu0 0.0
    %1069 = vmatpush1.msra.mxu0 %v231
    %1070 = vmatprep.subr.mxu0 0.0
    %1071 = vmatpush1.msra.mxu0 %v232
    %1072 = vmatprep.subr.mxu0 0.0
    %1073 = vmatpush1.msra.mxu0 0.0
    %1074 = vmatprep.subr.mxu0 0.0
    %1075 = vmatpush1.msra.mxu0 0.0
    %1076 = vmatprep.subr.mxu0 0.0
    %1077 = vmatpush1.msra.mxu0 0.0
    %1078 = vmatprep.subr.mxu0 0.0
    %1079 = vmatpush1.msra.mxu0 0.0
    %1080 = vmatprep.subr.mxu0 0.0
    %1081 = vmatpush1.msra.mxu0 0.0
    %1082 = vmatprep.subr.mxu0 0.0
    %1083 = vmatpush1.msra.mxu0 0.0
    %1084 = vmatprep.subr.mxu0 0.0
    %1085 = vmatpush1.msra.mxu0 0.0
    %1086 = vmatprep.subr.mxu0 0.0
    %1087 = vmatpush1.msra.mxu0 0.0
    %1088 = vmatprep.subr.mxu0 0.0
    %1089 = vmatpush1.msra.mxu0 0.0
    %1090 = vmatprep.subr.mxu0 0.0
    %1091 = vmatpush1.msra.mxu0 0.0
    %1092 = vmatprep.subr.mxu0 0.0
    %1093 = vmatpush1.msra.mxu0 0.0
    %1094 = vmatprep.subr.mxu0 0.0
    %1095 = vmatpush1.msra.mxu0 0.0
    %1096 = vmatprep.subr.mxu0 0.0
    %1097 = vmatpush1.msra.mxu0 0.0
    %1098 = vmatprep.subr.mxu0 0.0
    %1099 = vmatpush1.msra.mxu0 0.0
    %1100 = vmatprep.subr.mxu0 0.0
    %1101 = vmatpush1.msra.mxu0 0.0
    %1102 = vmatprep.subr.mxu0 0.0
    %1103 = vmatpush1.msra.mxu0 0.0
    %1104 = vmatprep.subr.mxu0 0.0
    %1105 = vmatpush1.msra.mxu0 0.0
    %1106 = vmatprep.subr.mxu0 0.0
    %1107 = vmatpush1.msra.mxu0 0.0
    %1108 = vmatprep.subr.mxu0 0.0
    %1109 = vmatpush1.msra.mxu0 0.0
    %1110 = vmatprep.subr.mxu0 0.0
    %1111 = vmatpush1.msra.mxu0 0.0
    %1112 = vmatprep.subr.mxu0 0.0
    %1113 = vmatpush1.msra.mxu0 0.0
    %1114 = vmatprep.subr.mxu0 0.0
    %1115 = vmatpush1.msra.mxu0 0.0
    %1116 = vmatprep.subr.mxu0 0.0
    %1117 = vmatpush1.msra.mxu0 0.0
    %1118 = vmatprep.subr.mxu0 0.0
    %1119 = vmatpush1.msra.mxu0 0.0
    %1120 = vmatprep.subr.mxu0 0.0
    %1121 = vmatpush1.msra.mxu0 0.0
    %1122 = vmatprep.subr.mxu0 0.0
    %1123 = vmatpush1.msra.mxu0 0.0
    %1124 = vmatprep.subr.mxu0 0.0
    %1125 = vmatpush1.msra.mxu0 0.0
    %1126 = vmatprep.subr.mxu0 0.0
    %1127 = vmatpush1.msra.mxu0 0.0
    %1128 = vmatprep.mubr.f32.mxu0 0.0
    %1129 = vmatmul.mubr.f32.gmra.mrb[0].mxu0 %v1062
    %v1130 = vpop.f32.mrb[0].mxu0
    %v1131 = vadd.f32 0.0, %v1130
    %v1132 = vpop.f32.mrb[0].mxu0
    %1133 = vdwg.mxu0
    %v1135 = vrot.slane %v1131, 2
    %v1137 = vadd.f32 %v319, %v1135
    %v1138 = vxor.u32 %v1137, 2147483648
    %v1139 = vmul.f32 %v1138, 1.442695
    %v1140 = vpow.pop %v1139
    %v1141 = vadd.f32 %v1140, 1.0
    %v1142 = vrcp.pop %v1141
    %v1143 = vmul.f32 1.0, %v1142
    %v1144 = vtanh.pop %v1137
    %v1146 = vrot.slane %v1051, 6
    %v1148 = vmul.f32 %v1143, %v1146
    %1150 = vrot.lane.b32.xlu0 %v1144, 32
    %v1151 = vpop.permute.xlu0 %1150
    %v1153 = vmul.f32 %v1143, %v1151
    %1155 = vrot.lane.b32.xlu0 %v1153, 32
    %v1156 = vpop.permute.xlu0 %1155
    %v1158 = vadd.f32 %v1148, %v1156
    %v1159 = vtanh.pop %v1158
    %1161 = vrot.lane.b32.xlu0 %v1159, 32
    %v1162 = vpop.permute.xlu0 %1161
    %v1164 = vmul.f32 %v1143, %v1162
    %v1165 = vsel %vm208, %v420, %v526
    %v1166 = vsel %vm212, %v1165, %v633
    %v1167 = vsel %vm216, %v1166, %v740
    %v1168 = vsel %vm208, %v844, %v950
    %v1169 = vsel %vm212, %v1168, %v1057
    %v1170 = vsel %vm216, %v1169, %v1164
    %v1171 = vld [vmem:[#allocation6] sm:$0xff]
    %v1172 = vld [vmem:[#allocation6 + $0x8] sm:$0xff]
    %v1173 = vld [vmem:[#allocation6 + $0x10] sm:$0xff]
    %v1174 = vld [vmem:[#allocation6 + $0x18] sm:$0xff]
    %v1175 = vld [vmem:[#allocation7] sm:$0xff]
    %v1176 = vld [vmem:[#allocation7 + $0x8] sm:$0xff]
    %v1177 = vld [vmem:[#allocation7 + $0x10] sm:$0xff]
    %v1178 = vld [vmem:[#allocation7 + $0x18] sm:$0xff]
    %v1179 = vld [vmem:[#allocation9] sm:$0x1]
    %v1181 = vlaneseq
    %v1182 = vshrl.u32 %v1181, 7
    %v1183 = vsub.s32 0, %v1182
    %v1184 = vrot.slane %v1179, %v1183
    %1188 = vrot.lane.b32.xlu0 %v1167, 64
    %v1189 = vpop.permute.xlu0 %1188
    %1190 = vrot.lane.b32.xlu0 %v1170, 64
    %v1191 = vpop.permute.xlu0 %1190
    %v1192 = vsel %vm322, %v1189, 0
    %v1194 = vsel %vm322, %v1191, 0
    %1196 = vmatprep.subr.mxu0 0.0
    %1197 = vmatpush1.msra.mxu0 %v1171
    %1198 = vmatprep.subr.mxu0 0.0
    %1199 = vmatpush1.msra.mxu0 %v1172
    %1200 = vmatprep.subr.mxu0 0.0
    %1201 = vmatpush1.msra.mxu0 %v1173
    %1202 = vmatprep.subr.mxu0 0.0
    %1203 = vmatpush1.msra.mxu0 %v1174
    %1204 = vmatprep.subr.mxu0 0.0
    %1205 = vmatpush1.msra.mxu0 0.0
    %1206 = vmatprep.subr.mxu0 0.0
    %1207 = vmatpush1.msra.mxu0 0.0
    %1208 = vmatprep.subr.mxu0 0.0
    %1209 = vmatpush1.msra.mxu0 0.0
    %1210 = vmatprep.subr.mxu0 0.0
    %1211 = vmatpush1.msra.mxu0 0.0
    %1212 = vmatprep.subr.mxu0 0.0
    %1213 = vmatpush1.msra.mxu0 0.0
    %1214 = vmatprep.subr.mxu0 0.0
    %1215 = vmatpush1.msra.mxu0 0.0
    %1216 = vmatprep.subr.mxu0 0.0
    %1217 = vmatpush1.msra.mxu0 0.0
    %1218 = vmatprep.subr.mxu0 0.0
    %1219 = vmatpush1.msra.mxu0 0.0
    %1220 = vmatprep.subr.mxu0 0.0
    %1221 = vmatpush1.msra.mxu0 0.0
    %1222 = vmatprep.subr.mxu0 0.0
    %1223 = vmatpush1.msra.mxu0 0.0
    %1224 = vmatprep.subr.mxu0 0.0
    %1225 = vmatpush1.msra.mxu0 0.0
    %1226 = vmatprep.subr.mxu0 0.0
    %1227 = vmatpush1.msra.mxu0 0.0
    %1228 = vmatprep.subr.mxu0 0.0
    %1229 = vmatpush1.msra.mxu0 0.0
    %1230 = vmatprep.subr.mxu0 0.0
    %1231 = vmatpush1.msra.mxu0 0.0
    %1232 = vmatprep.subr.mxu0 0.0
    %1233 = vmatpush1.msra.mxu0 0.0
    %1234 = vmatprep.subr.mxu0 0.0
    %1235 = vmatpush1.msra.mxu0 0.0
    %1236 = vmatprep.subr.mxu0 0.0
    %1237 = vmatpush1.msra.mxu0 0.0
    %1238 = vmatprep.subr.mxu0 0.0
    %1239 = vmatpush1.msra.mxu0 0.0
    %1240 = vmatprep.subr.mxu0 0.0
    %1241 = vmatpush1.msra.mxu0 0.0
    %1242 = vmatprep.subr.mxu0 0.0
    %1243 = vmatpush1.msra.mxu0 0.0
    %1244 = vmatprep.subr.mxu0 0.0
    %1245 = vmatpush1.msra.mxu0 0.0
    %1246 = vmatprep.subr.mxu0 0.0
    %1247 = vmatpush1.msra.mxu0 0.0
    %1248 = vmatprep.subr.mxu0 0.0
    %1249 = vmatpush1.msra.mxu0 0.0
    %1250 = vmatprep.subr.mxu0 0.0
    %1251 = vmatpush1.msra.mxu0 0.0
    %1252 = vmatprep.subr.mxu0 0.0
    %1253 = vmatpush1.msra.mxu0 0.0
    %1254 = vmatprep.subr.mxu0 0.0
    %1255 = vmatpush1.msra.mxu0 0.0
    %1256 = vmatprep.subr.mxu0 0.0
    %1257 = vmatpush1.msra.mxu0 0.0
    %1258 = vmatprep.subr.mxu0 0.0
    %1259 = vmatpush1.msra.mxu0 0.0
    %1260 = vmatprep.mubr.f32.mxu0 0.0
    %1261 = vmatmul.mubr.f32.gmra.mrb[0].mxu0 %v1192
    %v1262 = vpop.f32.mrb[0].mxu0
    %v1263 = vadd.f32 %v1184, %v1262
    %v1264 = vpop.f32.mrb[0].mxu0
    %1265 = vmatprep.mubr.f32.mxu0 0.0
    %1266 = vmatmul.mubr.f32.gmra.mrb[0].mxu0 %v1194
    %v1267 = vpop.f32.mrb[0].mxu0
    %v1268 = vadd.f32 %v1184, %v1267
    %v1269 = vpop.f32.mrb[0].mxu0
    %1270 = vdwg.mxu0
    %1271 = vmatprep.subr.mxu0 0.0
    %1272 = vmatpush1.msra.mxu0 %v1175
    %1273 = vmatprep.subr.mxu0 0.0
    %1274 = vmatpush1.msra.mxu0 %v1176
    %1275 = vmatprep.subr.mxu0 0.0
    %1276 = vmatpush1.msra.mxu0 %v1177
    %1277 = vmatprep.subr.mxu0 0.0
    %1278 = vmatpush1.msra.mxu0 %v1178
    %1279 = vmatprep.subr.mxu0 0.0
    %1280 = vmatpush1.msra.mxu0 0.0
    %1281 = vmatprep.subr.mxu0 0.0
    %1282 = vmatpush1.msra.mxu0 0.0
    %1283 = vmatprep.subr.mxu0 0.0
    %1284 = vmatpush1.msra.mxu0 0.0
    %1285 = vmatprep.subr.mxu0 0.0
    %1286 = vmatpush1.msra.mxu0 0.0
    %1287 = vmatprep.subr.mxu0 0.0
    %1288 = vmatpush1.msra.mxu0 0.0
    %1289 = vmatprep.subr.mxu0 0.0
    %1290 = vmatpush1.msra.mxu0 0.0
    %1291 = vmatprep.subr.mxu0 0.0
    %1292 = vmatpush1.msra.mxu0 0.0
    %1293 = vmatprep.subr.mxu0 0.0
    %1294 = vmatpush1.msra.mxu0 0.0
    %1295 = vmatprep.subr.mxu0 0.0
    %1296 = vmatpush1.msra.mxu0 0.0
    %1297 = vmatprep.subr.mxu0 0.0
    %1298 = vmatpush1.msra.mxu0 0.0
    %1299 = vmatprep.subr.mxu0 0.0
    %1300 = vmatpush1.msra.mxu0 0.0
    %1301 = vmatprep.subr.mxu0 0.0
    %1302 = vmatpush1.msra.mxu0 0.0
    %1303 = vmatprep.subr.mxu0 0.0
    %1304 = vmatpush1.msra.mxu0 0.0
    %1305 = vmatprep.subr.mxu0 0.0
    %1306 = vmatpush1.msra.mxu0 0.0
    %1307 = vmatprep.subr.mxu0 0.0
    %1308 = vmatpush1.msra.mxu0 0.0
    %1309 = vmatprep.subr.mxu0 0.0
    %1310 = vmatpush1.msra.mxu0 0.0
    %1311 = vmatprep.subr.mxu0 0.0
    %1312 = vmatpush1.msra.mxu0 0.0
    %1313 = vmatprep.subr.mxu0 0.0
    %1314 = vmatpush1.msra.mxu0 0.0
    %1315 = vmatprep.subr.mxu0 0.0
    %1316 = vmatpush1.msra.mxu0 0.0
    %1317 = vmatprep.subr.mxu0 0.0
    %1318 = vmatpush1.msra.mxu0 0.0
    %1319 = vmatprep.subr.mxu0 0.0
    %1320 = vmatpush1.msra.mxu0 0.0
    %1321 = vmatprep.subr.mxu0 0.0
    %1322 = vmatpush1.msra.mxu0 0.0
    %1323 = vmatprep.subr.mxu0 0.0
    %1324 = vmatpush1.msra.mxu0 0.0
    %1325 = vmatprep.subr.mxu0 0.0
    %1326 = vmatpush1.msra.mxu0 0.0
    %1327 = vmatprep.subr.mxu0 0.0
    %1328 = vmatpush1.msra.mxu0 0.0
    %1329 = vmatprep.subr.mxu0 0.0
    %1330 = vmatpush1.msra.mxu0 0.0
    %1331 = vmatprep.subr.mxu0 0.0
    %1332 = vmatpush1.msra.mxu0 0.0
    %1333 = vmatprep.subr.mxu0 0.0
    %1334 = vmatpush1.msra.mxu0 0.0
    %1335 = vmatprep.mubr.f32.mxu0 0.0
    %1336 = vmatmul.mubr.f32.gmra.mrb[0].mxu0 %v324
    %v1337 = vpop.f32.mrb[0].mxu0
    %v1338 = vadd.f32 0.0, %v1337
    %v1339 = vpop.f32.mrb[0].mxu0
    %1340 = vdwg.mxu0
    %v1341 = vadd.f32 %v1263, %v1338
    %v1342 = vxor.u32 %v1341, 2147483648
    %v1343 = vmul.f32 %v1342, 1.442695
    %v1344 = vpow.pop %v1343
    %v1345 = vadd.f32 %v1344, 1.0
    %v1346 = vrcp.pop %v1345
    %v1347 = vmul.f32 1.0, %v1346
    %v1348 = vtanh.pop %v1341
    %v1349 = vmul.f32 %v1347, 0.0
    %1351 = vrot.lane.b32.xlu0 %v1348, 32
    %v1352 = vpop.permute.xlu0 %1351
    %v1354 = vmul.f32 %v1347, %v1352
    %1356 = vrot.lane.b32.xlu0 %v1354, 32
    %v1357 = vpop.permute.xlu0 %1356
    %v1359 = vadd.f32 %v1349, %v1357
    %v1360 = vtanh.pop %v1359
    %1362 = vrot.lane.b32.xlu0 %v1360, 32
    %v1363 = vpop.permute.xlu0 %1362
    %v1365 = vmul.f32 %v1347, %v1363
    %1367 = vrot.lane.b32.xlu0 %v1365, 64
    %v1368 = vpop.permute.xlu0 %1367
    %v1369 = vsel %vm322, %v1368, 0
    %1371 = vmatprep.subr.mxu0 0.0
    %1372 = vmatpush1.msra.mxu0 %v1175
    %1373 = vmatprep.subr.mxu0 0.0
    %1374 = vmatpush1.msra.mxu0 %v1176
    %1375 = vmatprep.subr.mxu0 0.0
    %1376 = vmatpush1.msra.mxu0 %v1177
    %1377 = vmatprep.subr.mxu0 0.0
    %1378 = vmatpush1.msra.mxu0 %v1178
    %1379 = vmatprep.subr.mxu0 0.0
    %1380 = vmatpush1.msra.mxu0 0.0
    %1381 = vmatprep.subr.mxu0 0.0
    %1382 = vmatpush1.msra.mxu0 0.0
    %1383 = vmatprep.subr.mxu0 0.0
    %1384 = vmatpush1.msra.mxu0 0.0
    %1385 = vmatprep.subr.mxu0 0.0
    %1386 = vmatpush1.msra.mxu0 0.0
    %1387 = vmatprep.subr.mxu0 0.0
    %1388 = vmatpush1.msra.mxu0 0.0
    %1389 = vmatprep.subr.mxu0 0.0
    %1390 = vmatpush1.msra.mxu0 0.0
    %1391 = vmatprep.subr.mxu0 0.0
    %1392 = vmatpush1.msra.mxu0 0.0
    %1393 = vmatprep.subr.mxu0 0.0
    %1394 = vmatpush1.msra.mxu0 0.0
    %1395 = vmatprep.subr.mxu0 0.0
    %1396 = vmatpush1.msra.mxu0 0.0
    %1397 = vmatprep.subr.mxu0 0.0
    %1398 = vmatpush1.msra.mxu0 0.0
    %1399 = vmatprep.subr.mxu0 0.0
    %1400 = vmatpush1.msra.mxu0 0.0
    %1401 = vmatprep.subr.mxu0 0.0
    %1402 = vmatpush1.msra.mxu0 0.0
    %1403 = vmatprep.subr.mxu0 0.0
    %1404 = vmatpush1.msra.mxu0 0.0
    %1405 = vmatprep.subr.mxu0 0.0
    %1406 = vmatpush1.msra.mxu0 0.0
    %1407 = vmatprep.subr.mxu0 0.0
    %1408 = vmatpush1.msra.mxu0 0.0
    %1409 = vmatprep.subr.mxu0 0.0
    %1410 = vmatpush1.msra.mxu0 0.0
    %1411 = vmatprep.subr.mxu0 0.0
    %1412 = vmatpush1.msra.mxu0 0.0
    %1413 = vmatprep.subr.mxu0 0.0
    %1414 = vmatpush1.msra.mxu0 0.0
    %1415 = vmatprep.subr.mxu0 0.0
    %1416 = vmatpush1.msra.mxu0 0.0
    %1417 = vmatprep.subr.mxu0 0.0
    %1418 = vmatpush1.msra.mxu0 0.0
    %1419 = vmatprep.subr.mxu0 0.0
    %1420 = vmatpush1.msra.mxu0 0.0
    %1421 = vmatprep.subr.mxu0 0.0
    %1422 = vmatpush1.msra.mxu0 0.0
    %1423 = vmatprep.subr.mxu0 0.0
    %1424 = vmatpush1.msra.mxu0 0.0
    %1425 = vmatprep.subr.mxu0 0.0
    %1426 = vmatpush1.msra.mxu0 0.0
    %1427 = vmatprep.subr.mxu0 0.0
    %1428 = vmatpush1.msra.mxu0 0.0
    %1429 = vmatprep.subr.mxu0 0.0
    %1430 = vmatpush1.msra.mxu0 0.0
    %1431 = vmatprep.subr.mxu0 0.0
    %1432 = vmatpush1.msra.mxu0 0.0
    %1433 = vmatprep.subr.mxu0 0.0
    %1434 = vmatpush1.msra.mxu0 0.0
    %1435 = vmatprep.mubr.f32.mxu0 0.0
    %1436 = vmatmul.mubr.f32.gmra.mrb[0].mxu0 %v1369
    %v1437 = vpop.f32.mrb[0].mxu0
    %v1438 = vadd.f32 0.0, %v1437
    %v1439 = vpop.f32.mrb[0].mxu0
    %1440 = vdwg.mxu0
    %v1442 = vrot.slane %v1438, 6
    %v1444 = vadd.f32 %v1263, %v1442
    %v1445 = vxor.u32 %v1444, 2147483648
    %v1446 = vmul.f32 %v1445, 1.442695
    %v1447 = vpow.pop %v1446
    %v1448 = vadd.f32 %v1447, 1.0
    %v1449 = vrcp.pop %v1448
    %v1450 = vmul.f32 1.0, %v1449
    %v1451 = vtanh.pop %v1444
    %v1453 = vrot.slane %v1359, 6
    %v1455 = vmul.f32 %v1450, %v1453
    %1457 = vrot.lane.b32.xlu0 %v1451, 32
    %v1458 = vpop.permute.xlu0 %1457
    %v1460 = vmul.f32 %v1450, %v1458
    %1462 = vrot.lane.b32.xlu0 %v1460, 32
    %v1463 = vpop.permute.xlu0 %1462
    %v1465 = vadd.f32 %v1455, %v1463
    %v1466 = vtanh.pop %v1465
    %1468 = vrot.lane.b32.xlu0 %v1466, 32
    %v1469 = vpop.permute.xlu0 %1468
    %v1471 = vmul.f32 %v1450, %v1469
    %v1473 = vrot.slane %v1471, 2
    %1474 = vrot.lane.b32.xlu0 %v1473, 64
    %v1475 = vpop.permute.xlu0 %1474
    %v1476 = vsel %vm322, %v1475, 0
    %1478 = vmatprep.subr.mxu0 0.0
    %1479 = vmatpush1.msra.mxu0 %v1175
    %1480 = vmatprep.subr.mxu0 0.0
    %1481 = vmatpush1.msra.mxu0 %v1176
    %1482 = vmatprep.subr.mxu0 0.0
    %1483 = vmatpush1.msra.mxu0 %v1177
    %1484 = vmatprep.subr.mxu0 0.0
    %1485 = vmatpush1.msra.mxu0 %v1178
    %1486 = vmatprep.subr.mxu0 0.0
    %1487 = vmatpush1.msra.mxu0 0.0
    %1488 = vmatprep.subr.mxu0 0.0
    %1489 = vmatpush1.msra.mxu0 0.0
    %1490 = vmatprep.subr.mxu0 0.0
    %1491 = vmatpush1.msra.mxu0 0.0
    %1492 = vmatprep.subr.mxu0 0.0
    %1493 = vmatpush1.msra.mxu0 0.0
    %1494 = vmatprep.subr.mxu0 0.0
    %1495 = vmatpush1.msra.mxu0 0.0
    %1496 = vmatprep.subr.mxu0 0.0
    %1497 = vmatpush1.msra.mxu0 0.0
    %1498 = vmatprep.subr.mxu0 0.0
    %1499 = vmatpush1.msra.mxu0 0.0
    %1500 = vmatprep.subr.mxu0 0.0
    %1501 = vmatpush1.msra.mxu0 0.0
    %1502 = vmatprep.subr.mxu0 0.0
    %1503 = vmatpush1.msra.mxu0 0.0
    %1504 = vmatprep.subr.mxu0 0.0
    %1505 = vmatpush1.msra.mxu0 0.0
    %1506 = vmatprep.subr.mxu0 0.0
    %1507 = vmatpush1.msra.mxu0 0.0
    %1508 = vmatprep.subr.mxu0 0.0
    %1509 = vmatpush1.msra.mxu0 0.0
    %1510 = vmatprep.subr.mxu0 0.0
    %1511 = vmatpush1.msra.mxu0 0.0
    %1512 = vmatprep.subr.mxu0 0.0
    %1513 = vmatpush1.msra.mxu0 0.0
    %1514 = vmatprep.subr.mxu0 0.0
    %1515 = vmatpush1.msra.mxu0 0.0
    %1516 = vmatprep.subr.mxu0 0.0
    %1517 = vmatpush1.msra.mxu0 0.0
    %1518 = vmatprep.subr.mxu0 0.0
    %1519 = vmatpush1.msra.mxu0 0.0
    %1520 = vmatprep.subr.mxu0 0.0
    %1521 = vmatpush1.msra.mxu0 0.0
    %1522 = vmatprep.subr.mxu0 0.0
    %1523 = vmatpush1.msra.mxu0 0.0
    %1524 = vmatprep.subr.mxu0 0.0
    %1525 = vmatpush1.msra.mxu0 0.0
    %1526 = vmatprep.subr.mxu0 0.0
    %1527 = vmatpush1.msra.mxu0 0.0
    %1528 = vmatprep.subr.mxu0 0.0
    %1529 = vmatpush1.msra.mxu0 0.0
    %1530 = vmatprep.subr.mxu0 0.0
    %1531 = vmatpush1.msra.mxu0 0.0
    %1532 = vmatprep.subr.mxu0 0.0
    %1533 = vmatpush1.msra.mxu0 0.0
    %1534 = vmatprep.subr.mxu0 0.0
    %1535 = vmatpush1.msra.mxu0 0.0
    %1536 = vmatprep.subr.mxu0 0.0
    %1537 = vmatpush1.msra.mxu0 0.0
    %1538 = vmatprep.subr.mxu0 0.0
    %1539 = vmatpush1.msra.mxu0 0.0
    %1540 = vmatprep.subr.mxu0 0.0
    %1541 = vmatpush1.msra.mxu0 0.0
    %1542 = vmatprep.mubr.f32.mxu0 0.0
    %1543 = vmatmul.mubr.f32.gmra.mrb[0].mxu0 %v1476
    %v1544 = vpop.f32.mrb[0].mxu0
    %v1545 = vadd.f32 0.0, %v1544
    %v1546 = vpop.f32.mrb[0].mxu0
    %1547 = vdwg.mxu0
    %v1549 = vrot.slane %v1545, 4
    %v1551 = vadd.f32 %v1263, %v1549
    %v1552 = vxor.u32 %v1551, 2147483648
    %v1553 = vmul.f32 %v1552, 1.442695
    %v1554 = vpow.pop %v1553
    %v1555 = vadd.f32 %v1554, 1.0
    %v1556 = vrcp.pop %v1555
    %v1557 = vmul.f32 1.0, %v1556
    %v1558 = vtanh.pop %v1551
    %v1560 = vrot.slane %v1465, 6
    %v1562 = vmul.f32 %v1557, %v1560
    %1564 = vrot.lane.b32.xlu0 %v1558, 32
    %v1565 = vpop.permute.xlu0 %1564
    %v1567 = vmul.f32 %v1557, %v1565
    %1569 = vrot.lane.b32.xlu0 %v1567, 32
    %v1570 = vpop.permute.xlu0 %1569
    %v1572 = vadd.f32 %v1562, %v1570
    %v1573 = vtanh.pop %v1572
    %1575 = vrot.lane.b32.xlu0 %v1573, 32
    %v1576 = vpop.permute.xlu0 %1575
    %v1578 = vmul.f32 %v1557, %v1576
    %v1580 = vrot.slane %v1578, 4
    %1581 = vrot.lane.b32.xlu0 %v1580, 64
    %v1582 = vpop.permute.xlu0 %1581
    %v1583 = vsel %vm322, %v1582, 0
    %1585 = vmatprep.subr.mxu0 0.0
    %1586 = vmatpush1.msra.mxu0 %v1175
    %1587 = vmatprep.subr.mxu0 0.0
    %1588 = vmatpush1.msra.mxu0 %v1176
    %1589 = vmatprep.subr.mxu0 0.0
    %1590 = vmatpush1.msra.mxu0 %v1177
    %1591 = vmatprep.subr.mxu0 0.0
    %1592 = vmatpush1.msra.mxu0 %v1178
    %1593 = vmatprep.subr.mxu0 0.0
    %1594 = vmatpush1.msra.mxu0 0.0
    %1595 = vmatprep.subr.mxu0 0.0
    %1596 = vmatpush1.msra.mxu0 0.0
    %1597 = vmatprep.subr.mxu0 0.0
    %1598 = vmatpush1.msra.mxu0 0.0
    %1599 = vmatprep.subr.mxu0 0.0
    %1600 = vmatpush1.msra.mxu0 0.0
    %1601 = vmatprep.subr.mxu0 0.0
    %1602 = vmatpush1.msra.mxu0 0.0
    %1603 = vmatprep.subr.mxu0 0.0
    %1604 = vmatpush1.msra.mxu0 0.0
    %1605 = vmatprep.subr.mxu0 0.0
    %1606 = vmatpush1.msra.mxu0 0.0
    %1607 = vmatprep.subr.mxu0 0.0
    %1608 = vmatpush1.msra.mxu0 0.0
    %1609 = vmatprep.subr.mxu0 0.0
    %1610 = vmatpush1.msra.mxu0 0.0
    %1611 = vmatprep.subr.mxu0 0.0
    %1612 = vmatpush1.msra.mxu0 0.0
    %1613 = vmatprep.subr.mxu0 0.0
    %1614 = vmatpush1.msra.mxu0 0.0
    %1615 = vmatprep.subr.mxu0 0.0
    %1616 = vmatpush1.msra.mxu0 0.0
    %1617 = vmatprep.subr.mxu0 0.0
    %1618 = vmatpush1.msra.mxu0 0.0
    %1619 = vmatprep.subr.mxu0 0.0
    %1620 = vmatpush1.msra.mxu0 0.0
    %1621 = vmatprep.subr.mxu0 0.0
    %1622 = vmatpush1.msra.mxu0 0.0
    %1623 = vmatprep.subr.mxu0 0.0
    %1624 = vmatpush1.msra.mxu0 0.0
    %1625 = vmatprep.subr.mxu0 0.0
    %1626 = vmatpush1.msra.mxu0 0.0
    %1627 = vmatprep.subr.mxu0 0.0
    %1628 = vmatpush1.msra.mxu0 0.0
    %1629 = vmatprep.subr.mxu0 0.0
    %1630 = vmatpush1.msra.mxu0 0.0
    %1631 = vmatprep.subr.mxu0 0.0
    %1632 = vmatpush1.msra.mxu0 0.0
    %1633 = vmatprep.subr.mxu0 0.0
    %1634 = vmatpush1.msra.mxu0 0.0
    %1635 = vmatprep.subr.mxu0 0.0
    %1636 = vmatpush1.msra.mxu0 0.0
    %1637 = vmatprep.subr.mxu0 0.0
    %1638 = vmatpush1.msra.mxu0 0.0
    %1639 = vmatprep.subr.mxu0 0.0
    %1640 = vmatpush1.msra.mxu0 0.0
    %1641 = vmatprep.subr.mxu0 0.0
    %1642 = vmatpush1.msra.mxu0 0.0
    %1643 = vmatprep.subr.mxu0 0.0
    %1644 = vmatpush1.msra.mxu0 0.0
    %1645 = vmatprep.subr.mxu0 0.0
    %1646 = vmatpush1.msra.mxu0 0.0
    %1647 = vmatprep.subr.mxu0 0.0
    %1648 = vmatpush1.msra.mxu0 0.0
    %1649 = vmatprep.mubr.f32.mxu0 0.0
    %1650 = vmatmul.mubr.f32.gmra.mrb[0].mxu0 %v1583
    %v1651 = vpop.f32.mrb[0].mxu0
    %v1652 = vadd.f32 0.0, %v1651
    %v1653 = vpop.f32.mrb[0].mxu0
    %1654 = vdwg.mxu0
    %v1656 = vrot.slane %v1652, 2
    %v1658 = vadd.f32 %v1263, %v1656
    %v1659 = vxor.u32 %v1658, 2147483648
    %v1660 = vmul.f32 %v1659, 1.442695
    %v1661 = vpow.pop %v1660
    %v1662 = vadd.f32 %v1661, 1.0
    %v1663 = vrcp.pop %v1662
    %v1664 = vmul.f32 1.0, %v1663
    %v1665 = vtanh.pop %v1658
    %v1667 = vrot.slane %v1572, 6
    %v1669 = vmul.f32 %v1664, %v1667
    %1671 = vrot.lane.b32.xlu0 %v1665, 32
    %v1672 = vpop.permute.xlu0 %1671
    %v1674 = vmul.f32 %v1664, %v1672
    %1676 = vrot.lane.b32.xlu0 %v1674, 32
    %v1677 = vpop.permute.xlu0 %1676
    %v1679 = vadd.f32 %v1669, %v1677
    %v1680 = vtanh.pop %v1679
    %1682 = vrot.lane.b32.xlu0 %v1680, 32
    %v1683 = vpop.permute.xlu0 %1682
    %v1685 = vmul.f32 %v1664, %v1683
    %v1687 = vrot.slane %v1685, 6
    %1688 = vrot.lane.b32.xlu0 %v1687, 64
    %v1689 = vpop.permute.xlu0 %1688
    %v1690 = vsel %vm322, %v1689, 0
    %1692 = vmatprep.subr.mxu0 0.0
    %1693 = vmatpush1.msra.mxu0 %v1175
    %1694 = vmatprep.subr.mxu0 0.0
    %1695 = vmatpush1.msra.mxu0 %v1176
    %1696 = vmatprep.subr.mxu0 0.0
    %1697 = vmatpush1.msra.mxu0 %v1177
    %1698 = vmatprep.subr.mxu0 0.0
    %1699 = vmatpush1.msra.mxu0 %v1178
    %1700 = vmatprep.subr.mxu0 0.0
    %1701 = vmatpush1.msra.mxu0 0.0
    %1702 = vmatprep.subr.mxu0 0.0
    %1703 = vmatpush1.msra.mxu0 0.0
    %1704 = vmatprep.subr.mxu0 0.0
    %1705 = vmatpush1.msra.mxu0 0.0
    %1706 = vmatprep.subr.mxu0 0.0
    %1707 = vmatpush1.msra.mxu0 0.0
    %1708 = vmatprep.subr.mxu0 0.0
    %1709 = vmatpush1.msra.mxu0 0.0
    %1710 = vmatprep.subr.mxu0 0.0
    %1711 = vmatpush1.msra.mxu0 0.0
    %1712 = vmatprep.subr.mxu0 0.0
    %1713 = vmatpush1.msra.mxu0 0.0
    %1714 = vmatprep.subr.mxu0 0.0
    %1715 = vmatpush1.msra.mxu0 0.0
    %1716 = vmatprep.subr.mxu0 0.0
    %1717 = vmatpush1.msra.mxu0 0.0
    %1718 = vmatprep.subr.mxu0 0.0
    %1719 = vmatpush1.msra.mxu0 0.0
    %1720 = vmatprep.subr.mxu0 0.0
    %1721 = vmatpush1.msra.mxu0 0.0
    %1722 = vmatprep.subr.mxu0 0.0
    %1723 = vmatpush1.msra.mxu0 0.0
    %1724 = vmatprep.subr.mxu0 0.0
    %1725 = vmatpush1.msra.mxu0 0.0
    %1726 = vmatprep.subr.mxu0 0.0
    %1727 = vmatpush1.msra.mxu0 0.0
    %1728 = vmatprep.subr.mxu0 0.0
    %1729 = vmatpush1.msra.mxu0 0.0
    %1730 = vmatprep.subr.mxu0 0.0
    %1731 = vmatpush1.msra.mxu0 0.0
    %1732 = vmatprep.subr.mxu0 0.0
    %1733 = vmatpush1.msra.mxu0 0.0
    %1734 = vmatprep.subr.mxu0 0.0
    %1735 = vmatpush1.msra.mxu0 0.0
    %1736 = vmatprep.subr.mxu0 0.0
    %1737 = vmatpush1.msra.mxu0 0.0
    %1738 = vmatprep.subr.mxu0 0.0
    %1739 = vmatpush1.msra.mxu0 0.0
    %1740 = vmatprep.subr.mxu0 0.0
    %1741 = vmatpush1.msra.mxu0 0.0
    %1742 = vmatprep.subr.mxu0 0.0
    %1743 = vmatpush1.msra.mxu0 0.0
    %1744 = vmatprep.subr.mxu0 0.0
    %1745 = vmatpush1.msra.mxu0 0.0
    %1746 = vmatprep.subr.mxu0 0.0
    %1747 = vmatpush1.msra.mxu0 0.0
    %1748 = vmatprep.subr.mxu0 0.0
    %1749 = vmatpush1.msra.mxu0 0.0
    %1750 = vmatprep.subr.mxu0 0.0
    %1751 = vmatpush1.msra.mxu0 0.0
    %1752 = vmatprep.subr.mxu0 0.0
    %1753 = vmatpush1.msra.mxu0 0.0
    %1754 = vmatprep.subr.mxu0 0.0
    %1755 = vmatpush1.msra.mxu0 0.0
    %1756 = vmatprep.mubr.f32.mxu0 0.0
    %1757 = vmatmul.mubr.f32.gmra.mrb[0].mxu0 %v1690
    %v1758 = vpop.f32.mrb[0].mxu0
    %v1759 = vadd.f32 0.0, %v1758
    %v1760 = vpop.f32.mrb[0].mxu0
    %1761 = vdwg.mxu0
    %v1762 = vadd.f32 %v1268, %v1759
    %v1763 = vxor.u32 %v1762, 2147483648
    %v1764 = vmul.f32 %v1763, 1.442695
    %v1765 = vpow.pop %v1764
    %v1766 = vadd.f32 %v1765, 1.0
    %v1767 = vrcp.pop %v1766
    %v1768 = vmul.f32 1.0, %v1767
    %v1769 = vtanh.pop %v1762
    %v1771 = vrot.slane %v1679, 6
    %v1773 = vmul.f32 %v1768, %v1771
    %1775 = vrot.lane.b32.xlu0 %v1769, 32
    %v1776 = vpop.permute.xlu0 %1775
    %v1778 = vmul.f32 %v1768, %v1776
    %1780 = vrot.lane.b32.xlu0 %v1778, 32
    %v1781 = vpop.permute.xlu0 %1780
    %v1783 = vadd.f32 %v1773, %v1781
    %v1784 = vtanh.pop %v1783
    %1786 = vrot.lane.b32.xlu0 %v1784, 32
    %v1787 = vpop.permute.xlu0 %1786
    %v1789 = vmul.f32 %v1768, %v1787
    %1791 = vrot.lane.b32.xlu0 %v1789, 64
    %v1792 = vpop.permute.xlu0 %1791
    %v1793 = vsel %vm322, %v1792, 0
    %1795 = vmatprep.subr.mxu0 0.0
    %1796 = vmatpush1.msra.mxu0 %v1175
    %1797 = vmatprep.subr.mxu0 0.0
    %1798 = vmatpush1.msra.mxu0 %v1176
    %1799 = vmatprep.subr.mxu0 0.0
    %1800 = vmatpush1.msra.mxu0 %v1177
    %1801 = vmatprep.subr.mxu0 0.0
    %1802 = vmatpush1.msra.mxu0 %v1178
    %1803 = vmatprep.subr.mxu0 0.0
    %1804 = vmatpush1.msra.mxu0 0.0
    %1805 = vmatprep.subr.mxu0 0.0
    %1806 = vmatpush1.msra.mxu0 0.0
    %1807 = vmatprep.subr.mxu0 0.0
    %1808 = vmatpush1.msra.mxu0 0.0
    %1809 = vmatprep.subr.mxu0 0.0
    %1810 = vmatpush1.msra.mxu0 0.0
    %1811 = vmatprep.subr.mxu0 0.0
    %1812 = vmatpush1.msra.mxu0 0.0
    %1813 = vmatprep.subr.mxu0 0.0
    %1814 = vmatpush1.msra.mxu0 0.0
    %1815 = vmatprep.subr.mxu0 0.0
    %1816 = vmatpush1.msra.mxu0 0.0
    %1817 = vmatprep.subr.mxu0 0.0
    %1818 = vmatpush1.msra.mxu0 0.0
    %1819 = vmatprep.subr.mxu0 0.0
    %1820 = vmatpush1.msra.mxu0 0.0
    %1821 = vmatprep.subr.mxu0 0.0
    %1822 = vmatpush1.msra.mxu0 0.0
    %1823 = vmatprep.subr.mxu0 0.0
    %1824 = vmatpush1.msra.mxu0 0.0
    %1825 = vmatprep.subr.mxu0 0.0
    %1826 = vmatpush1.msra.mxu0 0.0
    %1827 = vmatprep.subr.mxu0 0.0
    %1828 = vmatpush1.msra.mxu0 0.0
    %1829 = vmatprep.subr.mxu0 0.0
    %1830 = vmatpush1.msra.mxu0 0.0
    %1831 = vmatprep.subr.mxu0 0.0
    %1832 = vmatpush1.msra.mxu0 0.0
    %1833 = vmatprep.subr.mxu0 0.0
    %1834 = vmatpush1.msra.mxu0 0.0
    %1835 = vmatprep.subr.mxu0 0.0
    %1836 = vmatpush1.msra.mxu0 0.0
    %1837 = vmatprep.subr.mxu0 0.0
    %1838 = vmatpush1.msra.mxu0 0.0
    %1839 = vmatprep.subr.mxu0 0.0
    %1840 = vmatpush1.msra.mxu0 0.0
    %1841 = vmatprep.subr.mxu0 0.0
    %1842 = vmatpush1.msra.mxu0 0.0
    %1843 = vmatprep.subr.mxu0 0.0
    %1844 = vmatpush1.msra.mxu0 0.0
    %1845 = vmatprep.subr.mxu0 0.0
    %1846 = vmatpush1.msra.mxu0 0.0
    %1847 = vmatprep.subr.mxu0 0.0
    %1848 = vmatpush1.msra.mxu0 0.0
    %1849 = vmatprep.subr.mxu0 0.0
    %1850 = vmatpush1.msra.mxu0 0.0
    %1851 = vmatprep.subr.mxu0 0.0
    %1852 = vmatpush1.msra.mxu0 0.0
    %1853 = vmatprep.subr.mxu0 0.0
    %1854 = vmatpush1.msra.mxu0 0.0
    %1855 = vmatprep.subr.mxu0 0.0
    %1856 = vmatpush1.msra.mxu0 0.0
    %1857 = vmatprep.subr.mxu0 0.0
    %1858 = vmatpush1.msra.mxu0 0.0
    %1859 = vmatprep.mubr.f32.mxu0 0.0
    %1860 = vmatmul.mubr.f32.gmra.mrb[0].mxu0 %v1793
    %v1861 = vpop.f32.mrb[0].mxu0
    %v1862 = vadd.f32 0.0, %v1861
    %v1863 = vpop.f32.mrb[0].mxu0
    %1864 = vdwg.mxu0
    %v1866 = vrot.slane %v1862, 6
    %v1868 = vadd.f32 %v1268, %v1866
    %v1869 = vxor.u32 %v1868, 2147483648
    %v1870 = vmul.f32 %v1869, 1.442695
    %v1871 = vpow.pop %v1870
    %v1872 = vadd.f32 %v1871, 1.0
    %v1873 = vrcp.pop %v1872
    %v1874 = vmul.f32 1.0, %v1873
    %v1875 = vtanh.pop %v1868
    %v1877 = vrot.slane %v1783, 6
    %v1879 = vmul.f32 %v1874, %v1877
    %1881 = vrot.lane.b32.xlu0 %v1875, 32
    %v1882 = vpop.permute.xlu0 %1881
    %v1884 = vmul.f32 %v1874, %v1882
    %1886 = vrot.lane.b32.xlu0 %v1884, 32
    %v1887 = vpop.permute.xlu0 %1886
    %v1889 = vadd.f32 %v1879, %v1887
    %v1890 = vtanh.pop %v1889
    %1892 = vrot.lane.b32.xlu0 %v1890, 32
    %v1893 = vpop.permute.xlu0 %1892
    %v1895 = vmul.f32 %v1874, %v1893
    %v1897 = vrot.slane %v1895, 2
    %1898 = vrot.lane.b32.xlu0 %v1897, 64
    %v1899 = vpop.permute.xlu0 %1898
    %v1900 = vsel %vm322, %v1899, 0
    %1902 = vmatprep.subr.mxu0 0.0
    %1903 = vmatpush1.msra.mxu0 %v1175
    %1904 = vmatprep.subr.mxu0 0.0
    %1905 = vmatpush1.msra.mxu0 %v1176
    %1906 = vmatprep.subr.mxu0 0.0
    %1907 = vmatpush1.msra.mxu0 %v1177
    %1908 = vmatprep.subr.mxu0 0.0
    %1909 = vmatpush1.msra.mxu0 %v1178
    %1910 = vmatprep.subr.mxu0 0.0
    %1911 = vmatpush1.msra.mxu0 0.0
    %1912 = vmatprep.subr.mxu0 0.0
    %1913 = vmatpush1.msra.mxu0 0.0
    %1914 = vmatprep.subr.mxu0 0.0
    %1915 = vmatpush1.msra.mxu0 0.0
    %1916 = vmatprep.subr.mxu0 0.0
    %1917 = vmatpush1.msra.mxu0 0.0
    %1918 = vmatprep.subr.mxu0 0.0
    %1919 = vmatpush1.msra.mxu0 0.0
    %1920 = vmatprep.subr.mxu0 0.0
    %1921 = vmatpush1.msra.mxu0 0.0
    %1922 = vmatprep.subr.mxu0 0.0
    %1923 = vmatpush1.msra.mxu0 0.0
    %1924 = vmatprep.subr.mxu0 0.0
    %1925 = vmatpush1.msra.mxu0 0.0
    %1926 = vmatprep.subr.mxu0 0.0
    %1927 = vmatpush1.msra.mxu0 0.0
    %1928 = vmatprep.subr.mxu0 0.0
    %1929 = vmatpush1.msra.mxu0 0.0
    %1930 = vmatprep.subr.mxu0 0.0
    %1931 = vmatpush1.msra.mxu0 0.0
    %1932 = vmatprep.subr.mxu0 0.0
    %1933 = vmatpush1.msra.mxu0 0.0
    %1934 = vmatprep.subr.mxu0 0.0
    %1935 = vmatpush1.msra.mxu0 0.0
    %1936 = vmatprep.subr.mxu0 0.0
    %1937 = vmatpush1.msra.mxu0 0.0
    %1938 = vmatprep.subr.mxu0 0.0
    %1939 = vmatpush1.msra.mxu0 0.0
    %1940 = vmatprep.subr.mxu0 0.0
    %1941 = vmatpush1.msra.mxu0 0.0
    %1942 = vmatprep.subr.mxu0 0.0
    %1943 = vmatpush1.msra.mxu0 0.0
    %1944 = vmatprep.subr.mxu0 0.0
    %1945 = vmatpush1.msra.mxu0 0.0
    %1946 = vmatprep.subr.mxu0 0.0
    %1947 = vmatpush1.msra.mxu0 0.0
    %1948 = vmatprep.subr.mxu0 0.0
    %1949 = vmatpush1.msra.mxu0 0.0
    %1950 = vmatprep.subr.mxu0 0.0
    %1951 = vmatpush1.msra.mxu0 0.0
    %1952 = vmatprep.subr.mxu0 0.0
    %1953 = vmatpush1.msra.mxu0 0.0
    %1954 = vmatprep.subr.mxu0 0.0
    %1955 = vmatpush1.msra.mxu0 0.0
    %1956 = vmatprep.subr.mxu0 0.0
    %1957 = vmatpush1.msra.mxu0 0.0
    %1958 = vmatprep.subr.mxu0 0.0
    %1959 = vmatpush1.msra.mxu0 0.0
    %1960 = vmatprep.subr.mxu0 0.0
    %1961 = vmatpush1.msra.mxu0 0.0
    %1962 = vmatprep.subr.mxu0 0.0
    %1963 = vmatpush1.msra.mxu0 0.0
    %1964 = vmatprep.subr.mxu0 0.0
    %1965 = vmatpush1.msra.mxu0 0.0
    %1966 = vmatprep.mubr.f32.mxu0 0.0
    %1967 = vmatmul.mubr.f32.gmra.mrb[0].mxu0 %v1900
    %v1968 = vpop.f32.mrb[0].mxu0
    %v1969 = vadd.f32 0.0, %v1968
    %v1970 = vpop.f32.mrb[0].mxu0
    %1971 = vdwg.mxu0
    %v1973 = vrot.slane %v1969, 4
    %v1975 = vadd.f32 %v1268, %v1973
    %v1976 = vxor.u32 %v1975, 2147483648
    %v1977 = vmul.f32 %v1976, 1.442695
    %v1978 = vpow.pop %v1977
    %v1979 = vadd.f32 %v1978, 1.0
    %v1980 = vrcp.pop %v1979
    %v1981 = vmul.f32 1.0, %v1980
    %v1982 = vtanh.pop %v1975
    %v1984 = vrot.slane %v1889, 6
    %v1986 = vmul.f32 %v1981, %v1984
    %1988 = vrot.lane.b32.xlu0 %v1982, 32
    %v1989 = vpop.permute.xlu0 %1988
    %v1991 = vmul.f32 %v1981, %v1989
    %1993 = vrot.lane.b32.xlu0 %v1991, 32
    %v1994 = vpop.permute.xlu0 %1993
    %v1996 = vadd.f32 %v1986, %v1994
    %v1997 = vtanh.pop %v1996
    %1999 = vrot.lane.b32.xlu0 %v1997, 32
    %v2000 = vpop.permute.xlu0 %1999
    %v2002 = vmul.f32 %v1981, %v2000
    %v2004 = vrot.slane %v2002, 4
    %2005 = vrot.lane.b32.xlu0 %v2004, 64
    %v2006 = vpop.permute.xlu0 %2005
    %v2007 = vsel %vm322, %v2006, 0
    %2009 = vmatprep.subr.mxu0 0.0
    %2010 = vmatpush1.msra.mxu0 %v1175
    %2011 = vmatprep.subr.mxu0 0.0
    %2012 = vmatpush1.msra.mxu0 %v1176
    %2013 = vmatprep.subr.mxu0 0.0
    %2014 = vmatpush1.msra.mxu0 %v1177
    %2015 = vmatprep.subr.mxu0 0.0
    %2016 = vmatpush1.msra.mxu0 %v1178
    %2017 = vmatprep.subr.mxu0 0.0
    %2018 = vmatpush1.msra.mxu0 0.0
    %2019 = vmatprep.subr.mxu0 0.0
    %2020 = vmatpush1.msra.mxu0 0.0
    %2021 = vmatprep.subr.mxu0 0.0
    %2022 = vmatpush1.msra.mxu0 0.0
    %2023 = vmatprep.subr.mxu0 0.0
    %2024 = vmatpush1.msra.mxu0 0.0
    %2025 = vmatprep.subr.mxu0 0.0
    %2026 = vmatpush1.msra.mxu0 0.0
    %2027 = vmatprep.subr.mxu0 0.0
    %2028 = vmatpush1.msra.mxu0 0.0
    %2029 = vmatprep.subr.mxu0 0.0
    %2030 = vmatpush1.msra.mxu0 0.0
    %2031 = vmatprep.subr.mxu0 0.0
    %2032 = vmatpush1.msra.mxu0 0.0
    %2033 = vmatprep.subr.mxu0 0.0
    %2034 = vmatpush1.msra.mxu0 0.0
    %2035 = vmatprep.subr.mxu0 0.0
    %2036 = vmatpush1.msra.mxu0 0.0
    %2037 = vmatprep.subr.mxu0 0.0
    %2038 = vmatpush1.msra.mxu0 0.0
    %2039 = vmatprep.subr.mxu0 0.0
    %2040 = vmatpush1.msra.mxu0 0.0
    %2041 = vmatprep.subr.mxu0 0.0
    %2042 = vmatpush1.msra.mxu0 0.0
    %2043 = vmatprep.subr.mxu0 0.0
    %2044 = vmatpush1.msra.mxu0 0.0
    %2045 = vmatprep.subr.mxu0 0.0
    %2046 = vmatpush1.msra.mxu0 0.0
    %2047 = vmatprep.subr.mxu0 0.0
    %2048 = vmatpush1.msra.mxu0 0.0
    %2049 = vmatprep.subr.mxu0 0.0
    %2050 = vmatpush1.msra.mxu0 0.0
    %2051 = vmatprep.subr.mxu0 0.0
    %2052 = vmatpush1.msra.mxu0 0.0
    %2053 = vmatprep.subr.mxu0 0.0
    %2054 = vmatpush1.msra.mxu0 0.0
    %2055 = vmatprep.subr.mxu0 0.0
    %2056 = vmatpush1.msra.mxu0 0.0
    %2057 = vmatprep.subr.mxu0 0.0
    %2058 = vmatpush1.msra.mxu0 0.0
    %2059 = vmatprep.subr.mxu0 0.0
    %2060 = vmatpush1.msra.mxu0 0.0
    %2061 = vmatprep.subr.mxu0 0.0
    %2062 = vmatpush1.msra.mxu0 0.0
    %2063 = vmatprep.subr.mxu0 0.0
    %2064 = vmatpush1.msra.mxu0 0.0
    %2065 = vmatprep.subr.mxu0 0.0
    %2066 = vmatpush1.msra.mxu0 0.0
    %2067 = vmatprep.subr.mxu0 0.0
    %2068 = vmatpush1.msra.mxu0 0.0
    %2069 = vmatprep.subr.mxu0 0.0
    %2070 = vmatpush1.msra.mxu0 0.0
    %2071 = vmatprep.subr.mxu0 0.0
    %2072 = vmatpush1.msra.mxu0 0.0
    %2073 = vmatprep.mubr.f32.mxu0 0.0
    %2074 = vmatmul.mubr.f32.gmra.mrb[0].mxu0 %v2007
    %v2075 = vpop.f32.mrb[0].mxu0
    %v2076 = vadd.f32 0.0, %v2075
    %v2077 = vpop.f32.mrb[0].mxu0
    %2078 = vdwg.mxu0
    %v2080 = vrot.slane %v2076, 2
    %v2082 = vadd.f32 %v1268, %v2080
    %v2083 = vxor.u32 %v2082, 2147483648
    %v2084 = vmul.f32 %v2083, 1.442695
    %v2085 = vpow.pop %v2084
    %v2086 = vadd.f32 %v2085, 1.0
    %v2087 = vrcp.pop %v2086
    %v2088 = vmul.f32 1.0, %v2087
    %v2089 = vtanh.pop %v2082
    %v2091 = vrot.slane %v1996, 6
    %v2093 = vmul.f32 %v2088, %v2091
    %2095 = vrot.lane.b32.xlu0 %v2089, 32
    %v2096 = vpop.permute.xlu0 %2095
    %v2098 = vmul.f32 %v2088, %v2096
    %2100 = vrot.lane.b32.xlu0 %v2098, 32
    %v2101 = vpop.permute.xlu0 %2100
    %v2103 = vadd.f32 %v2093, %v2101
    %v2104 = vtanh.pop %v2103
    %2106 = vrot.lane.b32.xlu0 %v2104, 32
    %v2107 = vpop.permute.xlu0 %2106
    %v2109 = vmul.f32 %v2088, %v2107
    %v2110 = vsel %vm208, %v1365, %v1471
    %v2111 = vsel %vm212, %v2110, %v1578
    %v2112 = vsel %vm216, %v2111, %v1685
    %v2113 = vsel %vm208, %v1789, %v1895
    %v2114 = vsel %vm212, %v2113, %v2002
    %v2115 = vsel %vm216, %v2114, %v2109
    %v2116 = vld [vmem:[#allocation10] sm:$0xff]
    %v2117 = vld [vmem:[#allocation10 + $0x8] sm:$0xff]
    %v2118 = vld [vmem:[#allocation10 + $0x10] sm:$0xff]
    %v2119 = vld [vmem:[#allocation10 + $0x18] sm:$0xff]
    %v2120 = vld [vmem:[#allocation12] sm:$0xff]
    %v2121 = vld [vmem:[#allocation12 + $0x8] sm:$0xff]
    %v2122 = vld [vmem:[#allocation12 + $0x10] sm:$0xff]
    %v2123 = vld [vmem:[#allocation12 + $0x18] sm:$0xff]
    %v2124 = vld [vmem:[#allocation13] sm:$0x1]
    %v2126 = vlaneseq
    %v2127 = vshrl.u32 %v2126, 7
    %v2128 = vsub.s32 0, %v2127
    %v2129 = vrot.slane %v2124, %v2128
    %2133 = vrot.lane.b32.xlu0 %v2112, 64
    %v2134 = vpop.permute.xlu0 %2133
    %2135 = vrot.lane.b32.xlu0 %v2115, 64
    %v2136 = vpop.permute.xlu0 %2135
    %v2137 = vsel %vm322, %v2134, 0
    %v2139 = vsel %vm322, %v2136, 0
    %2141 = vmatprep.subr.mxu0 0.0
    %2142 = vmatpush1.msra.mxu0 %v2116
    %2143 = vmatprep.subr.mxu0 0.0
    %2144 = vmatpush1.msra.mxu0 %v2117
    %2145 = vmatprep.subr.mxu0 0.0
    %2146 = vmatpush1.msra.mxu0 %v2118
    %2147 = vmatprep.subr.mxu0 0.0
    %2148 = vmatpush1.msra.mxu0 %v2119
    %2149 = vmatprep.subr.mxu0 0.0
    %2150 = vmatpush1.msra.mxu0 0.0
    %2151 = vmatprep.subr.mxu0 0.0
    %2152 = vmatpush1.msra.mxu0 0.0
    %2153 = vmatprep.subr.mxu0 0.0
    %2154 = vmatpush1.msra.mxu0 0.0
    %2155 = vmatprep.subr.mxu0 0.0
    %2156 = vmatpush1.msra.mxu0 0.0
    %2157 = vmatprep.subr.mxu0 0.0
    %2158 = vmatpush1.msra.mxu0 0.0
    %2159 = vmatprep.subr.mxu0 0.0
    %2160 = vmatpush1.msra.mxu0 0.0
    %2161 = vmatprep.subr.mxu0 0.0
    %2162 = vmatpush1.msra.mxu0 0.0
    %2163 = vmatprep.subr.mxu0 0.0
    %2164 = vmatpush1.msra.mxu0 0.0
    %2165 = vmatprep.subr.mxu0 0.0
    %2166 = vmatpush1.msra.mxu0 0.0
    %2167 = vmatprep.subr.mxu0 0.0
    %2168 = vmatpush1.msra.mxu0 0.0
    %2169 = vmatprep.subr.mxu0 0.0
    %2170 = vmatpush1.msra.mxu0 0.0
    %2171 = vmatprep.subr.mxu0 0.0
    %2172 = vmatpush1.msra.mxu0 0.0
    %2173 = vmatprep.subr.mxu0 0.0
    %2174 = vmatpush1.msra.mxu0 0.0
    %2175 = vmatprep.subr.mxu0 0.0
    %2176 = vmatpush1.msra.mxu0 0.0
    %2177 = vmatprep.subr.mxu0 0.0
    %2178 = vmatpush1.msra.mxu0 0.0
    %2179 = vmatprep.subr.mxu0 0.0
    %2180 = vmatpush1.msra.mxu0 0.0
    %2181 = vmatprep.subr.mxu0 0.0
    %2182 = vmatpush1.msra.mxu0 0.0
    %2183 = vmatprep.subr.mxu0 0.0
    %2184 = vmatpush1.msra.mxu0 0.0
    %2185 = vmatprep.subr.mxu0 0.0
    %2186 = vmatpush1.msra.mxu0 0.0
    %2187 = vmatprep.subr.mxu0 0.0
    %2188 = vmatpush1.msra.mxu0 0.0
    %2189 = vmatprep.subr.mxu0 0.0
    %2190 = vmatpush1.msra.mxu0 0.0
    %2191 = vmatprep.subr.mxu0 0.0
    %2192 = vmatpush1.msra.mxu0 0.0
    %2193 = vmatprep.subr.mxu0 0.0
    %2194 = vmatpush1.msra.mxu0 0.0
    %2195 = vmatprep.subr.mxu0 0.0
    %2196 = vmatpush1.msra.mxu0 0.0
    %2197 = vmatprep.subr.mxu0 0.0
    %2198 = vmatpush1.msra.mxu0 0.0
    %2199 = vmatprep.subr.mxu0 0.0
    %2200 = vmatpush1.msra.mxu0 0.0
    %2201 = vmatprep.subr.mxu0 0.0
    %2202 = vmatpush1.msra.mxu0 0.0
    %2203 = vmatprep.subr.mxu0 0.0
    %2204 = vmatpush1.msra.mxu0 0.0
    %2205 = vmatprep.mubr.f32.mxu0 0.0
    %2206 = vmatmul.mubr.f32.gmra.mrb[0].mxu0 %v2137
    %v2207 = vpop.f32.mrb[0].mxu0
    %v2208 = vadd.f32 %v2129, %v2207
    %v2209 = vpop.f32.mrb[0].mxu0
    %2210 = vmatprep.mubr.f32.mxu0 0.0
    %2211 = vmatmul.mubr.f32.gmra.mrb[0].mxu0 %v2139
    %v2212 = vpop.f32.mrb[0].mxu0
    %v2213 = vadd.f32 %v2129, %v2212
    %v2214 = vpop.f32.mrb[0].mxu0
    %2215 = vdwg.mxu0
    %2216 = vmatprep.subr.mxu0 0.0
    %2217 = vmatpush1.msra.mxu0 %v2120
    %2218 = vmatprep.subr.mxu0 0.0
    %2219 = vmatpush1.msra.mxu0 %v2121
    %2220 = vmatprep.subr.mxu0 0.0
    %2221 = vmatpush1.msra.mxu0 %v2122
    %2222 = vmatprep.subr.mxu0 0.0
    %2223 = vmatpush1.msra.mxu0 %v2123
    %2224 = vmatprep.subr.mxu0 0.0
    %2225 = vmatpush1.msra.mxu0 0.0
    %2226 = vmatprep.subr.mxu0 0.0
    %2227 = vmatpush1.msra.mxu0 0.0
    %2228 = vmatprep.subr.mxu0 0.0
    %2229 = vmatpush1.msra.mxu0 0.0
    %2230 = vmatprep.subr.mxu0 0.0
    %2231 = vmatpush1.msra.mxu0 0.0
    %2232 = vmatprep.subr.mxu0 0.0
    %2233 = vmatpush1.msra.mxu0 0.0
    %2234 = vmatprep.subr.mxu0 0.0
    %2235 = vmatpush1.msra.mxu0 0.0
    %2236 = vmatprep.subr.mxu0 0.0
    %2237 = vmatpush1.msra.mxu0 0.0
    %2238 = vmatprep.subr.mxu0 0.0
    %2239 = vmatpush1.msra.mxu0 0.0
    %2240 = vmatprep.subr.mxu0 0.0
    %2241 = vmatpush1.msra.mxu0 0.0
    %2242 = vmatprep.subr.mxu0 0.0
    %2243 = vmatpush1.msra.mxu0 0.0
    %2244 = vmatprep.subr.mxu0 0.0
    %2245 = vmatpush1.msra.mxu0 0.0
    %2246 = vmatprep.subr.mxu0 0.0
    %2247 = vmatpush1.msra.mxu0 0.0
    %2248 = vmatprep.subr.mxu0 0.0
    %2249 = vmatpush1.msra.mxu0 0.0
    %2250 = vmatprep.subr.mxu0 0.0
    %2251 = vmatpush1.msra.mxu0 0.0
    %2252 = vmatprep.subr.mxu0 0.0
    %2253 = vmatpush1.msra.mxu0 0.0
    %2254 = vmatprep.subr.mxu0 0.0
    %2255 = vmatpush1.msra.mxu0 0.0
    %2256 = vmatprep.subr.mxu0 0.0
    %2257 = vmatpush1.msra.mxu0 0.0
    %2258 = vmatprep.subr.mxu0 0.0
    %2259 = vmatpush1.msra.mxu0 0.0
    %2260 = vmatprep.subr.mxu0 0.0
    %2261 = vmatpush1.msra.mxu0 0.0
    %2262 = vmatprep.subr.mxu0 0.0
    %2263 = vmatpush1.msra.mxu0 0.0
    %2264 = vmatprep.subr.mxu0 0.0
    %2265 = vmatpush1.msra.mxu0 0.0
    %2266 = vmatprep.subr.mxu0 0.0
    %2267 = vmatpush1.msra.mxu0 0.0
    %2268 = vmatprep.subr.mxu0 0.0
    %2269 = vmatpush1.msra.mxu0 0.0
    %2270 = vmatprep.subr.mxu0 0.0
    %2271 = vmatpush1.msra.mxu0 0.0
    %2272 = vmatprep.subr.mxu0 0.0
    %2273 = vmatpush1.msra.mxu0 0.0
    %2274 = vmatprep.subr.mxu0 0.0
    %2275 = vmatpush1.msra.mxu0 0.0
    %2276 = vmatprep.subr.mxu0 0.0
    %2277 = vmatpush1.msra.mxu0 0.0
    %2278 = vmatprep.subr.mxu0 0.0
    %2279 = vmatpush1.msra.mxu0 0.0
    %2280 = vmatprep.mubr.f32.mxu0 0.0
    %2281 = vmatmul.mubr.f32.gmra.mrb[0].mxu0 %v324
    %v2282 = vpop.f32.mrb[0].mxu0
    %v2283 = vadd.f32 0.0, %v2282
    %v2284 = vpop.f32.mrb[0].mxu0
    %2285 = vdwg.mxu0
    %v2286 = vadd.f32 %v2208, %v2283
    %v2287 = vxor.u32 %v2286, 2147483648
    %v2288 = vmul.f32 %v2287, 1.442695
    %v2289 = vpow.pop %v2288
    %v2290 = vadd.f32 %v2289, 1.0
    %v2291 = vrcp.pop %v2290
    %v2292 = vmul.f32 1.0, %v2291
    %v2293 = vtanh.pop %v2286
    %v2294 = vmul.f32 %v2292, 0.0
    %2296 = vrot.lane.b32.xlu0 %v2293, 32
    %v2297 = vpop.permute.xlu0 %2296
    %v2299 = vmul.f32 %v2292, %v2297
    %2301 = vrot.lane.b32.xlu0 %v2299, 32
    %v2302 = vpop.permute.xlu0 %2301
    %v2304 = vadd.f32 %v2294, %v2302
    %v2305 = vtanh.pop %v2304
    %2307 = vrot.lane.b32.xlu0 %v2305, 32
    %v2308 = vpop.permute.xlu0 %2307
    %v2310 = vmul.f32 %v2292, %v2308
    %2312 = vrot.lane.b32.xlu0 %v2310, 64
    %v2313 = vpop.permute.xlu0 %2312
    %v2314 = vsel %vm322, %v2313, 0
    %2316 = vmatprep.subr.mxu0 0.0
    %2317 = vmatpush1.msra.mxu0 %v2120
    %2318 = vmatprep.subr.mxu0 0.0
    %2319 = vmatpush1.msra.mxu0 %v2121
    %2320 = vmatprep.subr.mxu0 0.0
    %2321 = vmatpush1.msra.mxu0 %v2122
    %2322 = vmatprep.subr.mxu0 0.0
    %2323 = vmatpush1.msra.mxu0 %v2123
    %2324 = vmatprep.subr.mxu0 0.0
    %2325 = vmatpush1.msra.mxu0 0.0
    %2326 = vmatprep.subr.mxu0 0.0
    %2327 = vmatpush1.msra.mxu0 0.0
    %2328 = vmatprep.subr.mxu0 0.0
    %2329 = vmatpush1.msra.mxu0 0.0
    %2330 = vmatprep.subr.mxu0 0.0
    %2331 = vmatpush1.msra.mxu0 0.0
    %2332 = vmatprep.subr.mxu0 0.0
    %2333 = vmatpush1.msra.mxu0 0.0
    %2334 = vmatprep.subr.mxu0 0.0
    %2335 = vmatpush1.msra.mxu0 0.0
    %2336 = vmatprep.subr.mxu0 0.0
    %2337 = vmatpush1.msra.mxu0 0.0
    %2338 = vmatprep.subr.mxu0 0.0
    %2339 = vmatpush1.msra.mxu0 0.0
    %2340 = vmatprep.subr.mxu0 0.0
    %2341 = vmatpush1.msra.mxu0 0.0
    %2342 = vmatprep.subr.mxu0 0.0
    %2343 = vmatpush1.msra.mxu0 0.0
    %2344 = vmatprep.subr.mxu0 0.0
    %2345 = vmatpush1.msra.mxu0 0.0
    %2346 = vmatprep.subr.mxu0 0.0
    %2347 = vmatpush1.msra.mxu0 0.0
    %2348 = vmatprep.subr.mxu0 0.0
    %2349 = vmatpush1.msra.mxu0 0.0
    %2350 = vmatprep.subr.mxu0 0.0
    %2351 = vmatpush1.msra.mxu0 0.0
    %2352 = vmatprep.subr.mxu0 0.0
    %2353 = vmatpush1.msra.mxu0 0.0
    %2354 = vmatprep.subr.mxu0 0.0
    %2355 = vmatpush1.msra.mxu0 0.0
    %2356 = vmatprep.subr.mxu0 0.0
    %2357 = vmatpush1.msra.mxu0 0.0
    %2358 = vmatprep.subr.mxu0 0.0
    %2359 = vmatpush1.msra.mxu0 0.0
    %2360 = vmatprep.subr.mxu0 0.0
    %2361 = vmatpush1.msra.mxu0 0.0
    %2362 = vmatprep.subr.mxu0 0.0
    %2363 = vmatpush1.msra.mxu0 0.0
    %2364 = vmatprep.subr.mxu0 0.0
    %2365 = vmatpush1.msra.mxu0 0.0
    %2366 = vmatprep.subr.mxu0 0.0
    %2367 = vmatpush1.msra.mxu0 0.0
    %2368 = vmatprep.subr.mxu0 0.0
    %2369 = vmatpush1.msra.mxu0 0.0
    %2370 = vmatprep.subr.mxu0 0.0
    %2371 = vmatpush1.msra.mxu0 0.0
    %2372 = vmatprep.subr.mxu0 0.0
    %2373 = vmatpush1.msra.mxu0 0.0
    %2374 = vmatprep.subr.mxu0 0.0
    %2375 = vmatpush1.msra.mxu0 0.0
    %2376 = vmatprep.subr.mxu0 0.0
    %2377 = vmatpush1.msra.mxu0 0.0
    %2378 = vmatprep.subr.mxu0 0.0
    %2379 = vmatpush1.msra.mxu0 0.0
    %2380 = vmatprep.mubr.f32.mxu0 0.0
    %2381 = vmatmul.mubr.f32.gmra.mrb[0].mxu0 %v2314
    %v2382 = vpop.f32.mrb[0].mxu0
    %v2383 = vadd.f32 0.0, %v2382
    %v2384 = vpop.f32.mrb[0].mxu0
    %2385 = vdwg.mxu0
    %v2387 = vrot.slane %v2383, 6
    %v2389 = vadd.f32 %v2208, %v2387
    %v2390 = vxor.u32 %v2389, 2147483648
    %v2391 = vmul.f32 %v2390, 1.442695
    %v2392 = vpow.pop %v2391
    %v2393 = vadd.f32 %v2392, 1.0
    %v2394 = vrcp.pop %v2393
    %v2395 = vmul.f32 1.0, %v2394
    %v2396 = vtanh.pop %v2389
    %v2398 = vrot.slane %v2304, 6
    %v2400 = vmul.f32 %v2395, %v2398
    %2402 = vrot.lane.b32.xlu0 %v2396, 32
    %v2403 = vpop.permute.xlu0 %2402
    %v2405 = vmul.f32 %v2395, %v2403
    %2407 = vrot.lane.b32.xlu0 %v2405, 32
    %v2408 = vpop.permute.xlu0 %2407
    %v2410 = vadd.f32 %v2400, %v2408
    %v2411 = vtanh.pop %v2410
    %2413 = vrot.lane.b32.xlu0 %v2411, 32
    %v2414 = vpop.permute.xlu0 %2413
    %v2416 = vmul.f32 %v2395, %v2414
    %v2418 = vrot.slane %v2416, 2
    %2419 = vrot.lane.b32.xlu0 %v2418, 64
    %v2420 = vpop.permute.xlu0 %2419
    %v2421 = vsel %vm322, %v2420, 0
    %2423 = vmatprep.subr.mxu0 0.0
    %2424 = vmatpush1.msra.mxu0 %v2120
    %2425 = vmatprep.subr.mxu0 0.0
    %2426 = vmatpush1.msra.mxu0 %v2121
    %2427 = vmatprep.subr.mxu0 0.0
    %2428 = vmatpush1.msra.mxu0 %v2122
    %2429 = vmatprep.subr.mxu0 0.0
    %2430 = vmatpush1.msra.mxu0 %v2123
    %2431 = vmatprep.subr.mxu0 0.0
    %2432 = vmatpush1.msra.mxu0 0.0
    %2433 = vmatprep.subr.mxu0 0.0
    %2434 = vmatpush1.msra.mxu0 0.0
    %2435 = vmatprep.subr.mxu0 0.0
    %2436 = vmatpush1.msra.mxu0 0.0
    %2437 = vmatprep.subr.mxu0 0.0
    %2438 = vmatpush1.msra.mxu0 0.0
    %2439 = vmatprep.subr.mxu0 0.0
    %2440 = vmatpush1.msra.mxu0 0.0
    %2441 = vmatprep.subr.mxu0 0.0
    %2442 = vmatpush1.msra.mxu0 0.0
    %2443 = vmatprep.subr.mxu0 0.0
    %2444 = vmatpush1.msra.mxu0 0.0
    %2445 = vmatprep.subr.mxu0 0.0
    %2446 = vmatpush1.msra.mxu0 0.0
    %2447 = vmatprep.subr.mxu0 0.0
    %2448 = vmatpush1.msra.mxu0 0.0
    %2449 = vmatprep.subr.mxu0 0.0
    %2450 = vmatpush1.msra.mxu0 0.0
    %2451 = vmatprep.subr.mxu0 0.0
    %2452 = vmatpush1.msra.mxu0 0.0
    %2453 = vmatprep.subr.mxu0 0.0
    %2454 = vmatpush1.msra.mxu0 0.0
    %2455 = vmatprep.subr.mxu0 0.0
    %2456 = vmatpush1.msra.mxu0 0.0
    %2457 = vmatprep.subr.mxu0 0.0
    %2458 = vmatpush1.msra.mxu0 0.0
    %2459 = vmatprep.subr.mxu0 0.0
    %2460 = vmatpush1.msra.mxu0 0.0
    %2461 = vmatprep.subr.mxu0 0.0
    %2462 = vmatpush1.msra.mxu0 0.0
    %2463 = vmatprep.subr.mxu0 0.0
    %2464 = vmatpush1.msra.mxu0 0.0
    %2465 = vmatprep.subr.mxu0 0.0
    %2466 = vmatpush1.msra.mxu0 0.0
    %2467 = vmatprep.subr.mxu0 0.0
    %2468 = vmatpush1.msra.mxu0 0.0
    %2469 = vmatprep.subr.mxu0 0.0
    %2470 = vmatpush1.msra.mxu0 0.0
    %2471 = vmatprep.subr.mxu0 0.0
    %2472 = vmatpush1.msra.mxu0 0.0
    %2473 = vmatprep.subr.mxu0 0.0
    %2474 = vmatpush1.msra.mxu0 0.0
    %2475 = vmatprep.subr.mxu0 0.0
    %2476 = vmatpush1.msra.mxu0 0.0
    %2477 = vmatprep.subr.mxu0 0.0
    %2478 = vmatpush1.msra.mxu0 0.0
    %2479 = vmatprep.subr.mxu0 0.0
    %2480 = vmatpush1.msra.mxu0 0.0
    %2481 = vmatprep.subr.mxu0 0.0
    %2482 = vmatpush1.msra.mxu0 0.0
    %2483 = vmatprep.subr.mxu0 0.0
    %2484 = vmatpush1.msra.mxu0 0.0
    %2485 = vmatprep.subr.mxu0 0.0
    %2486 = vmatpush1.msra.mxu0 0.0
    %2487 = vmatprep.mubr.f32.mxu0 0.0
    %2488 = vmatmul.mubr.f32.gmra.mrb[0].mxu0 %v2421
    %v2489 = vpop.f32.mrb[0].mxu0
    %v2490 = vadd.f32 0.0, %v2489
    %v2491 = vpop.f32.mrb[0].mxu0
    %2492 = vdwg.mxu0
    %v2494 = vrot.slane %v2490, 4
    %v2496 = vadd.f32 %v2208, %v2494
    %v2497 = vxor.u32 %v2496, 2147483648
    %v2498 = vmul.f32 %v2497, 1.442695
    %v2499 = vpow.pop %v2498
    %v2500 = vadd.f32 %v2499, 1.0
    %v2501 = vrcp.pop %v2500
    %v2502 = vmul.f32 1.0, %v2501
    %v2503 = vtanh.pop %v2496
    %v2505 = vrot.slane %v2410, 6
    %v2507 = vmul.f32 %v2502, %v2505
    %2509 = vrot.lane.b32.xlu0 %v2503, 32
    %v2510 = vpop.permute.xlu0 %2509
    %v2512 = vmul.f32 %v2502, %v2510
    %2514 = vrot.lane.b32.xlu0 %v2512, 32
    %v2515 = vpop.permute.xlu0 %2514
    %v2517 = vadd.f32 %v2507, %v2515
    %v2518 = vtanh.pop %v2517
    %2520 = vrot.lane.b32.xlu0 %v2518, 32
    %v2521 = vpop.permute.xlu0 %2520
    %v2523 = vmul.f32 %v2502, %v2521
    %v2525 = vrot.slane %v2523, 4
    %2526 = vrot.lane.b32.xlu0 %v2525, 64
    %v2527 = vpop.permute.xlu0 %2526
    %v2528 = vsel %vm322, %v2527, 0
    %2530 = vmatprep.subr.mxu0 0.0
    %2531 = vmatpush1.msra.mxu0 %v2120
    %2532 = vmatprep.subr.mxu0 0.0
    %2533 = vmatpush1.msra.mxu0 %v2121
    %2534 = vmatprep.subr.mxu0 0.0
    %2535 = vmatpush1.msra.mxu0 %v2122
    %2536 = vmatprep.subr.mxu0 0.0
    %2537 = vmatpush1.msra.mxu0 %v2123
    %2538 = vmatprep.subr.mxu0 0.0
    %2539 = vmatpush1.msra.mxu0 0.0
    %2540 = vmatprep.subr.mxu0 0.0
    %2541 = vmatpush1.msra.mxu0 0.0
    %2542 = vmatprep.subr.mxu0 0.0
    %2543 = vmatpush1.msra.mxu0 0.0
    %2544 = vmatprep.subr.mxu0 0.0
    %2545 = vmatpush1.msra.mxu0 0.0
    %2546 = vmatprep.subr.mxu0 0.0
    %2547 = vmatpush1.msra.mxu0 0.0
    %2548 = vmatprep.subr.mxu0 0.0
    %2549 = vmatpush1.msra.mxu0 0.0
    %2550 = vmatprep.subr.mxu0 0.0
    %2551 = vmatpush1.msra.mxu0 0.0
    %2552 = vmatprep.subr.mxu0 0.0
    %2553 = vmatpush1.msra.mxu0 0.0
    %2554 = vmatprep.subr.mxu0 0.0
    %2555 = vmatpush1.msra.mxu0 0.0
    %2556 = vmatprep.subr.mxu0 0.0
    %2557 = vmatpush1.msra.mxu0 0.0
    %2558 = vmatprep.subr.mxu0 0.0
    %2559 = vmatpush1.msra.mxu0 0.0
    %2560 = vmatprep.subr.mxu0 0.0
    %2561 = vmatpush1.msra.mxu0 0.0
    %2562 = vmatprep.subr.mxu0 0.0
    %2563 = vmatpush1.msra.mxu0 0.0
    %2564 = vmatprep.subr.mxu0 0.0
    %2565 = vmatpush1.msra.mxu0 0.0
    %2566 = vmatprep.subr.mxu0 0.0
    %2567 = vmatpush1.msra.mxu0 0.0
    %2568 = vmatprep.subr.mxu0 0.0
    %2569 = vmatpush1.msra.mxu0 0.0
    %2570 = vmatprep.subr.mxu0 0.0
    %2571 = vmatpush1.msra.mxu0 0.0
    %2572 = vmatprep.subr.mxu0 0.0
    %2573 = vmatpush1.msra.mxu0 0.0
    %2574 = vmatprep.subr.mxu0 0.0
    %2575 = vmatpush1.msra.mxu0 0.0
    %2576 = vmatprep.subr.mxu0 0.0
    %2577 = vmatpush1.msra.mxu0 0.0
    %2578 = vmatprep.subr.mxu0 0.0
    %2579 = vmatpush1.msra.mxu0 0.0
    %2580 = vmatprep.subr.mxu0 0.0
    %2581 = vmatpush1.msra.mxu0 0.0
    %2582 = vmatprep.subr.mxu0 0.0
    %2583 = vmatpush1.msra.mxu0 0.0
    %2584 = vmatprep.subr.mxu0 0.0
    %2585 = vmatpush1.msra.mxu0 0.0
    %2586 = vmatprep.subr.mxu0 0.0
    %2587 = vmatpush1.msra.mxu0 0.0
    %2588 = vmatprep.subr.mxu0 0.0
    %2589 = vmatpush1.msra.mxu0 0.0
    %2590 = vmatprep.subr.mxu0 0.0
    %2591 = vmatpush1.msra.mxu0 0.0
    %2592 = vmatprep.subr.mxu0 0.0
    %2593 = vmatpush1.msra.mxu0 0.0
    %2594 = vmatprep.mubr.f32.mxu0 0.0
    %2595 = vmatmul.mubr.f32.gmra.mrb[0].mxu0 %v2528
    %v2596 = vpop.f32.mrb[0].mxu0
    %v2597 = vadd.f32 0.0, %v2596
    %v2598 = vpop.f32.mrb[0].mxu0
    %2599 = vdwg.mxu0
    %v2601 = vrot.slane %v2597, 2
    %v2603 = vadd.f32 %v2208, %v2601
    %v2604 = vxor.u32 %v2603, 2147483648
    %v2605 = vmul.f32 %v2604, 1.442695
    %v2606 = vpow.pop %v2605
    %v2607 = vadd.f32 %v2606, 1.0
    %v2608 = vrcp.pop %v2607
    %v2609 = vmul.f32 1.0, %v2608
    %v2610 = vtanh.pop %v2603
    %v2612 = vrot.slane %v2517, 6
    %v2614 = vmul.f32 %v2609, %v2612
    %2616 = vrot.lane.b32.xlu0 %v2610, 32
    %v2617 = vpop.permute.xlu0 %2616
    %v2619 = vmul.f32 %v2609, %v2617
    %2621 = vrot.lane.b32.xlu0 %v2619, 32
    %v2622 = vpop.permute.xlu0 %2621
    %v2624 = vadd.f32 %v2614, %v2622
    %v2625 = vtanh.pop %v2624
    %2627 = vrot.lane.b32.xlu0 %v2625, 32
    %v2628 = vpop.permute.xlu0 %2627
    %v2630 = vmul.f32 %v2609, %v2628
    %v2632 = vrot.slane %v2630, 6
    %2633 = vrot.lane.b32.xlu0 %v2632, 64
    %v2634 = vpop.permute.xlu0 %2633
    %v2635 = vsel %vm322, %v2634, 0
    %2637 = vmatprep.subr.mxu0 0.0
    %2638 = vmatpush1.msra.mxu0 %v2120
    %2639 = vmatprep.subr.mxu0 0.0
    %2640 = vmatpush1.msra.mxu0 %v2121
    %2641 = vmatprep.subr.mxu0 0.0
    %2642 = vmatpush1.msra.mxu0 %v2122
    %2643 = vmatprep.subr.mxu0 0.0
    %2644 = vmatpush1.msra.mxu0 %v2123
    %2645 = vmatprep.subr.mxu0 0.0
    %2646 = vmatpush1.msra.mxu0 0.0
    %2647 = vmatprep.subr.mxu0 0.0
    %2648 = vmatpush1.msra.mxu0 0.0
    %2649 = vmatprep.subr.mxu0 0.0
    %2650 = vmatpush1.msra.mxu0 0.0
    %2651 = vmatprep.subr.mxu0 0.0
    %2652 = vmatpush1.msra.mxu0 0.0
    %2653 = vmatprep.subr.mxu0 0.0
    %2654 = vmatpush1.msra.mxu0 0.0
    %2655 = vmatprep.subr.mxu0 0.0
    %2656 = vmatpush1.msra.mxu0 0.0
    %2657 = vmatprep.subr.mxu0 0.0
    %2658 = vmatpush1.msra.mxu0 0.0
    %2659 = vmatprep.subr.mxu0 0.0
    %2660 = vmatpush1.msra.mxu0 0.0
    %2661 = vmatprep.subr.mxu0 0.0
    %2662 = vmatpush1.msra.mxu0 0.0
    %2663 = vmatprep.subr.mxu0 0.0
    %2664 = vmatpush1.msra.mxu0 0.0
    %2665 = vmatprep.subr.mxu0 0.0
    %2666 = vmatpush1.msra.mxu0 0.0
    %2667 = vmatprep.subr.mxu0 0.0
    %2668 = vmatpush1.msra.mxu0 0.0
    %2669 = vmatprep.subr.mxu0 0.0
    %2670 = vmatpush1.msra.mxu0 0.0
    %2671 = vmatprep.subr.mxu0 0.0
    %2672 = vmatpush1.msra.mxu0 0.0
    %2673 = vmatprep.subr.mxu0 0.0
    %2674 = vmatpush1.msra.mxu0 0.0
    %2675 = vmatprep.subr.mxu0 0.0
    %2676 = vmatpush1.msra.mxu0 0.0
    %2677 = vmatprep.subr.mxu0 0.0
    %2678 = vmatpush1.msra.mxu0 0.0
    %2679 = vmatprep.subr.mxu0 0.0
    %2680 = vmatpush1.msra.mxu0 0.0
    %2681 = vmatprep.subr.mxu0 0.0
    %2682 = vmatpush1.msra.mxu0 0.0
    %2683 = vmatprep.subr.mxu0 0.0
    %2684 = vmatpush1.msra.mxu0 0.0
    %2685 = vmatprep.subr.mxu0 0.0
    %2686 = vmatpush1.msra.mxu0 0.0
    %2687 = vmatprep.subr.mxu0 0.0
    %2688 = vmatpush1.msra.mxu0 0.0
    %2689 = vmatprep.subr.mxu0 0.0
    %2690 = vmatpush1.msra.mxu0 0.0
    %2691 = vmatprep.subr.mxu0 0.0
    %2692 = vmatpush1.msra.mxu0 0.0
    %2693 = vmatprep.subr.mxu0 0.0
    %2694 = vmatpush1.msra.mxu0 0.0
    %2695 = vmatprep.subr.mxu0 0.0
    %2696 = vmatpush1.msra.mxu0 0.0
    %2697 = vmatprep.subr.mxu0 0.0
    %2698 = vmatpush1.msra.mxu0 0.0
    %2699 = vmatprep.subr.mxu0 0.0
    %2700 = vmatpush1.msra.mxu0 0.0
    %2701 = vmatprep.mubr.f32.mxu0 0.0
    %2702 = vmatmul.mubr.f32.gmra.mrb[0].mxu0 %v2635
    %v2703 = vpop.f32.mrb[0].mxu0
    %v2704 = vadd.f32 0.0, %v2703
    %v2705 = vpop.f32.mrb[0].mxu0
    %2706 = vdwg.mxu0
    %v2707 = vadd.f32 %v2213, %v2704
    %v2708 = vxor.u32 %v2707, 2147483648
    %v2709 = vmul.f32 %v2708, 1.442695
    %v2710 = vpow.pop %v2709
    %v2711 = vadd.f32 %v2710, 1.0
    %v2712 = vrcp.pop %v2711
    %v2713 = vmul.f32 1.0, %v2712
    %v2714 = vtanh.pop %v2707
    %v2716 = vrot.slane %v2624, 6
    %v2718 = vmul.f32 %v2713, %v2716
    %2720 = vrot.lane.b32.xlu0 %v2714, 32
    %v2721 = vpop.permute.xlu0 %2720
    %v2723 = vmul.f32 %v2713, %v2721
    %2725 = vrot.lane.b32.xlu0 %v2723, 32
    %v2726 = vpop.permute.xlu0 %2725
    %v2728 = vadd.f32 %v2718, %v2726
    %v2729 = vtanh.pop %v2728
    %2731 = vrot.lane.b32.xlu0 %v2729, 32
    %v2732 = vpop.permute.xlu0 %2731
    %v2734 = vmul.f32 %v2713, %v2732
    %2736 = vrot.lane.b32.xlu0 %v2734, 64
    %v2737 = vpop.permute.xlu0 %2736
    %v2738 = vsel %vm322, %v2737, 0
    %2740 = vmatprep.subr.mxu0 0.0
    %2741 = vmatpush1.msra.mxu0 %v2120
    %2742 = vmatprep.subr.mxu0 0.0
    %2743 = vmatpush1.msra.mxu0 %v2121
    %2744 = vmatprep.subr.mxu0 0.0
    %2745 = vmatpush1.msra.mxu0 %v2122
    %2746 = vmatprep.subr.mxu0 0.0
    %2747 = vmatpush1.msra.mxu0 %v2123
    %2748 = vmatprep.subr.mxu0 0.0
    %2749 = vmatpush1.msra.mxu0 0.0
    %2750 = vmatprep.subr.mxu0 0.0
    %2751 = vmatpush1.msra.mxu0 0.0
    %2752 = vmatprep.subr.mxu0 0.0
    %2753 = vmatpush1.msra.mxu0 0.0
    %2754 = vmatprep.subr.mxu0 0.0
    %2755 = vmatpush1.msra.mxu0 0.0
    %2756 = vmatprep.subr.mxu0 0.0
    %2757 = vmatpush1.msra.mxu0 0.0
    %2758 = vmatprep.subr.mxu0 0.0
    %2759 = vmatpush1.msra.mxu0 0.0
    %2760 = vmatprep.subr.mxu0 0.0
    %2761 = vmatpush1.msra.mxu0 0.0
    %2762 = vmatprep.subr.mxu0 0.0
    %2763 = vmatpush1.msra.mxu0 0.0
    %2764 = vmatprep.subr.mxu0 0.0
    %2765 = vmatpush1.msra.mxu0 0.0
    %2766 = vmatprep.subr.mxu0 0.0
    %2767 = vmatpush1.msra.mxu0 0.0
    %2768 = vmatprep.subr.mxu0 0.0
    %2769 = vmatpush1.msra.mxu0 0.0
    %2770 = vmatprep.subr.mxu0 0.0
    %2771 = vmatpush1.msra.mxu0 0.0
    %2772 = vmatprep.subr.mxu0 0.0
    %2773 = vmatpush1.msra.mxu0 0.0
    %2774 = vmatprep.subr.mxu0 0.0
    %2775 = vmatpush1.msra.mxu0 0.0
    %2776 = vmatprep.subr.mxu0 0.0
    %2777 = vmatpush1.msra.mxu0 0.0
    %2778 = vmatprep.subr.mxu0 0.0
    %2779 = vmatpush1.msra.mxu0 0.0
    %2780 = vmatprep.subr.mxu0 0.0
    %2781 = vmatpush1.msra.mxu0 0.0
    %2782 = vmatprep.subr.mxu0 0.0
    %2783 = vmatpush1.msra.mxu0 0.0
    %2784 = vmatprep.subr.mxu0 0.0
    %2785 = vmatpush1.msra.mxu0 0.0
    %2786 = vmatprep.subr.mxu0 0.0
    %2787 = vmatpush1.msra.mxu0 0.0
    %2788 = vmatprep.subr.mxu0 0.0
    %2789 = vmatpush1.msra.mxu0 0.0
    %2790 = vmatprep.subr.mxu0 0.0
    %2791 = vmatpush1.msra.mxu0 0.0
    %2792 = vmatprep.subr.mxu0 0.0
    %2793 = vmatpush1.msra.mxu0 0.0
    %2794 = vmatprep.subr.mxu0 0.0
    %2795 = vmatpush1.msra.mxu0 0.0
    %2796 = vmatprep.subr.mxu0 0.0
    %2797 = vmatpush1.msra.mxu0 0.0
    %2798 = vmatprep.subr.mxu0 0.0
    %2799 = vmatpush1.msra.mxu0 0.0
    %2800 = vmatprep.subr.mxu0 0.0
    %2801 = vmatpush1.msra.mxu0 0.0
    %2802 = vmatprep.subr.mxu0 0.0
    %2803 = vmatpush1.msra.mxu0 0.0
    %2804 = vmatprep.mubr.f32.mxu0 0.0
    %2805 = vmatmul.mubr.f32.gmra.mrb[0].mxu0 %v2738
    %v2806 = vpop.f32.mrb[0].mxu0
    %v2807 = vadd.f32 0.0, %v2806
    %v2808 = vpop.f32.mrb[0].mxu0
    %2809 = vdwg.mxu0
    %v2811 = vrot.slane %v2807, 6
    %v2813 = vadd.f32 %v2213, %v2811
    %v2814 = vxor.u32 %v2813, 2147483648
    %v2815 = vmul.f32 %v2814, 1.442695
    %v2816 = vpow.pop %v2815
    %v2817 = vadd.f32 %v2816, 1.0
    %v2818 = vrcp.pop %v2817
    %v2819 = vmul.f32 1.0, %v2818
    %v2820 = vtanh.pop %v2813
    %v2822 = vrot.slane %v2728, 6
    %v2824 = vmul.f32 %v2819, %v2822
    %2826 = vrot.lane.b32.xlu0 %v2820, 32
    %v2827 = vpop.permute.xlu0 %2826
    %v2829 = vmul.f32 %v2819, %v2827
    %2831 = vrot.lane.b32.xlu0 %v2829, 32
    %v2832 = vpop.permute.xlu0 %2831
    %v2834 = vadd.f32 %v2824, %v2832
    %v2835 = vtanh.pop %v2834
    %2837 = vrot.lane.b32.xlu0 %v2835, 32
    %v2838 = vpop.permute.xlu0 %2837
    %v2840 = vmul.f32 %v2819, %v2838
    %v2842 = vrot.slane %v2840, 2
    %2843 = vrot.lane.b32.xlu0 %v2842, 64
    %v2844 = vpop.permute.xlu0 %2843
    %v2845 = vsel %vm322, %v2844, 0
    %2847 = vmatprep.subr.mxu0 0.0
    %2848 = vmatpush1.msra.mxu0 %v2120
    %2849 = vmatprep.subr.mxu0 0.0
    %2850 = vmatpush1.msra.mxu0 %v2121
    %2851 = vmatprep.subr.mxu0 0.0
    %2852 = vmatpush1.msra.mxu0 %v2122
    %2853 = vmatprep.subr.mxu0 0.0
    %2854 = vmatpush1.msra.mxu0 %v2123
    %2855 = vmatprep.subr.mxu0 0.0
    %2856 = vmatpush1.msra.mxu0 0.0
    %2857 = vmatprep.subr.mxu0 0.0
    %2858 = vmatpush1.msra.mxu0 0.0
    %2859 = vmatprep.subr.mxu0 0.0
    %2860 = vmatpush1.msra.mxu0 0.0
    %2861 = vmatprep.subr.mxu0 0.0
    %2862 = vmatpush1.msra.mxu0 0.0
    %2863 = vmatprep.subr.mxu0 0.0
    %2864 = vmatpush1.msra.mxu0 0.0
    %2865 = vmatprep.subr.mxu0 0.0
    %2866 = vmatpush1.msra.mxu0 0.0
    %2867 = vmatprep.subr.mxu0 0.0
    %2868 = vmatpush1.msra.mxu0 0.0
    %2869 = vmatprep.subr.mxu0 0.0
    %2870 = vmatpush1.msra.mxu0 0.0
    %2871 = vmatprep.subr.mxu0 0.0
    %2872 = vmatpush1.msra.mxu0 0.0
    %2873 = vmatprep.subr.mxu0 0.0
    %2874 = vmatpush1.msra.mxu0 0.0
    %2875 = vmatprep.subr.mxu0 0.0
    %2876 = vmatpush1.msra.mxu0 0.0
    %2877 = vmatprep.subr.mxu0 0.0
    %2878 = vmatpush1.msra.mxu0 0.0
    %2879 = vmatprep.subr.mxu0 0.0
    %2880 = vmatpush1.msra.mxu0 0.0
    %2881 = vmatprep.subr.mxu0 0.0
    %2882 = vmatpush1.msra.mxu0 0.0
    %2883 = vmatprep.subr.mxu0 0.0
    %2884 = vmatpush1.msra.mxu0 0.0
    %2885 = vmatprep.subr.mxu0 0.0
    %2886 = vmatpush1.msra.mxu0 0.0
    %2887 = vmatprep.subr.mxu0 0.0
    %2888 = vmatpush1.msra.mxu0 0.0
    %2889 = vmatprep.subr.mxu0 0.0
    %2890 = vmatpush1.msra.mxu0 0.0
    %2891 = vmatprep.subr.mxu0 0.0
    %2892 = vmatpush1.msra.mxu0 0.0
    %2893 = vmatprep.subr.mxu0 0.0
    %2894 = vmatpush1.msra.mxu0 0.0
    %2895 = vmatprep.subr.mxu0 0.0
    %2896 = vmatpush1.msra.mxu0 0.0
    %2897 = vmatprep.subr.mxu0 0.0
    %2898 = vmatpush1.msra.mxu0 0.0
    %2899 = vmatprep.subr.mxu0 0.0
    %2900 = vmatpush1.msra.mxu0 0.0
    %2901 = vmatprep.subr.mxu0 0.0
    %2902 = vmatpush1.msra.mxu0 0.0
    %2903 = vmatprep.subr.mxu0 0.0
    %2904 = vmatpush1.msra.mxu0 0.0
    %2905 = vmatprep.subr.mxu0 0.0
    %2906 = vmatpush1.msra.mxu0 0.0
    %2907 = vmatprep.subr.mxu0 0.0
    %2908 = vmatpush1.msra.mxu0 0.0
    %2909 = vmatprep.subr.mxu0 0.0
    %2910 = vmatpush1.msra.mxu0 0.0
    %2911 = vmatprep.mubr.f32.mxu0 0.0
    %2912 = vmatmul.mubr.f32.gmra.mrb[0].mxu0 %v2845
    %v2913 = vpop.f32.mrb[0].mxu0
    %v2914 = vadd.f32 0.0, %v2913
    %v2915 = vpop.f32.mrb[0].mxu0
    %2916 = vdwg.mxu0
    %v2918 = vrot.slane %v2914, 4
    %v2920 = vadd.f32 %v2213, %v2918
    %v2921 = vxor.u32 %v2920, 2147483648
    %v2922 = vmul.f32 %v2921, 1.442695
    %v2923 = vpow.pop %v2922
    %v2924 = vadd.f32 %v2923, 1.0
    %v2925 = vrcp.pop %v2924
    %v2926 = vmul.f32 1.0, %v2925
    %v2927 = vtanh.pop %v2920
    %v2929 = vrot.slane %v2834, 6
    %v2931 = vmul.f32 %v2926, %v2929
    %2933 = vrot.lane.b32.xlu0 %v2927, 32
    %v2934 = vpop.permute.xlu0 %2933
    %v2936 = vmul.f32 %v2926, %v2934
    %2938 = vrot.lane.b32.xlu0 %v2936, 32
    %v2939 = vpop.permute.xlu0 %2938
    %v2941 = vadd.f32 %v2931, %v2939
    %v2942 = vtanh.pop %v2941
    %2944 = vrot.lane.b32.xlu0 %v2942, 32
    %v2945 = vpop.permute.xlu0 %2944
    %v2947 = vmul.f32 %v2926, %v2945
    %v2949 = vrot.slane %v2947, 4
    %2950 = vrot.lane.b32.xlu0 %v2949, 64
    %v2951 = vpop.permute.xlu0 %2950
    %v2952 = vsel %vm322, %v2951, 0
    %2954 = vmatprep.subr.mxu0 0.0
    %2955 = vmatpush1.msra.mxu0 %v2120
    %2956 = vmatprep.subr.mxu0 0.0
    %2957 = vmatpush1.msra.mxu0 %v2121
    %2958 = vmatprep.subr.mxu0 0.0
    %2959 = vmatpush1.msra.mxu0 %v2122
    %2960 = vmatprep.subr.mxu0 0.0
    %2961 = vmatpush1.msra.mxu0 %v2123
    %2962 = vmatprep.subr.mxu0 0.0
    %2963 = vmatpush1.msra.mxu0 0.0
    %2964 = vmatprep.subr.mxu0 0.0
    %2965 = vmatpush1.msra.mxu0 0.0
    %2966 = vmatprep.subr.mxu0 0.0
    %2967 = vmatpush1.msra.mxu0 0.0
    %2968 = vmatprep.subr.mxu0 0.0
    %2969 = vmatpush1.msra.mxu0 0.0
    %2970 = vmatprep.subr.mxu0 0.0
    %2971 = vmatpush1.msra.mxu0 0.0
    %2972 = vmatprep.subr.mxu0 0.0
    %2973 = vmatpush1.msra.mxu0 0.0
    %2974 = vmatprep.subr.mxu0 0.0
    %2975 = vmatpush1.msra.mxu0 0.0
    %2976 = vmatprep.subr.mxu0 0.0
    %2977 = vmatpush1.msra.mxu0 0.0
    %2978 = vmatprep.subr.mxu0 0.0
    %2979 = vmatpush1.msra.mxu0 0.0
    %2980 = vmatprep.subr.mxu0 0.0
    %2981 = vmatpush1.msra.mxu0 0.0
    %2982 = vmatprep.subr.mxu0 0.0
    %2983 = vmatpush1.msra.mxu0 0.0
    %2984 = vmatprep.subr.mxu0 0.0
    %2985 = vmatpush1.msra.mxu0 0.0
    %2986 = vmatprep.subr.mxu0 0.0
    %2987 = vmatpush1.msra.mxu0 0.0
    %2988 = vmatprep.subr.mxu0 0.0
    %2989 = vmatpush1.msra.mxu0 0.0
    %2990 = vmatprep.subr.mxu0 0.0
    %2991 = vmatpush1.msra.mxu0 0.0
    %2992 = vmatprep.subr.mxu0 0.0
    %2993 = vmatpush1.msra.mxu0 0.0
    %2994 = vmatprep.subr.mxu0 0.0
    %2995 = vmatpush1.msra.mxu0 0.0
    %2996 = vmatprep.subr.mxu0 0.0
    %2997 = vmatpush1.msra.mxu0 0.0
    %2998 = vmatprep.subr.mxu0 0.0
    %2999 = vmatpush1.msra.mxu0 0.0
    %3000 = vmatprep.subr.mxu0 0.0
    %3001 = vmatpush1.msra.mxu0 0.0
    %3002 = vmatprep.subr.mxu0 0.0
    %3003 = vmatpush1.msra.mxu0 0.0
    %3004 = vmatprep.subr.mxu0 0.0
    %3005 = vmatpush1.msra.mxu0 0.0
    %3006 = vmatprep.subr.mxu0 0.0
    %3007 = vmatpush1.msra.mxu0 0.0
    %3008 = vmatprep.subr.mxu0 0.0
    %3009 = vmatpush1.msra.mxu0 0.0
    %3010 = vmatprep.subr.mxu0 0.0
    %3011 = vmatpush1.msra.mxu0 0.0
    %3012 = vmatprep.subr.mxu0 0.0
    %3013 = vmatpush1.msra.mxu0 0.0
    %3014 = vmatprep.subr.mxu0 0.0
    %3015 = vmatpush1.msra.mxu0 0.0
    %3016 = vmatprep.subr.mxu0 0.0
    %3017 = vmatpush1.msra.mxu0 0.0
    %3018 = vmatprep.mubr.f32.mxu0 0.0
    %3019 = vmatmul.mubr.f32.gmra.mrb[0].mxu0 %v2952
    %v3020 = vpop.f32.mrb[0].mxu0
    %v3021 = vadd.f32 0.0, %v3020
    %v3022 = vpop.f32.mrb[0].mxu0
    %3023 = vdwg.mxu0
    %v3025 = vrot.slane %v3021, 2
    %v3027 = vadd.f32 %v2213, %v3025
    %v3028 = vxor.u32 %v3027, 2147483648
    %v3029 = vmul.f32 %v3028, 1.442695
    %v3030 = vpow.pop %v3029
    %v3031 = vadd.f32 %v3030, 1.0
    %v3032 = vrcp.pop %v3031
    %v3033 = vmul.f32 1.0, %v3032
    %v3034 = vtanh.pop %v3027
    %v3036 = vrot.slane %v2941, 6
    %v3038 = vmul.f32 %v3033, %v3036
    %3040 = vrot.lane.b32.xlu0 %v3034, 32
    %v3041 = vpop.permute.xlu0 %3040
    %v3043 = vmul.f32 %v3033, %v3041
    %3045 = vrot.lane.b32.xlu0 %v3043, 32
    %v3046 = vpop.permute.xlu0 %3045
    %v3048 = vadd.f32 %v3038, %v3046
    %v3049 = vtanh.pop %v3048
    %3051 = vrot.lane.b32.xlu0 %v3049, 32
    %v3052 = vpop.permute.xlu0 %3051
    %v3054 = vmul.f32 %v3033, %v3052
    %v3055 = vsel %vm208, %v2310, %v2416
    %v3056 = vsel %vm212, %v3055, %v2523
    %v3057 = vsel %vm216, %v3056, %v2630
    %v3058 = vsel %vm208, %v2734, %v2840
    %v3059 = vsel %vm212, %v3058, %v2947
    %v3060 = vsel %vm216, %v3059, %v3054
    %v3061 = vld [vmem:[%s10] sm:$0xff]
    %v3062 = vld [vmem:[%s10 + $0x8] sm:$0xff]
    %v3063 = vld [vmem:[%s10 + $0x10] sm:$0xff]
    %v3064 = vld [vmem:[%s10 + $0x18] sm:$0xff]
    %v3065 = vld [vmem:[#allocation15] sm:$0xff]
    %v3066 = vld [vmem:[#allocation15 + $0x8] sm:$0xff]
    %v3067 = vld [vmem:[#allocation15 + $0x10] sm:$0xff]
    %v3068 = vld [vmem:[#allocation15 + $0x18] sm:$0xff]
    %v3069 = vld [vmem:[#allocation16] sm:$0x1]
    %v3071 = vlaneseq
    %v3072 = vshrl.u32 %v3071, 7
    %v3073 = vsub.s32 0, %v3072
    %v3074 = vrot.slane %v3069, %v3073
    %3078 = vrot.lane.b32.xlu0 %v3057, 64
    %v3079 = vpop.permute.xlu0 %3078
    %3080 = vrot.lane.b32.xlu0 %v3060, 64
    %v3081 = vpop.permute.xlu0 %3080
    %v3082 = vsel %vm322, %v3079, 0
    %v3084 = vsel %vm322, %v3081, 0
    %3086 = vmatprep.subr.mxu0 0.0
    %3087 = vmatpush1.msra.mxu0 %v3061
    %3088 = vmatprep.subr.mxu0 0.0
    %3089 = vmatpush1.msra.mxu0 %v3062
    %3090 = vmatprep.subr.mxu0 0.0
    %3091 = vmatpush1.msra.mxu0 %v3063
    %3092 = vmatprep.subr.mxu0 0.0
    %3093 = vmatpush1.msra.mxu0 %v3064
    %3094 = vmatprep.subr.mxu0 0.0
    %3095 = vmatpush1.msra.mxu0 0.0
    %3096 = vmatprep.subr.mxu0 0.0
    %3097 = vmatpush1.msra.mxu0 0.0
    %3098 = vmatprep.subr.mxu0 0.0
    %3099 = vmatpush1.msra.mxu0 0.0
    %3100 = vmatprep.subr.mxu0 0.0
    %3101 = vmatpush1.msra.mxu0 0.0
    %3102 = vmatprep.subr.mxu0 0.0
    %3103 = vmatpush1.msra.mxu0 0.0
    %3104 = vmatprep.subr.mxu0 0.0
    %3105 = vmatpush1.msra.mxu0 0.0
    %3106 = vmatprep.subr.mxu0 0.0
    %3107 = vmatpush1.msra.mxu0 0.0
    %3108 = vmatprep.subr.mxu0 0.0
    %3109 = vmatpush1.msra.mxu0 0.0
    %3110 = vmatprep.subr.mxu0 0.0
    %3111 = vmatpush1.msra.mxu0 0.0
    %3112 = vmatprep.subr.mxu0 0.0
    %3113 = vmatpush1.msra.mxu0 0.0
    %3114 = vmatprep.subr.mxu0 0.0
    %3115 = vmatpush1.msra.mxu0 0.0
    %3116 = vmatprep.subr.mxu0 0.0
    %3117 = vmatpush1.msra.mxu0 0.0
    %3118 = vmatprep.subr.mxu0 0.0
    %3119 = vmatpush1.msra.mxu0 0.0
    %3120 = vmatprep.subr.mxu0 0.0
    %3121 = vmatpush1.msra.mxu0 0.0
    %3122 = vmatprep.subr.mxu0 0.0
    %3123 = vmatpush1.msra.mxu0 0.0
    %3124 = vmatprep.subr.mxu0 0.0
    %3125 = vmatpush1.msra.mxu0 0.0
    %3126 = vmatprep.subr.mxu0 0.0
    %3127 = vmatpush1.msra.mxu0 0.0
    %3128 = vmatprep.subr.mxu0 0.0
    %3129 = vmatpush1.msra.mxu0 0.0
    %3130 = vmatprep.subr.mxu0 0.0
    %3131 = vmatpush1.msra.mxu0 0.0
    %3132 = vmatprep.subr.mxu0 0.0
    %3133 = vmatpush1.msra.mxu0 0.0
    %3134 = vmatprep.subr.mxu0 0.0
    %3135 = vmatpush1.msra.mxu0 0.0
    %3136 = vmatprep.subr.mxu0 0.0
    %3137 = vmatpush1.msra.mxu0 0.0
    %3138 = vmatprep.subr.mxu0 0.0
    %3139 = vmatpush1.msra.mxu0 0.0
    %3140 = vmatprep.subr.mxu0 0.0
    %3141 = vmatpush1.msra.mxu0 0.0
    %3142 = vmatprep.subr.mxu0 0.0
    %3143 = vmatpush1.msra.mxu0 0.0
    %3144 = vmatprep.subr.mxu0 0.0
    %3145 = vmatpush1.msra.mxu0 0.0
    %3146 = vmatprep.subr.mxu0 0.0
    %3147 = vmatpush1.msra.mxu0 0.0
    %3148 = vmatprep.subr.mxu0 0.0
    %3149 = vmatpush1.msra.mxu0 0.0
    %3150 = vmatprep.mubr.f32.mxu0 0.0
    %3151 = vmatmul.mubr.f32.gmra.mrb[0].mxu0 %v3082
    %v3152 = vpop.f32.mrb[0].mxu0
    %v3153 = vadd.f32 %v3074, %v3152
    %v3154 = vpop.f32.mrb[0].mxu0
    %3155 = vmatprep.mubr.f32.mxu0 0.0
    %3156 = vmatmul.mubr.f32.gmra.mrb[0].mxu0 %v3084
    %v3157 = vpop.f32.mrb[0].mxu0
    %v3158 = vadd.f32 %v3074, %v3157
    %v3159 = vpop.f32.mrb[0].mxu0
    %3160 = vdwg.mxu0
    %3161 = vmatprep.subr.mxu0 0.0
    %3162 = vmatpush1.msra.mxu0 %v3065
    %3163 = vmatprep.subr.mxu0 0.0
    %3164 = vmatpush1.msra.mxu0 %v3066
    %3165 = vmatprep.subr.mxu0 0.0
    %3166 = vmatpush1.msra.mxu0 %v3067
    %3167 = vmatprep.subr.mxu0 0.0
    %3168 = vmatpush1.msra.mxu0 %v3068
    %3169 = vmatprep.subr.mxu0 0.0
    %3170 = vmatpush1.msra.mxu0 0.0
    %3171 = vmatprep.subr.mxu0 0.0
    %3172 = vmatpush1.msra.mxu0 0.0
    %3173 = vmatprep.subr.mxu0 0.0
    %3174 = vmatpush1.msra.mxu0 0.0
    %3175 = vmatprep.subr.mxu0 0.0
    %3176 = vmatpush1.msra.mxu0 0.0
    %3177 = vmatprep.subr.mxu0 0.0
    %3178 = vmatpush1.msra.mxu0 0.0
    %3179 = vmatprep.subr.mxu0 0.0
    %3180 = vmatpush1.msra.mxu0 0.0
    %3181 = vmatprep.subr.mxu0 0.0
    %3182 = vmatpush1.msra.mxu0 0.0
    %3183 = vmatprep.subr.mxu0 0.0
    %3184 = vmatpush1.msra.mxu0 0.0
    %3185 = vmatprep.subr.mxu0 0.0
    %3186 = vmatpush1.msra.mxu0 0.0
    %3187 = vmatprep.subr.mxu0 0.0
    %3188 = vmatpush1.msra.mxu0 0.0
    %3189 = vmatprep.subr.mxu0 0.0
    %3190 = vmatpush1.msra.mxu0 0.0
    %3191 = vmatprep.subr.mxu0 0.0
    %3192 = vmatpush1.msra.mxu0 0.0
    %3193 = vmatprep.subr.mxu0 0.0
    %3194 = vmatpush1.msra.mxu0 0.0
    %3195 = vmatprep.subr.mxu0 0.0
    %3196 = vmatpush1.msra.mxu0 0.0
    %3197 = vmatprep.subr.mxu0 0.0
    %3198 = vmatpush1.msra.mxu0 0.0
    %3199 = vmatprep.subr.mxu0 0.0
    %3200 = vmatpush1.msra.mxu0 0.0
    %3201 = vmatprep.subr.mxu0 0.0
    %3202 = vmatpush1.msra.mxu0 0.0
    %3203 = vmatprep.subr.mxu0 0.0
    %3204 = vmatpush1.msra.mxu0 0.0
    %3205 = vmatprep.subr.mxu0 0.0
    %3206 = vmatpush1.msra.mxu0 0.0
    %3207 = vmatprep.subr.mxu0 0.0
    %3208 = vmatpush1.msra.mxu0 0.0
    %3209 = vmatprep.subr.mxu0 0.0
    %3210 = vmatpush1.msra.mxu0 0.0
    %3211 = vmatprep.subr.mxu0 0.0
    %3212 = vmatpush1.msra.mxu0 0.0
    %3213 = vmatprep.subr.mxu0 0.0
    %3214 = vmatpush1.msra.mxu0 0.0
    %3215 = vmatprep.subr.mxu0 0.0
    %3216 = vmatpush1.msra.mxu0 0.0
    %3217 = vmatprep.subr.mxu0 0.0
    %3218 = vmatpush1.msra.mxu0 0.0
    %3219 = vmatprep.subr.mxu0 0.0
    %3220 = vmatpush1.msra.mxu0 0.0
    %3221 = vmatprep.subr.mxu0 0.0
    %3222 = vmatpush1.msra.mxu0 0.0
    %3223 = vmatprep.subr.mxu0 0.0
    %3224 = vmatpush1.msra.mxu0 0.0
    %3225 = vmatprep.mubr.f32.mxu0 0.0
    %3226 = vmatmul.mubr.f32.gmra.mrb[0].mxu0 %v324
    %v3227 = vpop.f32.mrb[0].mxu0
    %v3228 = vadd.f32 0.0, %v3227
    %v3229 = vpop.f32.mrb[0].mxu0
    %3230 = vdwg.mxu0
    %v3231 = vadd.f32 %v3153, %v3228
    %v3232 = vxor.u32 %v3231, 2147483648
    %v3233 = vmul.f32 %v3232, 1.442695
    %v3234 = vpow.pop %v3233
    %v3235 = vadd.f32 %v3234, 1.0
    %v3236 = vrcp.pop %v3235
    %v3237 = vmul.f32 1.0, %v3236
    %v3238 = vtanh.pop %v3231
    %v3239 = vmul.f32 %v3237, 0.0
    %3241 = vrot.lane.b32.xlu0 %v3238, 32
    %v3242 = vpop.permute.xlu0 %3241
    %v3244 = vmul.f32 %v3237, %v3242
    %3246 = vrot.lane.b32.xlu0 %v3244, 32
    %v3247 = vpop.permute.xlu0 %3246
    %v3249 = vadd.f32 %v3239, %v3247
    %v3250 = vtanh.pop %v3249
    %3252 = vrot.lane.b32.xlu0 %v3250, 32
    %v3253 = vpop.permute.xlu0 %3252
    %v3255 = vmul.f32 %v3237, %v3253
    %3257 = vrot.lane.b32.xlu0 %v3255, 64
    %v3258 = vpop.permute.xlu0 %3257
    %v3259 = vsel %vm322, %v3258, 0
    %3261 = vmatprep.subr.mxu0 0.0
    %3262 = vmatpush1.msra.mxu0 %v3065
    %3263 = vmatprep.subr.mxu0 0.0
    %3264 = vmatpush1.msra.mxu0 %v3066
    %3265 = vmatprep.subr.mxu0 0.0
    %3266 = vmatpush1.msra.mxu0 %v3067
    %3267 = vmatprep.subr.mxu0 0.0
    %3268 = vmatpush1.msra.mxu0 %v3068
    %3269 = vmatprep.subr.mxu0 0.0
    %3270 = vmatpush1.msra.mxu0 0.0
    %3271 = vmatprep.subr.mxu0 0.0
    %3272 = vmatpush1.msra.mxu0 0.0
    %3273 = vmatprep.subr.mxu0 0.0
    %3274 = vmatpush1.msra.mxu0 0.0
    %3275 = vmatprep.subr.mxu0 0.0
    %3276 = vmatpush1.msra.mxu0 0.0
    %3277 = vmatprep.subr.mxu0 0.0
    %3278 = vmatpush1.msra.mxu0 0.0
    %3279 = vmatprep.subr.mxu0 0.0
    %3280 = vmatpush1.msra.mxu0 0.0
    %3281 = vmatprep.subr.mxu0 0.0
    %3282 = vmatpush1.msra.mxu0 0.0
    %3283 = vmatprep.subr.mxu0 0.0
    %3284 = vmatpush1.msra.mxu0 0.0
    %3285 = vmatprep.subr.mxu0 0.0
    %3286 = vmatpush1.msra.mxu0 0.0
    %3287 = vmatprep.subr.mxu0 0.0
    %3288 = vmatpush1.msra.mxu0 0.0
    %3289 = vmatprep.subr.mxu0 0.0
    %3290 = vmatpush1.msra.mxu0 0.0
    %3291 = vmatprep.subr.mxu0 0.0
    %3292 = vmatpush1.msra.mxu0 0.0
    %3293 = vmatprep.subr.mxu0 0.0
    %3294 = vmatpush1.msra.mxu0 0.0
    %3295 = vmatprep.subr.mxu0 0.0
    %3296 = vmatpush1.msra.mxu0 0.0
    %3297 = vmatprep.subr.mxu0 0.0
    %3298 = vmatpush1.msra.mxu0 0.0
    %3299 = vmatprep.subr.mxu0 0.0
    %3300 = vmatpush1.msra.mxu0 0.0
    %3301 = vmatprep.subr.mxu0 0.0
    %3302 = vmatpush1.msra.mxu0 0.0
    %3303 = vmatprep.subr.mxu0 0.0
    %3304 = vmatpush1.msra.mxu0 0.0
    %3305 = vmatprep.subr.mxu0 0.0
    %3306 = vmatpush1.msra.mxu0 0.0
    %3307 = vmatprep.subr.mxu0 0.0
    %3308 = vmatpush1.msra.mxu0 0.0
    %3309 = vmatprep.subr.mxu0 0.0
    %3310 = vmatpush1.msra.mxu0 0.0
    %3311 = vmatprep.subr.mxu0 0.0
    %3312 = vmatpush1.msra.mxu0 0.0
    %3313 = vmatprep.subr.mxu0 0.0
    %3314 = vmatpush1.msra.mxu0 0.0
    %3315 = vmatprep.subr.mxu0 0.0
    %3316 = vmatpush1.msra.mxu0 0.0
    %3317 = vmatprep.subr.mxu0 0.0
    %3318 = vmatpush1.msra.mxu0 0.0
    %3319 = vmatprep.subr.mxu0 0.0
    %3320 = vmatpush1.msra.mxu0 0.0
    %3321 = vmatprep.subr.mxu0 0.0
    %3322 = vmatpush1.msra.mxu0 0.0
    %3323 = vmatprep.subr.mxu0 0.0
    %3324 = vmatpush1.msra.mxu0 0.0
    %3325 = vmatprep.mubr.f32.mxu0 0.0
    %3326 = vmatmul.mubr.f32.gmra.mrb[0].mxu0 %v3259
    %v3327 = vpop.f32.mrb[0].mxu0
    %v3328 = vadd.f32 0.0, %v3327
    %v3329 = vpop.f32.mrb[0].mxu0
    %3330 = vdwg.mxu0
    %v3332 = vrot.slane %v3328, 6
    %v3334 = vadd.f32 %v3153, %v3332
    %v3335 = vxor.u32 %v3334, 2147483648
    %v3336 = vmul.f32 %v3335, 1.442695
    %v3337 = vpow.pop %v3336
    %v3338 = vadd.f32 %v3337, 1.0
    %v3339 = vrcp.pop %v3338
    %v3340 = vmul.f32 1.0, %v3339
    %v3341 = vtanh.pop %v3334
    %v3343 = vrot.slane %v3249, 6
    %v3345 = vmul.f32 %v3340, %v3343
    %3347 = vrot.lane.b32.xlu0 %v3341, 32
    %v3348 = vpop.permute.xlu0 %3347
    %v3350 = vmul.f32 %v3340, %v3348
    %3352 = vrot.lane.b32.xlu0 %v3350, 32
    %v3353 = vpop.permute.xlu0 %3352
    %v3355 = vadd.f32 %v3345, %v3353
    %v3356 = vtanh.pop %v3355
    %3358 = vrot.lane.b32.xlu0 %v3356, 32
    %v3359 = vpop.permute.xlu0 %3358
    %v3361 = vmul.f32 %v3340, %v3359
    %v3363 = vrot.slane %v3361, 2
    %3364 = vrot.lane.b32.xlu0 %v3363, 64
    %v3365 = vpop.permute.xlu0 %3364
    %v3366 = vsel %vm322, %v3365, 0
    %3368 = vmatprep.subr.mxu0 0.0
    %3369 = vmatpush1.msra.mxu0 %v3065
    %3370 = vmatprep.subr.mxu0 0.0
    %3371 = vmatpush1.msra.mxu0 %v3066
    %3372 = vmatprep.subr.mxu0 0.0
    %3373 = vmatpush1.msra.mxu0 %v3067
    %3374 = vmatprep.subr.mxu0 0.0
    %3375 = vmatpush1.msra.mxu0 %v3068
    %3376 = vmatprep.subr.mxu0 0.0
    %3377 = vmatpush1.msra.mxu0 0.0
    %3378 = vmatprep.subr.mxu0 0.0
    %3379 = vmatpush1.msra.mxu0 0.0
    %3380 = vmatprep.subr.mxu0 0.0
    %3381 = vmatpush1.msra.mxu0 0.0
    %3382 = vmatprep.subr.mxu0 0.0
    %3383 = vmatpush1.msra.mxu0 0.0
    %3384 = vmatprep.subr.mxu0 0.0
    %3385 = vmatpush1.msra.mxu0 0.0
    %3386 = vmatprep.subr.mxu0 0.0
    %3387 = vmatpush1.msra.mxu0 0.0
    %3388 = vmatprep.subr.mxu0 0.0
    %3389 = vmatpush1.msra.mxu0 0.0
    %3390 = vmatprep.subr.mxu0 0.0
    %3391 = vmatpush1.msra.mxu0 0.0
    %3392 = vmatprep.subr.mxu0 0.0
    %3393 = vmatpush1.msra.mxu0 0.0
    %3394 = vmatprep.subr.mxu0 0.0
    %3395 = vmatpush1.msra.mxu0 0.0
    %3396 = vmatprep.subr.mxu0 0.0
    %3397 = vmatpush1.msra.mxu0 0.0
    %3398 = vmatprep.subr.mxu0 0.0
    %3399 = vmatpush1.msra.mxu0 0.0
    %3400 = vmatprep.subr.mxu0 0.0
    %3401 = vmatpush1.msra.mxu0 0.0
    %3402 = vmatprep.subr.mxu0 0.0
    %3403 = vmatpush1.msra.mxu0 0.0
    %3404 = vmatprep.subr.mxu0 0.0
    %3405 = vmatpush1.msra.mxu0 0.0
    %3406 = vmatprep.subr.mxu0 0.0
    %3407 = vmatpush1.msra.mxu0 0.0
    %3408 = vmatprep.subr.mxu0 0.0
    %3409 = vmatpush1.msra.mxu0 0.0
    %3410 = vmatprep.subr.mxu0 0.0
    %3411 = vmatpush1.msra.mxu0 0.0
    %3412 = vmatprep.subr.mxu0 0.0
    %3413 = vmatpush1.msra.mxu0 0.0
    %3414 = vmatprep.subr.mxu0 0.0
    %3415 = vmatpush1.msra.mxu0 0.0
    %3416 = vmatprep.subr.mxu0 0.0
    %3417 = vmatpush1.msra.mxu0 0.0
    %3418 = vmatprep.subr.mxu0 0.0
    %3419 = vmatpush1.msra.mxu0 0.0
    %3420 = vmatprep.subr.mxu0 0.0
    %3421 = vmatpush1.msra.mxu0 0.0
    %3422 = vmatprep.subr.mxu0 0.0
    %3423 = vmatpush1.msra.mxu0 0.0
    %3424 = vmatprep.subr.mxu0 0.0
    %3425 = vmatpush1.msra.mxu0 0.0
    %3426 = vmatprep.subr.mxu0 0.0
    %3427 = vmatpush1.msra.mxu0 0.0
    %3428 = vmatprep.subr.mxu0 0.0
    %3429 = vmatpush1.msra.mxu0 0.0
    %3430 = vmatprep.subr.mxu0 0.0
    %3431 = vmatpush1.msra.mxu0 0.0
    %3432 = vmatprep.mubr.f32.mxu0 0.0
    %3433 = vmatmul.mubr.f32.gmra.mrb[0].mxu0 %v3366
    %v3434 = vpop.f32.mrb[0].mxu0
    %v3435 = vadd.f32 0.0, %v3434
    %v3436 = vpop.f32.mrb[0].mxu0
    %3437 = vdwg.mxu0
    %v3439 = vrot.slane %v3435, 4
    %v3441 = vadd.f32 %v3153, %v3439
    %v3442 = vxor.u32 %v3441, 2147483648
    %v3443 = vmul.f32 %v3442, 1.442695
    %v3444 = vpow.pop %v3443
    %v3445 = vadd.f32 %v3444, 1.0
    %v3446 = vrcp.pop %v3445
    %v3447 = vmul.f32 1.0, %v3446
    %v3448 = vtanh.pop %v3441
    %v3450 = vrot.slane %v3355, 6
    %v3452 = vmul.f32 %v3447, %v3450
    %3454 = vrot.lane.b32.xlu0 %v3448, 32
    %v3455 = vpop.permute.xlu0 %3454
    %v3457 = vmul.f32 %v3447, %v3455
    %3459 = vrot.lane.b32.xlu0 %v3457, 32
    %v3460 = vpop.permute.xlu0 %3459
    %v3462 = vadd.f32 %v3452, %v3460
    %v3463 = vtanh.pop %v3462
    %3465 = vrot.lane.b32.xlu0 %v3463, 32
    %v3466 = vpop.permute.xlu0 %3465
    %v3468 = vmul.f32 %v3447, %v3466
    %v3470 = vrot.slane %v3468, 4
    %3471 = vrot.lane.b32.xlu0 %v3470, 64
    %v3472 = vpop.permute.xlu0 %3471
    %v3473 = vsel %vm322, %v3472, 0
    %3475 = vmatprep.subr.mxu0 0.0
    %3476 = vmatpush1.msra.mxu0 %v3065
    %3477 = vmatprep.subr.mxu0 0.0
    %3478 = vmatpush1.msra.mxu0 %v3066
    %3479 = vmatprep.subr.mxu0 0.0
    %3480 = vmatpush1.msra.mxu0 %v3067
    %3481 = vmatprep.subr.mxu0 0.0
    %3482 = vmatpush1.msra.mxu0 %v3068
    %3483 = vmatprep.subr.mxu0 0.0
    %3484 = vmatpush1.msra.mxu0 0.0
    %3485 = vmatprep.subr.mxu0 0.0
    %3486 = vmatpush1.msra.mxu0 0.0
    %3487 = vmatprep.subr.mxu0 0.0
    %3488 = vmatpush1.msra.mxu0 0.0
    %3489 = vmatprep.subr.mxu0 0.0
    %3490 = vmatpush1.msra.mxu0 0.0
    %3491 = vmatprep.subr.mxu0 0.0
    %3492 = vmatpush1.msra.mxu0 0.0
    %3493 = vmatprep.subr.mxu0 0.0
    %3494 = vmatpush1.msra.mxu0 0.0
    %3495 = vmatprep.subr.mxu0 0.0
    %3496 = vmatpush1.msra.mxu0 0.0
    %3497 = vmatprep.subr.mxu0 0.0
    %3498 = vmatpush1.msra.mxu0 0.0
    %3499 = vmatprep.subr.mxu0 0.0
    %3500 = vmatpush1.msra.mxu0 0.0
    %3501 = vmatprep.subr.mxu0 0.0
    %3502 = vmatpush1.msra.mxu0 0.0
    %3503 = vmatprep.subr.mxu0 0.0
    %3504 = vmatpush1.msra.mxu0 0.0
    %3505 = vmatprep.subr.mxu0 0.0
    %3506 = vmatpush1.msra.mxu0 0.0
    %3507 = vmatprep.subr.mxu0 0.0
    %3508 = vmatpush1.msra.mxu0 0.0
    %3509 = vmatprep.subr.mxu0 0.0
    %3510 = vmatpush1.msra.mxu0 0.0
    %3511 = vmatprep.subr.mxu0 0.0
    %3512 = vmatpush1.msra.mxu0 0.0
    %3513 = vmatprep.subr.mxu0 0.0
    %3514 = vmatpush1.msra.mxu0 0.0
    %3515 = vmatprep.subr.mxu0 0.0
    %3516 = vmatpush1.msra.mxu0 0.0
    %3517 = vmatprep.subr.mxu0 0.0
    %3518 = vmatpush1.msra.mxu0 0.0
    %3519 = vmatprep.subr.mxu0 0.0
    %3520 = vmatpush1.msra.mxu0 0.0
    %3521 = vmatprep.subr.mxu0 0.0
    %3522 = vmatpush1.msra.mxu0 0.0
    %3523 = vmatprep.subr.mxu0 0.0
    %3524 = vmatpush1.msra.mxu0 0.0
    %3525 = vmatprep.subr.mxu0 0.0
    %3526 = vmatpush1.msra.mxu0 0.0
    %3527 = vmatprep.subr.mxu0 0.0
    %3528 = vmatpush1.msra.mxu0 0.0
    %3529 = vmatprep.subr.mxu0 0.0
    %3530 = vmatpush1.msra.mxu0 0.0
    %3531 = vmatprep.subr.mxu0 0.0
    %3532 = vmatpush1.msra.mxu0 0.0
    %3533 = vmatprep.subr.mxu0 0.0
    %3534 = vmatpush1.msra.mxu0 0.0
    %3535 = vmatprep.subr.mxu0 0.0
    %3536 = vmatpush1.msra.mxu0 0.0
    %3537 = vmatprep.subr.mxu0 0.0
    %3538 = vmatpush1.msra.mxu0 0.0
    %3539 = vmatprep.mubr.f32.mxu0 0.0
    %3540 = vmatmul.mubr.f32.gmra.mrb[0].mxu0 %v3473
    %v3541 = vpop.f32.mrb[0].mxu0
    %v3542 = vadd.f32 0.0, %v3541
    %v3543 = vpop.f32.mrb[0].mxu0
    %3544 = vdwg.mxu0
    %v3546 = vrot.slane %v3542, 2
    %v3548 = vadd.f32 %v3153, %v3546
    %v3549 = vxor.u32 %v3548, 2147483648
    %v3550 = vmul.f32 %v3549, 1.442695
    %v3551 = vpow.pop %v3550
    %v3552 = vadd.f32 %v3551, 1.0
    %v3553 = vrcp.pop %v3552
    %v3554 = vmul.f32 1.0, %v3553
    %v3555 = vtanh.pop %v3548
    %v3557 = vrot.slane %v3462, 6
    %v3559 = vmul.f32 %v3554, %v3557
    %3561 = vrot.lane.b32.xlu0 %v3555, 32
    %v3562 = vpop.permute.xlu0 %3561
    %v3564 = vmul.f32 %v3554, %v3562
    %3566 = vrot.lane.b32.xlu0 %v3564, 32
    %v3567 = vpop.permute.xlu0 %3566
    %v3569 = vadd.f32 %v3559, %v3567
    %v3570 = vtanh.pop %v3569
    %3572 = vrot.lane.b32.xlu0 %v3570, 32
    %v3573 = vpop.permute.xlu0 %3572
    %v3575 = vmul.f32 %v3554, %v3573
    %v3577 = vrot.slane %v3575, 6
    %3578 = vrot.lane.b32.xlu0 %v3577, 64
    %v3579 = vpop.permute.xlu0 %3578
    %v3580 = vsel %vm322, %v3579, 0
    %3582 = vmatprep.subr.mxu0 0.0
    %3583 = vmatpush1.msra.mxu0 %v3065
    %3584 = vmatprep.subr.mxu0 0.0
    %3585 = vmatpush1.msra.mxu0 %v3066
    %3586 = vmatprep.subr.mxu0 0.0
    %3587 = vmatpush1.msra.mxu0 %v3067
    %3588 = vmatprep.subr.mxu0 0.0
    %3589 = vmatpush1.msra.mxu0 %v3068
    %3590 = vmatprep.subr.mxu0 0.0
    %3591 = vmatpush1.msra.mxu0 0.0
    %3592 = vmatprep.subr.mxu0 0.0
    %3593 = vmatpush1.msra.mxu0 0.0
    %3594 = vmatprep.subr.mxu0 0.0
    %3595 = vmatpush1.msra.mxu0 0.0
    %3596 = vmatprep.subr.mxu0 0.0
    %3597 = vmatpush1.msra.mxu0 0.0
    %3598 = vmatprep.subr.mxu0 0.0
    %3599 = vmatpush1.msra.mxu0 0.0
    %3600 = vmatprep.subr.mxu0 0.0
    %3601 = vmatpush1.msra.mxu0 0.0
    %3602 = vmatprep.subr.mxu0 0.0
    %3603 = vmatpush1.msra.mxu0 0.0
    %3604 = vmatprep.subr.mxu0 0.0
    %3605 = vmatpush1.msra.mxu0 0.0
    %3606 = vmatprep.subr.mxu0 0.0
    %3607 = vmatpush1.msra.mxu0 0.0
    %3608 = vmatprep.subr.mxu0 0.0
    %3609 = vmatpush1.msra.mxu0 0.0
    %3610 = vmatprep.subr.mxu0 0.0
    %3611 = vmatpush1.msra.mxu0 0.0
    %3612 = vmatprep.subr.mxu0 0.0
    %3613 = vmatpush1.msra.mxu0 0.0
    %3614 = vmatprep.subr.mxu0 0.0
    %3615 = vmatpush1.msra.mxu0 0.0
    %3616 = vmatprep.subr.mxu0 0.0
    %3617 = vmatpush1.msra.mxu0 0.0
    %3618 = vmatprep.subr.mxu0 0.0
    %3619 = vmatpush1.msra.mxu0 0.0
    %3620 = vmatprep.subr.mxu0 0.0
    %3621 = vmatpush1.msra.mxu0 0.0
    %3622 = vmatprep.subr.mxu0 0.0
    %3623 = vmatpush1.msra.mxu0 0.0
    %3624 = vmatprep.subr.mxu0 0.0
    %3625 = vmatpush1.msra.mxu0 0.0
    %3626 = vmatprep.subr.mxu0 0.0
    %3627 = vmatpush1.msra.mxu0 0.0
    %3628 = vmatprep.subr.mxu0 0.0
    %3629 = vmatpush1.msra.mxu0 0.0
    %3630 = vmatprep.subr.mxu0 0.0
    %3631 = vmatpush1.msra.mxu0 0.0
    %3632 = vmatprep.subr.mxu0 0.0
    %3633 = vmatpush1.msra.mxu0 0.0
    %3634 = vmatprep.subr.mxu0 0.0
    %3635 = vmatpush1.msra.mxu0 0.0
    %3636 = vmatprep.subr.mxu0 0.0
    %3637 = vmatpush1.msra.mxu0 0.0
    %3638 = vmatprep.subr.mxu0 0.0
    %3639 = vmatpush1.msra.mxu0 0.0
    %3640 = vmatprep.subr.mxu0 0.0
    %3641 = vmatpush1.msra.mxu0 0.0
    %3642 = vmatprep.subr.mxu0 0.0
    %3643 = vmatpush1.msra.mxu0 0.0
    %3644 = vmatprep.subr.mxu0 0.0
    %3645 = vmatpush1.msra.mxu0 0.0
    %3646 = vmatprep.mubr.f32.mxu0 0.0
    %3647 = vmatmul.mubr.f32.gmra.mrb[0].mxu0 %v3580
    %v3648 = vpop.f32.mrb[0].mxu0
    %v3649 = vadd.f32 0.0, %v3648
    %v3650 = vpop.f32.mrb[0].mxu0
    %3651 = vdwg.mxu0
    %v3652 = vadd.f32 %v3158, %v3649
    %v3653 = vxor.u32 %v3652, 2147483648
    %v3654 = vmul.f32 %v3653, 1.442695
    %v3655 = vpow.pop %v3654
    %v3656 = vadd.f32 %v3655, 1.0
    %v3657 = vrcp.pop %v3656
    %v3658 = vmul.f32 1.0, %v3657
    %v3659 = vtanh.pop %v3652
    %v3661 = vrot.slane %v3569, 6
    %v3663 = vmul.f32 %v3658, %v3661
    %3665 = vrot.lane.b32.xlu0 %v3659, 32
    %v3666 = vpop.permute.xlu0 %3665
    %v3668 = vmul.f32 %v3658, %v3666
    %3670 = vrot.lane.b32.xlu0 %v3668, 32
    %v3671 = vpop.permute.xlu0 %3670
    %v3673 = vadd.f32 %v3663, %v3671
    %v3674 = vtanh.pop %v3673
    %3676 = vrot.lane.b32.xlu0 %v3674, 32
    %v3677 = vpop.permute.xlu0 %3676
    %v3679 = vmul.f32 %v3658, %v3677
    %3681 = vrot.lane.b32.xlu0 %v3679, 64
    %v3682 = vpop.permute.xlu0 %3681
    %v3683 = vsel %vm322, %v3682, 0
    %3685 = vmatprep.subr.mxu0 0.0
    %3686 = vmatpush1.msra.mxu0 %v3065
    %3687 = vmatprep.subr.mxu0 0.0
    %3688 = vmatpush1.msra.mxu0 %v3066
    %3689 = vmatprep.subr.mxu0 0.0
    %3690 = vmatpush1.msra.mxu0 %v3067
    %3691 = vmatprep.subr.mxu0 0.0
    %3692 = vmatpush1.msra.mxu0 %v3068
    %3693 = vmatprep.subr.mxu0 0.0
    %3694 = vmatpush1.msra.mxu0 0.0
    %3695 = vmatprep.subr.mxu0 0.0
    %3696 = vmatpush1.msra.mxu0 0.0
    %3697 = vmatprep.subr.mxu0 0.0
    %3698 = vmatpush1.msra.mxu0 0.0
    %3699 = vmatprep.subr.mxu0 0.0
    %3700 = vmatpush1.msra.mxu0 0.0
    %3701 = vmatprep.subr.mxu0 0.0
    %3702 = vmatpush1.msra.mxu0 0.0
    %3703 = vmatprep.subr.mxu0 0.0
    %3704 = vmatpush1.msra.mxu0 0.0
    %3705 = vmatprep.subr.mxu0 0.0
    %3706 = vmatpush1.msra.mxu0 0.0
    %3707 = vmatprep.subr.mxu0 0.0
    %3708 = vmatpush1.msra.mxu0 0.0
    %3709 = vmatprep.subr.mxu0 0.0
    %3710 = vmatpush1.msra.mxu0 0.0
    %3711 = vmatprep.subr.mxu0 0.0
    %3712 = vmatpush1.msra.mxu0 0.0
    %3713 = vmatprep.subr.mxu0 0.0
    %3714 = vmatpush1.msra.mxu0 0.0
    %3715 = vmatprep.subr.mxu0 0.0
    %3716 = vmatpush1.msra.mxu0 0.0
    %3717 = vmatprep.subr.mxu0 0.0
    %3718 = vmatpush1.msra.mxu0 0.0
    %3719 = vmatprep.subr.mxu0 0.0
    %3720 = vmatpush1.msra.mxu0 0.0
    %3721 = vmatprep.subr.mxu0 0.0
    %3722 = vmatpush1.msra.mxu0 0.0
    %3723 = vmatprep.subr.mxu0 0.0
    %3724 = vmatpush1.msra.mxu0 0.0
    %3725 = vmatprep.subr.mxu0 0.0
    %3726 = vmatpush1.msra.mxu0 0.0
    %3727 = vmatprep.subr.mxu0 0.0
    %3728 = vmatpush1.msra.mxu0 0.0
    %3729 = vmatprep.subr.mxu0 0.0
    %3730 = vmatpush1.msra.mxu0 0.0
    %3731 = vmatprep.subr.mxu0 0.0
    %3732 = vmatpush1.msra.mxu0 0.0
    %3733 = vmatprep.subr.mxu0 0.0
    %3734 = vmatpush1.msra.mxu0 0.0
    %3735 = vmatprep.subr.mxu0 0.0
    %3736 = vmatpush1.msra.mxu0 0.0
    %3737 = vmatprep.subr.mxu0 0.0
    %3738 = vmatpush1.msra.mxu0 0.0
    %3739 = vmatprep.subr.mxu0 0.0
    %3740 = vmatpush1.msra.mxu0 0.0
    %3741 = vmatprep.subr.mxu0 0.0
    %3742 = vmatpush1.msra.mxu0 0.0
    %3743 = vmatprep.subr.mxu0 0.0
    %3744 = vmatpush1.msra.mxu0 0.0
    %3745 = vmatprep.subr.mxu0 0.0
    %3746 = vmatpush1.msra.mxu0 0.0
    %3747 = vmatprep.subr.mxu0 0.0
    %3748 = vmatpush1.msra.mxu0 0.0
    %3749 = vmatprep.mubr.f32.mxu0 0.0
    %3750 = vmatmul.mubr.f32.gmra.mrb[0].mxu0 %v3683
    %v3751 = vpop.f32.mrb[0].mxu0
    %v3752 = vadd.f32 0.0, %v3751
    %v3753 = vpop.f32.mrb[0].mxu0
    %3754 = vdwg.mxu0
    %v3756 = vrot.slane %v3752, 6
    %v3758 = vadd.f32 %v3158, %v3756
    %v3759 = vxor.u32 %v3758, 2147483648
    %v3760 = vmul.f32 %v3759, 1.442695
    %v3761 = vpow.pop %v3760
    %v3762 = vadd.f32 %v3761, 1.0
    %v3763 = vrcp.pop %v3762
    %v3764 = vmul.f32 1.0, %v3763
    %v3765 = vtanh.pop %v3758
    %v3767 = vrot.slane %v3673, 6
    %v3769 = vmul.f32 %v3764, %v3767
    %3771 = vrot.lane.b32.xlu0 %v3765, 32
    %v3772 = vpop.permute.xlu0 %3771
    %v3774 = vmul.f32 %v3764, %v3772
    %3776 = vrot.lane.b32.xlu0 %v3774, 32
    %v3777 = vpop.permute.xlu0 %3776
    %v3779 = vadd.f32 %v3769, %v3777
    %v3780 = vtanh.pop %v3779
    %3782 = vrot.lane.b32.xlu0 %v3780, 32
    %v3783 = vpop.permute.xlu0 %3782
    %v3785 = vmul.f32 %v3764, %v3783
    %v3787 = vrot.slane %v3785, 2
    %3788 = vrot.lane.b32.xlu0 %v3787, 64
    %v3789 = vpop.permute.xlu0 %3788
    %v3790 = vsel %vm322, %v3789, 0
    %3792 = vmatprep.subr.mxu0 0.0
    %3793 = vmatpush1.msra.mxu0 %v3065
    %3794 = vmatprep.subr.mxu0 0.0
    %3795 = vmatpush1.msra.mxu0 %v3066
    %3796 = vmatprep.subr.mxu0 0.0
    %3797 = vmatpush1.msra.mxu0 %v3067
    %3798 = vmatprep.subr.mxu0 0.0
    %3799 = vmatpush1.msra.mxu0 %v3068
    %3800 = vmatprep.subr.mxu0 0.0
    %3801 = vmatpush1.msra.mxu0 0.0
    %3802 = vmatprep.subr.mxu0 0.0
    %3803 = vmatpush1.msra.mxu0 0.0
    %3804 = vmatprep.subr.mxu0 0.0
    %3805 = vmatpush1.msra.mxu0 0.0
    %3806 = vmatprep.subr.mxu0 0.0
    %3807 = vmatpush1.msra.mxu0 0.0
    %3808 = vmatprep.subr.mxu0 0.0
    %3809 = vmatpush1.msra.mxu0 0.0
    %3810 = vmatprep.subr.mxu0 0.0
    %3811 = vmatpush1.msra.mxu0 0.0
    %3812 = vmatprep.subr.mxu0 0.0
    %3813 = vmatpush1.msra.mxu0 0.0
    %3814 = vmatprep.subr.mxu0 0.0
    %3815 = vmatpush1.msra.mxu0 0.0
    %3816 = vmatprep.subr.mxu0 0.0
    %3817 = vmatpush1.msra.mxu0 0.0
    %3818 = vmatprep.subr.mxu0 0.0
    %3819 = vmatpush1.msra.mxu0 0.0
    %3820 = vmatprep.subr.mxu0 0.0
    %3821 = vmatpush1.msra.mxu0 0.0
    %3822 = vmatprep.subr.mxu0 0.0
    %3823 = vmatpush1.msra.mxu0 0.0
    %3824 = vmatprep.subr.mxu0 0.0
    %3825 = vmatpush1.msra.mxu0 0.0
    %3826 = vmatprep.subr.mxu0 0.0
    %3827 = vmatpush1.msra.mxu0 0.0
    %3828 = vmatprep.subr.mxu0 0.0
    %3829 = vmatpush1.msra.mxu0 0.0
    %3830 = vmatprep.subr.mxu0 0.0
    %3831 = vmatpush1.msra.mxu0 0.0
    %3832 = vmatprep.subr.mxu0 0.0
    %3833 = vmatpush1.msra.mxu0 0.0
    %3834 = vmatprep.subr.mxu0 0.0
    %3835 = vmatpush1.msra.mxu0 0.0
    %3836 = vmatprep.subr.mxu0 0.0
    %3837 = vmatpush1.msra.mxu0 0.0
    %3838 = vmatprep.subr.mxu0 0.0
    %3839 = vmatpush1.msra.mxu0 0.0
    %3840 = vmatprep.subr.mxu0 0.0
    %3841 = vmatpush1.msra.mxu0 0.0
    %3842 = vmatprep.subr.mxu0 0.0
    %3843 = vmatpush1.msra.mxu0 0.0
    %3844 = vmatprep.subr.mxu0 0.0
    %3845 = vmatpush1.msra.mxu0 0.0
    %3846 = vmatprep.subr.mxu0 0.0
    %3847 = vmatpush1.msra.mxu0 0.0
    %3848 = vmatprep.subr.mxu0 0.0
    %3849 = vmatpush1.msra.mxu0 0.0
    %3850 = vmatprep.subr.mxu0 0.0
    %3851 = vmatpush1.msra.mxu0 0.0
    %3852 = vmatprep.subr.mxu0 0.0
    %3853 = vmatpush1.msra.mxu0 0.0
    %3854 = vmatprep.subr.mxu0 0.0
    %3855 = vmatpush1.msra.mxu0 0.0
    %3856 = vmatprep.mubr.f32.mxu0 0.0
    %3857 = vmatmul.mubr.f32.gmra.mrb[0].mxu0 %v3790
    %v3858 = vpop.f32.mrb[0].mxu0
    %v3859 = vadd.f32 0.0, %v3858
    %v3860 = vpop.f32.mrb[0].mxu0
    %3861 = vdwg.mxu0
    %v3863 = vrot.slane %v3859, 4
    %v3865 = vadd.f32 %v3158, %v3863
    %v3866 = vxor.u32 %v3865, 2147483648
    %v3867 = vmul.f32 %v3866, 1.442695
    %v3868 = vpow.pop %v3867
    %v3869 = vadd.f32 %v3868, 1.0
    %v3870 = vrcp.pop %v3869
    %v3871 = vmul.f32 1.0, %v3870
    %v3872 = vtanh.pop %v3865
    %v3874 = vrot.slane %v3779, 6
    %v3876 = vmul.f32 %v3871, %v3874
    %3878 = vrot.lane.b32.xlu0 %v3872, 32
    %v3879 = vpop.permute.xlu0 %3878
    %v3881 = vmul.f32 %v3871, %v3879
    %3883 = vrot.lane.b32.xlu0 %v3881, 32
    %v3884 = vpop.permute.xlu0 %3883
    %v3886 = vadd.f32 %v3876, %v3884
    %v3887 = vtanh.pop %v3886
    %3889 = vrot.lane.b32.xlu0 %v3887, 32
    %v3890 = vpop.permute.xlu0 %3889
    %v3892 = vmul.f32 %v3871, %v3890
    %v3894 = vrot.slane %v3892, 4
    %3895 = vrot.lane.b32.xlu0 %v3894, 64
    %v3896 = vpop.permute.xlu0 %3895
    %v3897 = vsel %vm322, %v3896, 0
    %3899 = vmatprep.subr.mxu0 0.0
    %3900 = vmatpush1.msra.mxu0 %v3065
    %3901 = vmatprep.subr.mxu0 0.0
    %3902 = vmatpush1.msra.mxu0 %v3066
    %3903 = vmatprep.subr.mxu0 0.0
    %3904 = vmatpush1.msra.mxu0 %v3067
    %3905 = vmatprep.subr.mxu0 0.0
    %3906 = vmatpush1.msra.mxu0 %v3068
    %3907 = vmatprep.subr.mxu0 0.0
    %3908 = vmatpush1.msra.mxu0 0.0
    %3909 = vmatprep.subr.mxu0 0.0
    %3910 = vmatpush1.msra.mxu0 0.0
    %3911 = vmatprep.subr.mxu0 0.0
    %3912 = vmatpush1.msra.mxu0 0.0
    %3913 = vmatprep.subr.mxu0 0.0
    %3914 = vmatpush1.msra.mxu0 0.0
    %3915 = vmatprep.subr.mxu0 0.0
    %3916 = vmatpush1.msra.mxu0 0.0
    %3917 = vmatprep.subr.mxu0 0.0
    %3918 = vmatpush1.msra.mxu0 0.0
    %3919 = vmatprep.subr.mxu0 0.0
    %3920 = vmatpush1.msra.mxu0 0.0
    %3921 = vmatprep.subr.mxu0 0.0
    %3922 = vmatpush1.msra.mxu0 0.0
    %3923 = vmatprep.subr.mxu0 0.0
    %3924 = vmatpush1.msra.mxu0 0.0
    %3925 = vmatprep.subr.mxu0 0.0
    %3926 = vmatpush1.msra.mxu0 0.0
    %3927 = vmatprep.subr.mxu0 0.0
    %3928 = vmatpush1.msra.mxu0 0.0
    %3929 = vmatprep.subr.mxu0 0.0
    %3930 = vmatpush1.msra.mxu0 0.0
    %3931 = vmatprep.subr.mxu0 0.0
    %3932 = vmatpush1.msra.mxu0 0.0
    %3933 = vmatprep.subr.mxu0 0.0
    %3934 = vmatpush1.msra.mxu0 0.0
    %3935 = vmatprep.subr.mxu0 0.0
    %3936 = vmatpush1.msra.mxu0 0.0
    %3937 = vmatprep.subr.mxu0 0.0
    %3938 = vmatpush1.msra.mxu0 0.0
    %3939 = vmatprep.subr.mxu0 0.0
    %3940 = vmatpush1.msra.mxu0 0.0
    %3941 = vmatprep.subr.mxu0 0.0
    %3942 = vmatpush1.msra.mxu0 0.0
    %3943 = vmatprep.subr.mxu0 0.0
    %3944 = vmatpush1.msra.mxu0 0.0
    %3945 = vmatprep.subr.mxu0 0.0
    %3946 = vmatpush1.msra.mxu0 0.0
    %3947 = vmatprep.subr.mxu0 0.0
    %3948 = vmatpush1.msra.mxu0 0.0
    %3949 = vmatprep.subr.mxu0 0.0
    %3950 = vmatpush1.msra.mxu0 0.0
    %3951 = vmatprep.subr.mxu0 0.0
    %3952 = vmatpush1.msra.mxu0 0.0
    %3953 = vmatprep.subr.mxu0 0.0
    %3954 = vmatpush1.msra.mxu0 0.0
    %3955 = vmatprep.subr.mxu0 0.0
    %3956 = vmatpush1.msra.mxu0 0.0
    %3957 = vmatprep.subr.mxu0 0.0
    %3958 = vmatpush1.msra.mxu0 0.0
    %3959 = vmatprep.subr.mxu0 0.0
    %3960 = vmatpush1.msra.mxu0 0.0
    %3961 = vmatprep.subr.mxu0 0.0
    %3962 = vmatpush1.msra.mxu0 0.0
    %3963 = vmatprep.mubr.f32.mxu0 0.0
    %3964 = vmatmul.mubr.f32.gmra.mrb[0].mxu0 %v3897
    %v3965 = vpop.f32.mrb[0].mxu0
    %v3966 = vadd.f32 0.0, %v3965
    %v3967 = vpop.f32.mrb[0].mxu0
    %3968 = vdwg.mxu0
    %v3970 = vrot.slane %v3966, 2
    %v3972 = vadd.f32 %v3158, %v3970
    %v3973 = vxor.u32 %v3972, 2147483648
    %v3974 = vmul.f32 %v3973, 1.442695
    %v3975 = vpow.pop %v3974
    %v3976 = vadd.f32 %v3975, 1.0
    %v3977 = vrcp.pop %v3976
    %v3978 = vmul.f32 1.0, %v3977
    %v3979 = vtanh.pop %v3972
    %v3981 = vrot.slane %v3886, 6
    %v3983 = vmul.f32 %v3978, %v3981
    %3985 = vrot.lane.b32.xlu0 %v3979, 32
    %v3986 = vpop.permute.xlu0 %3985
    %v3988 = vmul.f32 %v3978, %v3986
    %3990 = vrot.lane.b32.xlu0 %v3988, 32
    %v3991 = vpop.permute.xlu0 %3990
    %v3993 = vadd.f32 %v3983, %v3991
    %v3994 = vtanh.pop %v3993
    %3996 = vrot.lane.b32.xlu0 %v3994, 32
    %v3997 = vpop.permute.xlu0 %3996
    %v3999 = vmul.f32 %v3978, %v3997
    %4001 = vrot.lane.b32.xlu0 %v3363, 96
    %v4002 = vpop.permute.xlu0 %4001
    %4005 = vrot.lane.b32.xlu0 %v3577, 32
    %v4006 = vpop.permute.xlu0 %4005
    %4009 = vrot.lane.b32.xlu0 %v3787, 96
    %v4010 = vpop.permute.xlu0 %4009
    %v4014 = vrot.slane %v3999, 6
    %4015 = vrot.lane.b32.xlu0 %v4014, 32
    %v4016 = vpop.permute.xlu0 %4015
    %v4018 = vsel %vm322, %v3258, %v4002
    %vm4019 = vcmask 523264
    %v4020 = vsel %vm4019, %v4018, %v3470
    %vm4021 = vcmask 785408
    %v4022 = vsel %vm4021, %v4020, %v4006
    %v4023 = vsel %vm322, %v3682, %v4010
    %v4024 = vsel %vm4019, %v4023, %v3894
    %v4025 = vsel %vm4021, %v4024, %v4016
    %v4028 = vcombine.low %v4022, %v4025
    %v4030 = vunpack.c.l.s4 1983009808
    %v4031 = vunpack.c.0.s8 %v4030
    %v4032 = vlaneseq
    %v4033 = vshrl.u32 %v4032, 7
    %v4034 = vsub.s32 %v4031, %v4033
    %v4035 = vrot.slane %v4028, %v4034
    %4037 = vst [vmem:[%s13] sm:$0xf] %v4035
    // Predicated region
    $region94: #{text_to_speech_forward.1} parent=1 // pred_check
      _
    $region95: #{text_to_speech_forward.1} parent=1 // pred_check_branch
      %4039 = sbr.rel (0) target = $region97
    $region96: #{text_to_speech_forward.1} parent=1 // pred_region
      _
    $region97: #{text_to_speech_forward.1} parent=1 // pred_fallthru
      _
    // Predicated region
    $region98: #{text_to_speech_forward.1} parent=1 // pred_check
      _
    $region99: #{text_to_speech_forward.1} parent=1 // pred_check_branch
      %4041 = sbr.rel (0) target = $region101
    $region100: #{text_to_speech_forward.1} parent=1 // pred_region
      _
    $region101: #{text_to_speech_forward.1} parent=1 // pred_fallthru
      _
    %4042 = vsyncpa [#allocation3], 1
    %4043 = vsyncpa [#allocation5], 1
    %4044 = vsyncpa [#allocation8], 1
    %4045 = vsyncpa [#allocation11], 1
    %4046 = vsyncpa [#allocation14], 1
    %4047 = vsyncpa [#allocation17], 1

</llo_original>
